<compile_context>
chip_gen: v5e
topology: v5e:2x2
jax: 0.10.0
libtpu: 0.0.40
codegen_flags: <defaults>
</compile_context>

<pallas_src>
import jax
import jax.numpy as jnp
import numpy as np
from jax import lax
from jax.experimental import pallas as pl
from jax.experimental.pallas import tpu as pltpu

EPS = 1e-5
LANES = 128


def _round_up(x, m):
    return (x + m - 1) // m * m


# --------------------------------------------------------------------------- #
# Kernel
# --------------------------------------------------------------------------- #
def bottleneck_kernel(x_ref, xt_ref, xb_ref,
                      w1_ref, b1_ref,
                      w2_ref, b2_ref,
                      w3_ref, b3_ref,
                      o_ref):
    _, TH, W, CinP = x_ref.shape
    CmP = w1_ref.shape[1]
    CoutP = w3_ref.shape[1]
    THp = TH + 2                 # tile rows + 1-row halo top/bottom
    M = THp * W                  # flattened rows incl. halos
    Mout = TH * W
    f32 = jnp.float32

    i = pl.program_id(1)
    last = pl.num_programs(1) - 1

    # ---- conv1 (1x1, bn1 scale folded into w1) + bias + relu -----------------
    x2d = x_ref[0].reshape(Mout, CinP)                                   # bf16
    b1 = b1_ref[...]
    h1_mid = jnp.maximum(
        jnp.dot(x2d, w1_ref[...], preferred_element_type=f32) + b1, 0.0)
    # Halo rows (last row of tile i-1 / first row of tile i+1).  When they fall
    # outside the image they must be exactly zero for conv2's zero padding
    # (relu(bn1(conv1(0))) != 0), so mask after bias/relu.
    h1_top = jnp.maximum(
        jnp.dot(xt_ref[0, 0], w1_ref[...], preferred_element_type=f32) + b1, 0.0)
    h1_bot = jnp.maximum(
        jnp.dot(xb_ref[0, 0], w1_ref[...], preferred_element_type=f32) + b1, 0.0)
    h1_top = h1_top * (i > 0).astype(f32)
    h1_bot = h1_bot * (i < last).astype(f32)
    h1 = jnp.concatenate([h1_top, h1_mid, h1_bot], axis=0)               # (M, CmP) f32

    # ---- conv2 (3x3, stride=1, pad=1, bn2 scale folded) ----------------------
    # kx taps: XLU roll + edge-column selects (wrap rows land only on masked cols).
    col = lax.broadcasted_iota(jnp.int32, (THp, W, CmP), 1).reshape(M, CmP)
    a_m1 = jnp.where(col > 0, pltpu.roll(h1, 1, axis=0), 0.0).astype(jnp.bfloat16)
    a_p1 = jnp.where(col < W - 1, pltpu.roll(h1, M - 1, axis=0), 0.0).astype(jnp.bfloat16)
    a_0 = h1.astype(jnp.bfloat16)

    # ky taps: matmul each ky over all M rows (K = CmP, lane-aligned), then align
    # the three results with output-side rolls; one aligned [:Mout] slice at the end.
    def ky_taps(ky):
        return (jnp.dot(a_m1, w2_ref[ky, 0], preferred_element_type=f32)
                + jnp.dot(a_0, w2_ref[ky, 1], preferred_element_type=f32)
                + jnp.dot(a_p1, w2_ref[ky, 2], preferred_element_type=f32))

    acc = ky_taps(0)
    acc = acc + pltpu.roll(ky_taps(1), M - W, axis=0)       # row q <- taps1[q + W]
    acc = acc + pltpu.roll(ky_taps(2), M - 2 * W, axis=0)   # row q <- taps2[q + 2W]
    h2 = jnp.maximum(acc[:Mout] + b2_ref[...], 0.0).astype(jnp.bfloat16)

    # ---- conv3 (1x1, bn3 scale folded) + bias + residual + relu --------------
    h3 = jnp.dot(h2, w3_ref[...], preferred_element_type=f32) + b3_ref[...]
    out = jnp.maximum(h3 + x2d.astype(f32), 0.0)            # CinP == CoutP (no downsample)
    o_ref[0] = out.astype(o_ref.dtype).reshape(TH, W, CoutP)


# --------------------------------------------------------------------------- #
# Tile-size heuristic (VMEM budget, v7x-safe)
# --------------------------------------------------------------------------- #
def _pick_tile_h(H, W, CinP, CmP, CoutP, budget_bytes):
    weights = 2 * 2 * (CinP * CmP + 9 * CmP * CmP + CmP * CoutP)  # bf16, double-buffered
    for th in range(H, 0, -1):
        if H % th:
            continue
        m = (th + 2) * W
        mo = th * W
        est = (weights
               + 2 * 2 * mo * (CinP + CoutP)            # x / out blocks, bf16, dbl-buffered
               + m * CmP * (4 * 4 + 3 * 2 + 4)          # f32 temps, bf16 taps, col iota
               + mo * (CmP * 2 + 2 * CoutP * 4))        # h2, h3/out
        if est <= budget_bytes:
            return th
    return 1


# --------------------------------------------------------------------------- #
# Wrappers
# --------------------------------------------------------------------------- #
def bottleneck_pallas_nhwc(x_nhwc, kparams, *, tile_h=None, out_dtype=jnp.bfloat16,
                           keep_padded=False, vmem_budget_bytes=24 * 1024 * 1024):
    """x_nhwc: (N, H, W, Cin) f32 or bf16 (optionally already channel-padded)."""
    w1_k, b1, w2_k, b2, w3_k, b3 = kparams
    N, H, W, Cin = x_nhwc.shape
    CinP, CmP = w1_k.shape
    CoutP = w3_k.shape[1]
    assert CinP == CoutP, "residual add requires inplanes == 4*planes (downsample=None)"

    if tile_h is None:
        tile_h = _pick_tile_h(H, W, CinP, CmP, CoutP, vmem_budget_bytes)
    assert H % tile_h == 0, "H must be divisible by tile_h"
    NT = H // tile_h

    xp = x_nhwc
    if Cin != CinP:
        xp = jnp.pad(xp, ((0, 0), (0, 0), (0, 0), (0, CinP - Cin)))
    if xp.dtype != jnp.bfloat16:
        xp = xp.astype(jnp.bfloat16)

    def rep(shape):
        return pl.BlockSpec(shape, lambda n, i: (0,) * len(shape))

    flops = 2 * N * H * W * (CinP * CmP + 9 * CmP * CmP + CmP * CoutP)
    bytes_accessed = int(
        xp.size * 2
        + N * H * W * CoutP * jnp.dtype(out_dtype).itemsize
        + (w1_k.size + w2_k.size + w3_k.size) * 2
        + (b1.size + b2.size + b3.size) * 4)

    out = pl.pallas_call(
        bottleneck_kernel,
        out_shape=jax.ShapeDtypeStruct((N, H, W, CoutP), out_dtype),
        grid=(N, NT),
        in_specs=[
            # main tile
            pl.BlockSpec((1, tile_h, W, CinP), lambda n, i: (n, i, 0, 0)),
            # 1-row halos read straight from x (index clamped; masked in-kernel at edges)
            pl.BlockSpec((1, 1, W, CinP),
                         lambda n, i: (n, jnp.maximum(i * tile_h - 1, 0), 0, 0)),
            pl.BlockSpec((1, 1, W, CinP),
                         lambda n, i: (n, jnp.minimum((i + 1) * tile_h, H - 1), 0, 0)),
            # weights / biases: constant blocks across the grid
            rep((CinP, CmP)), rep((1, CmP)),
            rep((3, 3, CmP, CmP)), rep((1, CmP)),
            rep((CmP, CoutP)), rep((1, CoutP)),
        ],
        out_specs=pl.BlockSpec((1, tile_h, W, CoutP), lambda n, i: (n, i, 0, 0)),
        compiler_params=pltpu.CompilerParams(
            dimension_semantics=("parallel", "parallel"),
            vmem_limit_bytes=48 * 1024 * 1024),
        cost_estimate=pl.CostEstimate(flops=flops, transcendentals=0,
                                      bytes_accessed=bytes_accessed),
    )(xp, xp, xp, w1_k, b1, w2_k, b2, w3_k, b3)

    if keep_padded or Cin == CoutP:
        return out
    return out[..., :Cin]


def bottleneck_pallas(x_nchw, kparams, **kw):
    """PyTorch-layout wrapper: (N, Cin, H, W) -> (N, Cout, H, W)."""
    x_nhwc = jnp.transpose(x_nchw, (0, 2, 3, 1))
    y = bottleneck_pallas_nhwc(x_nhwc, kparams, **kw)
    return jnp.transpose(y, (0, 3, 1, 2))


# --------------------------------------------------------------------------- #
# Parameter preparation (fold BN scale into bf16 weights, keep bias, pad channels)
# --------------------------------------------------------------------------- #
def prepare_params(w1, w2, w3, bn1, bn2, bn3):
    """w*: PyTorch OIHW conv weights; bn* = (gamma, beta, running_mean, running_var)."""
    Cm, Cin = w1.shape[0], w1.shape[1]
    Cout = w3.shape[0]
    CinP, CmP, CoutP = (_round_up(c, LANES) for c in (Cin, Cm, Cout))

    def fold(bn):
        gamma, beta, mean, var = bn
        s = gamma / jnp.sqrt(var + EPS)
        return s, beta - mean * s

    s1, b1 = fold(bn1)
    s2, b2 = fold(bn2)
    s3, b3 = fold(bn3)

    def pad2(a, r, c):
        return jnp.pad(a, ((0, r - a.shape[0]), (0, c - a.shape[1])))

    def padb(b, c):
        return jnp.pad(b, (0, c - b.shape[0]))[None, :].astype(jnp.float32)

    # conv1: (Cm, Cin, 1, 1) -> (CinP, CmP), scale folded per output column
    w1_k = pad2(jnp.transpose(w1[:, :, 0, 0] * s1[:, None]), CinP, CmP).astype(jnp.bfloat16)
    # conv2: (Cm, Cm, 3, 3) -> (3, 3, CmP, CmP) indexed [ky, kx, cin, cout]
    w2_sc = w2 * s2[:, None, None, None]
    w2_k = jnp.stack([
        jnp.stack([pad2(jnp.transpose(w2_sc[:, :, ky, kx]), CmP, CmP)
                   for kx in range(3)], axis=0)
        for ky in range(3)], axis=0).astype(jnp.bfloat16)
    # conv3: (Cout, Cm, 1, 1) -> (CmP, CoutP)
    w3_k = pad2(jnp.transpose(w3[:, :, 0, 0] * s3[:, None]), CmP, CoutP).astype(jnp.bfloat16)

    return (w1_k, padb(b1, CmP), w2_k, padb(b2, CmP), w3_k, padb(b3, CoutP))


# --------------------------------------------------------------------------- #
# Reference (plain JAX, NCHW, mirrors the kernel's precision: bf16 inputs and
# scale-folded bf16 weights, f32 accumulation, bf16 output)
# --------------------------------------------------------------------------- #
def _fold_ref(w, bn):
    gamma, beta, mean, var = bn
    s = gamma / jnp.sqrt(var + EPS)
    b = beta - mean * s
    return (w * s[:, None, None, None]).astype(jnp.bfloat16), b


def _conv(x, w, padding=0):
    return lax.conv_general_dilated(
        x.astype(jnp.bfloat16), w, (1, 1),
        [(padding, padding), (padding, padding)],
        dimension_numbers=('NCHW', 'OIHW', 'NCHW'),
        preferred_element_type=jnp.float32)


def bottleneck_reference(x, w1, w2, w3, bn1, bn2, bn3):
    w1f, b1 = _fold_ref(w1, bn1)
    w2f, b2 = _fold_ref(w2, bn2)
    w3f, b3 = _fold_ref(w3, bn3)
    out = jnp.maximum(_conv(x, w1f) + b1[None, :, None, None], 0.0)
    out = jnp.maximum(_conv(out, w2f, padding=1) + b2[None, :, None, None], 0.0)
    out = _conv(out, w3f) + b3[None, :, None, None]
    out = jnp.maximum(out + x.astype(jnp.bfloat16).astype(jnp.float32), 0.0)
    return out.astype(jnp.bfloat16)


# --------------------------------------------------------------------------- #
if __name__ == "__main__":
    # planes=4 -> inplanes = expansion*planes = 16 (downsample=None path).
    N, planes, H, W = 2, 4, 16, 16
    inplanes = planes * 4
    Cout = planes * 4

    key = jax.random.PRNGKey(0)
    ks = jax.random.split(key, 16)

    x = jax.random.normal(ks[0], (N, inplanes, H, W), dtype=jnp.float32)

    # PyTorch-layout (OIHW) conv weights.
    w1 = jax.random.normal(ks[1], (planes, inplanes, 1, 1), jnp.float32) * 0.1
    w2 = jax.random.normal(ks[2], (planes, planes, 3, 3), jnp.float32) * 0.1
    w3 = jax.random.normal(ks[3], (Cout, planes, 1, 1), jnp.float32) * 0.1

    def bn_params(kg, kb, km, kv, c):
        gamma = jax.random.normal(kg, (c,), jnp.float32) * 0.1 + 1.0
        beta = jax.random.normal(kb, (c,), jnp.float32) * 0.1
        mean = jax.random.normal(km, (c,), jnp.float32) * 0.1
        var = jnp.abs(jax.random.normal(kv, (c,), jnp.float32)) + 0.5
        return gamma, beta, mean, var

    bn1 = bn_params(ks[4], ks[5], ks[6], ks[7], planes)
    bn2 = bn_params(ks[8], ks[9], ks[10], ks[11], planes)
    bn3 = bn_params(ks[12], ks[13], ks[14], ks[15], Cout)

    kparams = prepare_params(w1, w2, w3, bn1, bn2, bn3)

    out = bottleneck_pallas(x, kparams)
    out = jax.block_until_ready(out)

    ref = bottleneck_reference(x, w1, w2, w3, bn1, bn2, bn3)
    ref = jax.block_until_ready(ref)

    np.testing.assert_allclose(np.asarray(out.astype(jnp.float32)),
                               np.asarray(ref.astype(jnp.float32)),
                               rtol=1e-2, atol=1e-2)
    print("KERNEL_OK")
</pallas_src>

<mosaic_0001>
module attributes {stable_mosaic.version = 11 : i64} {
  func.func @bottleneck_kernel(%arg0: i32, %arg1: i32, %arg2: memref<1x16x16x128xbf16, #tpu.memory_space<vmem>>, %arg3: memref<1x1x16x128xbf16, #tpu.memory_space<vmem>>, %arg4: memref<1x1x16x128xbf16, #tpu.memory_space<vmem>>, %arg5: memref<128x128xbf16, #tpu.memory_space<vmem>>, %arg6: memref<1x128xf32, #tpu.memory_space<vmem>>, %arg7: memref<3x3x128x128xbf16, #tpu.memory_space<vmem>>, %arg8: memref<1x128xf32, #tpu.memory_space<vmem>>, %arg9: memref<128x128xbf16, #tpu.memory_space<vmem>>, %arg10: memref<1x128xf32, #tpu.memory_space<vmem>>, %arg11: memref<1x16x16x128xbf16, #tpu.memory_space<vmem>>) attributes {dimension_semantics = [#tpu.dimension_semantics<parallel>, #tpu.dimension_semantics<parallel>], iteration_bounds = array<i64: 2, 1>, scalar_prefetch = 0 : i64, scratch_operands = 0 : i64, tpu.core_type = #tpu.core_type<tc>, window_params = [{transform_indices = @transform_0, window_bounds = array<i64: 1, 16, 16, 128>}, {transform_indices = @transform_1, window_bounds = array<i64: 1, 1, 16, 128>}, {transform_indices = @transform_2, window_bounds = array<i64: 1, 1, 16, 128>}, {pipeline_mode = #tpu.pipeline_mode<synchronous>, transform_indices = @transform_3, window_bounds = array<i64: 128, 128>}, {pipeline_mode = #tpu.pipeline_mode<synchronous>, transform_indices = @transform_4, window_bounds = array<i64: 1, 128>}, {pipeline_mode = #tpu.pipeline_mode<synchronous>, transform_indices = @transform_5, window_bounds = array<i64: 3, 3, 128, 128>}, {pipeline_mode = #tpu.pipeline_mode<synchronous>, transform_indices = @transform_6, window_bounds = array<i64: 1, 128>}, {pipeline_mode = #tpu.pipeline_mode<synchronous>, transform_indices = @transform_7, window_bounds = array<i64: 128, 128>}, {pipeline_mode = #tpu.pipeline_mode<synchronous>, transform_indices = @transform_8, window_bounds = array<i64: 1, 128>}, {transform_indices = @transform_9, window_bounds = array<i64: 1, 16, 16, 128>}]} {
    %c0 = arith.constant 0 : index
    %c0_0 = arith.constant 0 : index
    %c0_1 = arith.constant 0 : index
    %c0_2 = arith.constant 0 : index
    %0 = vector.load %arg2[%c0, %c0_0, %c0_1, %c0_2] : memref<1x16x16x128xbf16, #tpu.memory_space<vmem>>, vector<1x16x16x128xbf16>
    %1 = vector.shape_cast %0 : vector<1x16x16x128xbf16> to vector<16x16x128xbf16>
    %2 = vector.shape_cast %1 : vector<16x16x128xbf16> to vector<256x128xbf16>
    %c0_3 = arith.constant 0 : index
    %c0_4 = arith.constant 0 : index
    %3 = vector.load %arg6[%c0_3, %c0_4] : memref<1x128xf32, #tpu.memory_space<vmem>>, vector<1x128xf32>
    %c0_5 = arith.constant 0 : index
    %c0_6 = arith.constant 0 : index
    %4 = vector.load %arg5[%c0_5, %c0_6] : memref<128x128xbf16, #tpu.memory_space<vmem>>, vector<128x128xbf16>
    %cst = arith.constant dense<0.000000e+00> : vector<256x128xf32>
    %5 = tpu.matmul %2, %4, %cst {dimension_numbers = #tpu.dot_dimension_numbers<[1], [0], [0], [1], [0, 0, 1, 1], [], []>} : vector<256x128xbf16>, vector<128x128xbf16>, vector<256x128xf32> -> vector<256x128xf32>
    %6 = vector.broadcast %3 : vector<1x128xf32> to vector<256x128xf32>
    %7 = arith.addf %5, %6 : vector<256x128xf32>
    %cst_7 = arith.constant 0.000000e+00 : f32
    %8 = vector.broadcast %cst_7 : f32 to vector<256x128xf32>
    %9 = arith.maximumf %7, %8 : vector<256x128xf32>
    %c0_8 = arith.constant 0 : index
    %c0_9 = arith.constant 0 : index
    %c0_10 = arith.constant 0 : index
    %c0_11 = arith.constant 0 : index
    %10 = vector.load %arg3[%c0_8, %c0_9, %c0_10, %c0_11] : memref<1x1x16x128xbf16, #tpu.memory_space<vmem>>, vector<1x1x16x128xbf16>
    %11 = vector.shape_cast %10 : vector<1x1x16x128xbf16> to vector<16x128xbf16>
    %c0_12 = arith.constant 0 : index
    %c0_13 = arith.constant 0 : index
    %12 = vector.load %arg5[%c0_12, %c0_13] : memref<128x128xbf16, #tpu.memory_space<vmem>>, vector<128x128xbf16>
    %cst_14 = arith.constant dense<0.000000e+00> : vector<16x128xf32>
    %13 = tpu.matmul %11, %12, %cst_14 {dimension_numbers = #tpu.dot_dimension_numbers<[1], [0], [0], [1], [0, 0, 1, 1], [], []>} : vector<16x128xbf16>, vector<128x128xbf16>, vector<16x128xf32> -> vector<16x128xf32>
    %14 = vector.broadcast %3 : vector<1x128xf32> to vector<16x128xf32>
    %15 = arith.addf %13, %14 : vector<16x128xf32>
    %cst_15 = arith.constant 0.000000e+00 : f32
    %16 = vector.broadcast %cst_15 : f32 to vector<16x128xf32>
    %17 = arith.maximumf %15, %16 : vector<16x128xf32>
    %c0_16 = arith.constant 0 : index
    %c0_17 = arith.constant 0 : index
    %c0_18 = arith.constant 0 : index
    %c0_19 = arith.constant 0 : index
    %18 = vector.load %arg4[%c0_16, %c0_17, %c0_18, %c0_19] : memref<1x1x16x128xbf16, #tpu.memory_space<vmem>>, vector<1x1x16x128xbf16>
    %19 = vector.shape_cast %18 : vector<1x1x16x128xbf16> to vector<16x128xbf16>
    %c0_20 = arith.constant 0 : index
    %c0_21 = arith.constant 0 : index
    %20 = vector.load %arg5[%c0_20, %c0_21] : memref<128x128xbf16, #tpu.memory_space<vmem>>, vector<128x128xbf16>
    %cst_22 = arith.constant dense<0.000000e+00> : vector<16x128xf32>
    %21 = tpu.matmul %19, %20, %cst_22 {dimension_numbers = #tpu.dot_dimension_numbers<[1], [0], [0], [1], [0, 0, 1, 1], [], []>} : vector<16x128xbf16>, vector<128x128xbf16>, vector<16x128xf32> -> vector<16x128xf32>
    %22 = vector.broadcast %3 : vector<1x128xf32> to vector<16x128xf32>
    %23 = arith.addf %21, %22 : vector<16x128xf32>
    %cst_23 = arith.constant 0.000000e+00 : f32
    %24 = vector.broadcast %cst_23 : f32 to vector<16x128xf32>
    %25 = arith.maximumf %23, %24 : vector<16x128xf32>
    %c0_i32 = arith.constant 0 : i32
    %26 = arith.cmpi sgt, %arg1, %c0_i32 : i32
    %27 = arith.extui %26 : i1 to i32
    %28 = arith.sitofp %27 : i32 to f32
    %29 = vector.broadcast %28 : f32 to vector<16x128xf32>
    %30 = arith.mulf %17, %29 : vector<16x128xf32>
    %c0_i32_24 = arith.constant 0 : i32
    %31 = arith.cmpi slt, %arg1, %c0_i32_24 : i32
    %32 = arith.extui %31 : i1 to i32
    %33 = arith.sitofp %32 : i32 to f32
    %34 = vector.broadcast %33 : f32 to vector<16x128xf32>
    %35 = arith.mulf %25, %34 : vector<16x128xf32>
    %36 = tpu.concatenate %30, %9, %35 in 0 : vector<16x128xf32>, vector<256x128xf32>, vector<16x128xf32> -> vector<288x128xf32>
    %37 = tpu.iota {dimensions = array<i32: 1>} : vector<18x16x128xi32>
    %38 = vector.shape_cast %37 : vector<18x16x128xi32> to vector<288x128xi32>
    %c0_i32_25 = arith.constant 0 : i32
    %39 = vector.broadcast %c0_i32_25 : i32 to vector<288x128xi32>
    %40 = arith.cmpi sgt, %38, %39 : vector<288x128xi32>
    %c1_i32 = arith.constant 1 : i32
    %41 = tpu.dynamic_rotate %36 by %c1_i32 dim 0 : vector<288x128xf32>, i32 -> vector<288x128xf32>
    %cst_26 = arith.constant 0.000000e+00 : f32
    %42 = vector.broadcast %cst_26 : f32 to vector<288x128xf32>
    %43 = arith.select %40, %41, %42 : vector<288x128xi1>, vector<288x128xf32>
    %44 = arith.truncf %43 : vector<288x128xf32> to vector<288x128xbf16>
    %c15_i32 = arith.constant 15 : i32
    %45 = vector.broadcast %c15_i32 : i32 to vector<288x128xi32>
    %46 = arith.cmpi slt, %38, %45 : vector<288x128xi32>
    %c287_i32 = arith.constant 287 : i32
    %47 = tpu.dynamic_rotate %36 by %c287_i32 dim 0 : vector<288x128xf32>, i32 -> vector<288x128xf32>
    %cst_27 = arith.constant 0.000000e+00 : f32
    %48 = vector.broadcast %cst_27 : f32 to vector<288x128xf32>
    %49 = arith.select %46, %47, %48 : vector<288x128xi1>, vector<288x128xf32>
    %50 = arith.truncf %49 : vector<288x128xf32> to vector<288x128xbf16>
    %51 = arith.truncf %36 : vector<288x128xf32> to vector<288x128xbf16>
    %c0_28 = arith.constant 0 : index
    %c0_29 = arith.constant 0 : index
    %c0_30 = arith.constant 0 : index
    %c0_31 = arith.constant 0 : index
    %52 = vector.load %arg7[%c0_28, %c0_29, %c0_30, %c0_31] : memref<3x3x128x128xbf16, #tpu.memory_space<vmem>>, vector<1x1x128x128xbf16>
    %53 = vector.shape_cast %52 : vector<1x1x128x128xbf16> to vector<128x128xbf16>
    %cst_32 = arith.constant dense<0.000000e+00> : vector<288x128xf32>
    %54 = tpu.matmul %44, %53, %cst_32 {dimension_numbers = #tpu.dot_dimension_numbers<[1], [0], [0], [1], [0, 0, 1, 1], [], []>} : vector<288x128xbf16>, vector<128x128xbf16>, vector<288x128xf32> -> vector<288x128xf32>
    %c0_33 = arith.constant 0 : index
    %c1 = arith.constant 1 : index
    %c0_34 = arith.constant 0 : index
    %c0_35 = arith.constant 0 : index
    %55 = vector.load %arg7[%c0_33, %c1, %c0_34, %c0_35] : memref<3x3x128x128xbf16, #tpu.memory_space<vmem>>, vector<1x1x128x128xbf16>
    %56 = vector.shape_cast %55 : vector<1x1x128x128xbf16> to vector<128x128xbf16>
    %cst_36 = arith.constant dense<0.000000e+00> : vector<288x128xf32>
    %57 = tpu.matmul %51, %56, %cst_36 {dimension_numbers = #tpu.dot_dimension_numbers<[1], [0], [0], [1], [0, 0, 1, 1], [], []>} : vector<288x128xbf16>, vector<128x128xbf16>, vector<288x128xf32> -> vector<288x128xf32>
    %58 = arith.addf %54, %57 : vector<288x128xf32>
    %c0_37 = arith.constant 0 : index
    %c2 = arith.constant 2 : index
    %c0_38 = arith.constant 0 : index
    %c0_39 = arith.constant 0 : index
    %59 = vector.load %arg7[%c0_37, %c2, %c0_38, %c0_39] : memref<3x3x128x128xbf16, #tpu.memory_space<vmem>>, vector<1x1x128x128xbf16>
    %60 = vector.shape_cast %59 : vector<1x1x128x128xbf16> to vector<128x128xbf16>
    %cst_40 = arith.constant dense<0.000000e+00> : vector<288x128xf32>
    %61 = tpu.matmul %50, %60, %cst_40 {dimension_numbers = #tpu.dot_dimension_numbers<[1], [0], [0], [1], [0, 0, 1, 1], [], []>} : vector<288x128xbf16>, vector<128x128xbf16>, vector<288x128xf32> -> vector<288x128xf32>
    %62 = arith.addf %58, %61 : vector<288x128xf32>
    %c1_41 = arith.constant 1 : index
    %c0_42 = arith.constant 0 : index
    %c0_43 = arith.constant 0 : index
    %c0_44 = arith.constant 0 : index
    %63 = vector.load %arg7[%c1_41, %c0_42, %c0_43, %c0_44] : memref<3x3x128x128xbf16, #tpu.memory_space<vmem>>, vector<1x1x128x128xbf16>
    %64 = vector.shape_cast %63 : vector<1x1x128x128xbf16> to vector<128x128xbf16>
    %cst_45 = arith.constant dense<0.000000e+00> : vector<288x128xf32>
    %65 = tpu.matmul %44, %64, %cst_45 {dimension_numbers = #tpu.dot_dimension_numbers<[1], [0], [0], [1], [0, 0, 1, 1], [], []>} : vector<288x128xbf16>, vector<128x128xbf16>, vector<288x128xf32> -> vector<288x128xf32>
    %c1_46 = arith.constant 1 : index
    %c1_47 = arith.constant 1 : index
    %c0_48 = arith.constant 0 : index
    %c0_49 = arith.constant 0 : index
    %66 = vector.load %arg7[%c1_46, %c1_47, %c0_48, %c0_49] : memref<3x3x128x128xbf16, #tpu.memory_space<vmem>>, vector<1x1x128x128xbf16>
    %67 = vector.shape_cast %66 : vector<1x1x128x128xbf16> to vector<128x128xbf16>
    %cst_50 = arith.constant dense<0.000000e+00> : vector<288x128xf32>
    %68 = tpu.matmul %51, %67, %cst_50 {dimension_numbers = #tpu.dot_dimension_numbers<[1], [0], [0], [1], [0, 0, 1, 1], [], []>} : vector<288x128xbf16>, vector<128x128xbf16>, vector<288x128xf32> -> vector<288x128xf32>
    %69 = arith.addf %65, %68 : vector<288x128xf32>
    %c1_51 = arith.constant 1 : index
    %c2_52 = arith.constant 2 : index
    %c0_53 = arith.constant 0 : index
    %c0_54 = arith.constant 0 : index
    %70 = vector.load %arg7[%c1_51, %c2_52, %c0_53, %c0_54] : memref<3x3x128x128xbf16, #tpu.memory_space<vmem>>, vector<1x1x128x128xbf16>
    %71 = vector.shape_cast %70 : vector<1x1x128x128xbf16> to vector<128x128xbf16>
    %cst_55 = arith.constant dense<0.000000e+00> : vector<288x128xf32>
    %72 = tpu.matmul %50, %71, %cst_55 {dimension_numbers = #tpu.dot_dimension_numbers<[1], [0], [0], [1], [0, 0, 1, 1], [], []>} : vector<288x128xbf16>, vector<128x128xbf16>, vector<288x128xf32> -> vector<288x128xf32>
    %73 = arith.addf %69, %72 : vector<288x128xf32>
    %c272_i32 = arith.constant 272 : i32
    %74 = tpu.dynamic_rotate %73 by %c272_i32 dim 0 : vector<288x128xf32>, i32 -> vector<288x128xf32>
    %75 = arith.addf %62, %74 : vector<288x128xf32>
    %c2_56 = arith.constant 2 : index
    %c0_57 = arith.constant 0 : index
    %c0_58 = arith.constant 0 : index
    %c0_59 = arith.constant 0 : index
    %76 = vector.load %arg7[%c2_56, %c0_57, %c0_58, %c0_59] : memref<3x3x128x128xbf16, #tpu.memory_space<vmem>>, vector<1x1x128x128xbf16>
    %77 = vector.shape_cast %76 : vector<1x1x128x128xbf16> to vector<128x128xbf16>
    %cst_60 = arith.constant dense<0.000000e+00> : vector<288x128xf32>
    %78 = tpu.matmul %44, %77, %cst_60 {dimension_numbers = #tpu.dot_dimension_numbers<[1], [0], [0], [1], [0, 0, 1, 1], [], []>} : vector<288x128xbf16>, vector<128x128xbf16>, vector<288x128xf32> -> vector<288x128xf32>
    %c2_61 = arith.constant 2 : index
    %c1_62 = arith.constant 1 : index
    %c0_63 = arith.constant 0 : index
    %c0_64 = arith.constant 0 : index
    %79 = vector.load %arg7[%c2_61, %c1_62, %c0_63, %c0_64] : memref<3x3x128x128xbf16, #tpu.memory_space<vmem>>, vector<1x1x128x128xbf16>
    %80 = vector.shape_cast %79 : vector<1x1x128x128xbf16> to vector<128x128xbf16>
    %cst_65 = arith.constant dense<0.000000e+00> : vector<288x128xf32>
    %81 = tpu.matmul %51, %80, %cst_65 {dimension_numbers = #tpu.dot_dimension_numbers<[1], [0], [0], [1], [0, 0, 1, 1], [], []>} : vector<288x128xbf16>, vector<128x128xbf16>, vector<288x128xf32> -> vector<288x128xf32>
    %82 = arith.addf %78, %81 : vector<288x128xf32>
    %c2_66 = arith.constant 2 : index
    %c2_67 = arith.constant 2 : index
    %c0_68 = arith.constant 0 : index
    %c0_69 = arith.constant 0 : index
    %83 = vector.load %arg7[%c2_66, %c2_67, %c0_68, %c0_69] : memref<3x3x128x128xbf16, #tpu.memory_space<vmem>>, vector<1x1x128x128xbf16>
    %84 = vector.shape_cast %83 : vector<1x1x128x128xbf16> to vector<128x128xbf16>
    %cst_70 = arith.constant dense<0.000000e+00> : vector<288x128xf32>
    %85 = tpu.matmul %50, %84, %cst_70 {dimension_numbers = #tpu.dot_dimension_numbers<[1], [0], [0], [1], [0, 0, 1, 1], [], []>} : vector<288x128xbf16>, vector<128x128xbf16>, vector<288x128xf32> -> vector<288x128xf32>
    %86 = arith.addf %82, %85 : vector<288x128xf32>
    %c256_i32 = arith.constant 256 : i32
    %87 = tpu.dynamic_rotate %86 by %c256_i32 dim 0 : vector<288x128xf32>, i32 -> vector<288x128xf32>
    %88 = arith.addf %75, %87 : vector<288x128xf32>
    %89 = vector.extract_strided_slice %88 {offsets = [0, 0], sizes = [256, 128], strides = [1, 1]} : vector<288x128xf32> to vector<256x128xf32>
    %c0_71 = arith.constant 0 : index
    %c0_72 = arith.constant 0 : index
    %90 = vector.load %arg8[%c0_71, %c0_72] : memref<1x128xf32, #tpu.memory_space<vmem>>, vector<1x128xf32>
    %91 = vector.broadcast %90 : vector<1x128xf32> to vector<256x128xf32>
    %92 = arith.addf %89, %91 : vector<256x128xf32>
    %cst_73 = arith.constant 0.000000e+00 : f32
    %93 = vector.broadcast %cst_73 : f32 to vector<256x128xf32>
    %94 = arith.maximumf %92, %93 : vector<256x128xf32>
    %95 = arith.truncf %94 : vector<256x128xf32> to vector<256x128xbf16>
    %c0_74 = arith.constant 0 : index
    %c0_75 = arith.constant 0 : index
    %96 = vector.load %arg9[%c0_74, %c0_75] : memref<128x128xbf16, #tpu.memory_space<vmem>>, vector<128x128xbf16>
    %cst_76 = arith.constant dense<0.000000e+00> : vector<256x128xf32>
    %97 = tpu.matmul %95, %96, %cst_76 {dimension_numbers = #tpu.dot_dimension_numbers<[1], [0], [0], [1], [0, 0, 1, 1], [], []>} : vector<256x128xbf16>, vector<128x128xbf16>, vector<256x128xf32> -> vector<256x128xf32>
    %c0_77 = arith.constant 0 : index
    %c0_78 = arith.constant 0 : index
    %98 = vector.load %arg10[%c0_77, %c0_78] : memref<1x128xf32, #tpu.memory_space<vmem>>, vector<1x128xf32>
    %99 = vector.broadcast %98 : vector<1x128xf32> to vector<256x128xf32>
    %100 = arith.addf %97, %99 : vector<256x128xf32>
    %101 = arith.extf %2 : vector<256x128xbf16> to vector<256x128xf32>
    %102 = arith.addf %100, %101 : vector<256x128xf32>
    %cst_79 = arith.constant 0.000000e+00 : f32
    %103 = vector.broadcast %cst_79 : f32 to vector<256x128xf32>
    %104 = arith.maximumf %102, %103 : vector<256x128xf32>
    %105 = arith.truncf %104 : vector<256x128xf32> to vector<256x128xbf16>
    %106 = vector.shape_cast %105 : vector<256x128xbf16> to vector<16x16x128xbf16>
    %c0_80 = arith.constant 0 : index
    %c0_81 = arith.constant 0 : index
    %c0_82 = arith.constant 0 : index
    %c0_83 = arith.constant 0 : index
    %107 = vector.load %arg11[%c0_80, %c0_81, %c0_82, %c0_83] : memref<1x16x16x128xbf16, #tpu.memory_space<vmem>>, vector<1x16x16x128xbf16>
    %108 = vector.shape_cast %107 : vector<1x16x16x128xbf16> to vector<16x16x128xbf16>
    %109 = vector.shape_cast %106 : vector<16x16x128xbf16> to vector<1x16x16x128xbf16>
    tpu.vector_store %arg11[%c0_80, %c0_81, %c0_82, %c0_83], %109 {strides = array<i32>} : memref<1x16x16x128xbf16, #tpu.memory_space<vmem>>, vector<1x16x16x128xbf16>,
    return
  }
  func.func @transform_0(%arg0: i32, %arg1: i32) -> (i32, i32, i32, i32) {
    %c0_i32 = arith.constant 0 : i32
    %c0_i32_0 = arith.constant 0 : i32
    %c0_i32_1 = arith.constant 0 : i32
    return %arg0, %arg1, %c0_i32, %c0_i32_0 : i32, i32, i32, i32
  }
  func.func @transform_1(%arg0: i32, %arg1: i32) -> (i32, i32, i32, i32) {
    %c16_i32 = arith.constant 16 : i32
    %0 = arith.muli %arg1, %c16_i32 : i32
    %c1_i32 = arith.constant 1 : i32
    %1 = arith.subi %0, %c1_i32 : i32
    %c0_i32 = arith.constant 0 : i32
    %2 = arith.maxsi %1, %c0_i32 : i32
    %c0_i32_0 = arith.constant 0 : i32
    %c0_i32_1 = arith.constant 0 : i32
    %c0_i32_2 = arith.constant 0 : i32
    return %arg0, %2, %c0_i32_0, %c0_i32_1 : i32, i32, i32, i32
  }
  func.func @transform_2(%arg0: i32, %arg1: i32) -> (i32, i32, i32, i32) {
    %c1_i32 = arith.constant 1 : i32
    %0 = arith.addi %arg1, %c1_i32 : i32
    %c16_i32 = arith.constant 16 : i32
    %1 = arith.muli %0, %c16_i32 : i32
    %c15_i32 = arith.constant 15 : i32
    %2 = arith.minsi %1, %c15_i32 : i32
    %c0_i32 = arith.constant 0 : i32
    %c0_i32_0 = arith.constant 0 : i32
    %c0_i32_1 = arith.constant 0 : i32
    return %arg0, %2, %c0_i32, %c0_i32_0 : i32, i32, i32, i32
  }
  func.func @transform_3(%arg0: i32, %arg1: i32) -> (i32, i32) {
    %c0_i32 = arith.constant 0 : i32
    %c0_i32_0 = arith.constant 0 : i32
    %c0_i32_1 = arith.constant 0 : i32
    return %c0_i32, %c0_i32_0 : i32, i32
  }
  func.func @transform_4(%arg0: i32, %arg1: i32) -> (i32, i32) {
    %c0_i32 = arith.constant 0 : i32
    %c0_i32_0 = arith.constant 0 : i32
    %c0_i32_1 = arith.constant 0 : i32
    return %c0_i32, %c0_i32_0 : i32, i32
  }
  func.func @transform_5(%arg0: i32, %arg1: i32) -> (i32, i32, i32, i32) {
    %c0_i32 = arith.constant 0 : i32
    %c0_i32_0 = arith.constant 0 : i32
    %c0_i32_1 = arith.constant 0 : i32
    %c0_i32_2 = arith.constant 0 : i32
    %c0_i32_3 = arith.constant 0 : i32
    return %c0_i32, %c0_i32_0, %c0_i32_1, %c0_i32_2 : i32, i32, i32, i32
  }
  func.func @transform_6(%arg0: i32, %arg1: i32) -> (i32, i32) {
    %c0_i32 = arith.constant 0 : i32
    %c0_i32_0 = arith.constant 0 : i32
    %c0_i32_1 = arith.constant 0 : i32
    return %c0_i32, %c0_i32_0 : i32, i32
  }
  func.func @transform_7(%arg0: i32, %arg1: i32) -> (i32, i32) {
    %c0_i32 = arith.constant 0 : i32
    %c0_i32_0 = arith.constant 0 : i32
    %c0_i32_1 = arith.constant 0 : i32
    return %c0_i32, %c0_i32_0 : i32, i32
  }
  func.func @transform_8(%arg0: i32, %arg1: i32) -> (i32, i32) {
    %c0_i32 = arith.constant 0 : i32
    %c0_i32_0 = arith.constant 0 : i32
    %c0_i32_1 = arith.constant 0 : i32
    return %c0_i32, %c0_i32_0 : i32, i32
  }
  func.func @transform_9(%arg0: i32, %arg1: i32) -> (i32, i32, i32, i32) {
    %c0_i32 = arith.constant 0 : i32
    %c0_i32_0 = arith.constant 0 : i32
    %c0_i32_1 = arith.constant 0 : i32
    return %arg0, %arg1, %c0_i32, %c0_i32_0 : i32, i32, i32, i32
  }
}

</mosaic_0001>

<llo_original>
// kernel: tpu_custom_call.1
$region0: #{tpu_custom_call.1}
  #allocation0 [shape = 'u32[]', space=smem, size = 0x4, offset = 0x4, fixed_abs, tag = 'smem constant byte address 0x4 - core index']
  #allocation1 [shape = 'u32[72,128]{1,0:T(1,128)}', space=vmem, size = 0x9000, scoped, tag = 'internal scratch']
  %s0 = inlined_call_operand.hbm [shape: bf16[2,16,16,128], index: 0, kind: input, shape index: {}]
  %s1 = inlined_call_operand.hbm [shape: bf16[2,16,16,128], index: 1, kind: input, shape index: {}]
  %s2 = inlined_call_operand.hbm [shape: bf16[2,16,16,128], index: 2, kind: input, shape index: {}]
  %s3 = inlined_call_operand.hbm [shape: bf16[128,128], index: 3, kind: input, shape index: {}]
  %s4 = inlined_call_operand.vmem [shape: f32[1,128], index: 4, kind: input, shape index: {}]
  %s5 = inlined_call_operand.hbm [shape: bf16[3,3,128,128], index: 5, kind: input, shape index: {}]
  %s6 = inlined_call_operand.vmem [shape: f32[1,128], index: 6, kind: input, shape index: {}]
  %s7 = inlined_call_operand.hbm [shape: bf16[128,128], index: 7, kind: input, shape index: {}]
  %s8 = inlined_call_operand.vmem [shape: f32[1,128], index: 8, kind: input, shape index: {}]
  %s9 = inlined_call_operand.hbm [shape: bf16[2,16,16,128], index: 9, kind: output, shape index: {}]
  %s10 = sld [smem:[#allocation0]]
  $region93: #{tpu_custom_call.1} parent=0
    _
  %s12 = ssub.s32 1, %s10
  %s13 = scalar_select 0, %s12, %s10
  $region1: #{tpu_custom_call.1} parent=0
    #allocation2 [shape = 'u8[131072]{0}', space=vmem, size = 0x20000, scoped, tag = 'input window, operand 0']
    #allocation3 [shape = 's32[2]{0}', space=sflag, size = 0x8, scoped, tag = 'scoped memory for tpu_custom_call.1']
    #allocation4 [shape = 's32[2]{0}', space=sflag, size = 0x8, scoped, tag = 'scoped memory for tpu_custom_call.1']
    #allocation5 [shape = 'u8[8192]{0}', space=vmem, size = 0x2000, scoped, tag = 'input window, operand 1']
    #allocation6 [shape = 's32[2]{0}', space=sflag, size = 0x8, scoped, tag = 'scoped memory for tpu_custom_call.1']
    #allocation7 [shape = 'u8[8192]{0}', space=vmem, size = 0x2000, scoped, tag = 'input window, operand 2']
    #allocation8 [shape = 'u8[32768]{0}', space=vmem, size = 0x8000, scoped, tag = 'input window, operand 3, single buffered']
    #allocation9 [shape = 's32[1]{0}', space=sflag, size = 0x4, scoped, tag = 'scoped memory for tpu_custom_call.1']
    #allocation10 [shape = 'u8[294912]{0}', space=vmem, size = 0x48000, scoped, tag = 'input window, operand 5, single buffered']
    #allocation11 [shape = 'u8[32768]{0}', space=vmem, size = 0x8000, scoped, tag = 'input window, operand 7, single buffered']
    #allocation12 [shape = 's32[1]{0}', space=sflag, size = 0x4, scoped, tag = 'scoped memory for tpu_custom_call.1']
    #allocation13 [shape = 'u8[131072]{0}', space=vmem, size = 0x20000, scoped, tag = 'output window, operand 0']
    %14 = vsyncpa [#allocation3], 0
    %s15 = scalar_lea.sflag [#allocation3], 1
    %16 = vsyncpa %s15, 0
    %17 = vsyncpa [#allocation6], 0
    %s18 = scalar_lea.sflag [#allocation6], 1
    %19 = vsyncpa %s18, 0
    %20 = vsyncpa [#allocation9], 0
    %21 = vsyncpa [#allocation12], 0
    %22 = vsyncpa [#allocation4], 0
    %s23 = scalar_lea.sflag [#allocation4], 1
    %24 = vsyncpa %s23, 0
    loop: start=0, step=1, limit=4
    $region2: #{tpu_custom_call.1} parent=1 // loop_pre_header
      _
    $region3: #{tpu_custom_call.1} parent=1 // loop_header
      %s26 = sphi 0, %s30
      %p27 = scmp.ge.s32.totalorder %s26, 4
      %s33 = sphi 0, %s45
      %s34 = sphi 0, %s41
      %s35 = sphi 0, %s33
      %s36 = sphi 0, %s34
      %s37 = sphi 0, %s35
      %s38 = sphi 0, %s36
      %s50 = sphi 0, %s52
      %s53 = sphi 0, %s50
      %s54 = sphi 0, %s53
      %s70 = sphi 0, %s54
      %s86 = sphi 0, %s88
      %s89 = sphi 0, %s86
      %s90 = sphi 0, %s89
      %s106 = sphi 0, %s90
      %s122 = sphi 0, %s124
      %s125 = sphi 0, %s122
      %s126 = sphi 0, %s125
      %s142 = sphi 0, %s126
      %s146 = sphi 0, %s146
      %s148 = sphi 0, %s146
      %s149 = sphi 0, %s148
      %s163 = sphi 0, %s149
      %s167 = sphi 0, %s167
      %s169 = sphi 0, %s167
      %s170 = sphi 0, %s169
      %s184 = sphi 0, %s170
      %s188 = sphi 0, %s188
      %s190 = sphi 0, %s188
      %s191 = sphi 0, %s190
      %s205 = sphi 0, %s191
      %s209 = sphi 0, %s209
      %s211 = sphi 0, %s209
      %s212 = sphi 0, %s211
      %s226 = sphi 0, %s212
      %s230 = sphi 0, %s230
      %s232 = sphi 0, %s230
      %s233 = sphi 0, %s232
      %s247 = sphi 0, %s233
      %s251 = sphi 0, %s251
      %s253 = sphi 0, %s251
      %s254 = sphi 0, %s253
      %s268 = sphi 0, %s254
      %s276 = sphi 0, %s278
      %s279 = sphi 0, %s276
      %s280 = sphi 0, %s279
      %s296 = sphi 0, %s280
    $region4: #{tpu_custom_call.1} parent=1 // loop_header_branch
      %29 = sbr.rel (%p27) target = $region8
    $region5: #{tpu_custom_call.1} parent=1 // loop_body
      %s31 = ssub.s32 %s26, 1
      %s32 = ssub.s32 %s26, 2
      %s39 = sadd.s32 1, %s34
      %p40 = scmp.ge.s32.totalorder %s39, 1
      %s41 = scalar_select %p40, 0, %s39
      %s42 = sadd.s32 1, %s33
      %s43 = scalar_select %p40, %s42, %s33
      %p44 = scmp.ge.s32.totalorder %s43, 2
      %s45 = scalar_select %p44, 0, %s43
      %s46 = ssub.s32 %s33, %s45
      %s47 = ssub.s32 %s34, %s41
      %s48 = sor.u32 %s46, %s47
      %p49 = scmp.eq.s32.totalorder %s48, 0
      %s51 = sadd.s32 %s50, 1
      %s52 = scalar_select %p49, %s50, %s51
      %p55 = pneg %p49
      %p56 = scmp.eq.s32.totalorder %s26, 1
      %p57 = por %p55, %p56
      %p58 = scmp.ne.s32.totalorder %s50, %s53
      %p59 = scmp.eq.s32.totalorder %s26, 0
      %p60 = por %p58, %p59
      %p61 = scmp.ne.s32.totalorder %s50, %s53
      %p62 = scmp.eq.s32.totalorder %s31, 1
      %p63 = por %p61, %p62
      %p64 = scmp.ne.s32.totalorder %s53, %s54
      %p65 = scmp.eq.s32.totalorder %s31, 0
      %p66 = por %p64, %p65
      %p67 = scmp.ne.s32.totalorder %s53, %s54
      %p68 = scmp.eq.s32.totalorder %s32, 1
      %p69 = por %p67, %p68
      %p71 = scmp.ne.s32.totalorder %s54, %s70
      %p72 = scmp.eq.s32.totalorder %s32, 0
      %p73 = por %p71, %p72
      %s74 = smul.u32 %s34, 16
      %s75 = ssub.s32 %s74, 1
      %p76 = scmp.gt.s32.totalorder %s75, 0
      %s77 = scalar_select %p76, %s75, 0
      %s78 = smul.u32 %s41, 16
      %s79 = ssub.s32 %s78, 1
      %p80 = scmp.gt.s32.totalorder %s79, 0
      %s81 = scalar_select %p80, %s79, 0
      %s82 = ssub.s32 %s33, %s45
      %s83 = ssub.s32 %s77, %s81
      %s84 = sor.u32 %s82, %s83
      %p85 = scmp.eq.s32.totalorder %s84, 0
      %s87 = sadd.s32 %s86, 1
      %s88 = scalar_select %p85, %s86, %s87
      %p91 = pneg %p85
      %p92 = scmp.eq.s32.totalorder %s26, 1
      %p93 = por %p91, %p92
      %p94 = scmp.ne.s32.totalorder %s86, %s89
      %p95 = scmp.eq.s32.totalorder %s26, 0
      %p96 = por %p94, %p95
      %p97 = scmp.ne.s32.totalorder %s86, %s89
      %p98 = scmp.eq.s32.totalorder %s31, 1
      %p99 = por %p97, %p98
      %p100 = scmp.ne.s32.totalorder %s89, %s90
      %p101 = scmp.eq.s32.totalorder %s31, 0
      %p102 = por %p100, %p101
      %p103 = scmp.ne.s32.totalorder %s89, %s90
      %p104 = scmp.eq.s32.totalorder %s32, 1
      %p105 = por %p103, %p104
      %p107 = scmp.ne.s32.totalorder %s90, %s106
      %p108 = scmp.eq.s32.totalorder %s32, 0
      %p109 = por %p107, %p108
      %s110 = sadd.s32 %s34, 1
      %s111 = smul.u32 %s110, 16
      %p112 = scmp.lt.s32.totalorder %s111, 15
      %s113 = scalar_select %p112, %s111, 15
      %s114 = sadd.s32 %s41, 1
      %s115 = smul.u32 %s114, 16
      %p116 = scmp.lt.s32.totalorder %s115, 15
      %s117 = scalar_select %p116, %s115, 15
      %s118 = ssub.s32 %s33, %s45
      %s119 = ssub.s32 %s113, %s117
      %s120 = sor.u32 %s118, %s119
      %p121 = scmp.eq.s32.totalorder %s120, 0
      %s123 = sadd.s32 %s122, 1
      %s124 = scalar_select %p121, %s122, %s123
      %p127 = pneg %p121
      %p128 = scmp.eq.s32.totalorder %s26, 1
      %p129 = por %p127, %p128
      %p130 = scmp.ne.s32.totalorder %s122, %s125
      %p131 = scmp.eq.s32.totalorder %s26, 0
      %p132 = por %p130, %p131
      %p133 = scmp.ne.s32.totalorder %s122, %s125
      %p134 = scmp.eq.s32.totalorder %s31, 1
      %p135 = por %p133, %p134
      %p136 = scmp.ne.s32.totalorder %s125, %s126
      %p137 = scmp.eq.s32.totalorder %s31, 0
      %p138 = por %p136, %p137
      %p139 = scmp.ne.s32.totalorder %s125, %s126
      %p140 = scmp.eq.s32.totalorder %s32, 1
      %p141 = por %p139, %p140
      %p143 = scmp.ne.s32.totalorder %s126, %s142
      %p144 = scmp.eq.s32.totalorder %s32, 0
      %p145 = por %p143, %p144
      %s147 = sadd.s32 %s146, 1
      %p150 = scmp.eq.s32.totalorder %s26, 1
      %p151 = scmp.ne.s32.totalorder %s146, %s148
      %p152 = scmp.eq.s32.totalorder %s26, 0
      %p153 = por %p151, %p152
      %p154 = scmp.ne.s32.totalorder %s146, %s148
      %p155 = scmp.eq.s32.totalorder %s31, 1
      %p156 = por %p154, %p155
      %p157 = scmp.ne.s32.totalorder %s148, %s149
      %p158 = scmp.eq.s32.totalorder %s31, 0
      %p159 = por %p157, %p158
      %p160 = scmp.ne.s32.totalorder %s148, %s149
      %p161 = scmp.eq.s32.totalorder %s32, 1
      %p162 = por %p160, %p161
      %p164 = scmp.ne.s32.totalorder %s149, %s163
      %p165 = scmp.eq.s32.totalorder %s32, 0
      %p166 = por %p164, %p165
      %s168 = sadd.s32 %s167, 1
      %p171 = scmp.eq.s32.totalorder %s26, 1
      %p172 = scmp.ne.s32.totalorder %s167, %s169
      %p173 = scmp.eq.s32.totalorder %s26, 0
      %p174 = por %p172, %p173
      %p175 = scmp.ne.s32.totalorder %s167, %s169
      %p176 = scmp.eq.s32.totalorder %s31, 1
      %p177 = por %p175, %p176
      %p178 = scmp.ne.s32.totalorder %s169, %s170
      %p179 = scmp.eq.s32.totalorder %s31, 0
      %p180 = por %p178, %p179
      %p181 = scmp.ne.s32.totalorder %s169, %s170
      %p182 = scmp.eq.s32.totalorder %s32, 1
      %p183 = por %p181, %p182
      %p185 = scmp.ne.s32.totalorder %s170, %s184
      %p186 = scmp.eq.s32.totalorder %s32, 0
      %p187 = por %p185, %p186
      %s189 = sadd.s32 %s188, 1
      %p192 = scmp.eq.s32.totalorder %s26, 1
      %p193 = scmp.ne.s32.totalorder %s188, %s190
      %p194 = scmp.eq.s32.totalorder %s26, 0
      %p195 = por %p193, %p194
      %p196 = scmp.ne.s32.totalorder %s188, %s190
      %p197 = scmp.eq.s32.totalorder %s31, 1
      %p198 = por %p196, %p197
      %p199 = scmp.ne.s32.totalorder %s190, %s191
      %p200 = scmp.eq.s32.totalorder %s31, 0
      %p201 = por %p199, %p200
      %p202 = scmp.ne.s32.totalorder %s190, %s191
      %p203 = scmp.eq.s32.totalorder %s32, 1
      %p204 = por %p202, %p203
      %p206 = scmp.ne.s32.totalorder %s191, %s205
      %p207 = scmp.eq.s32.totalorder %s32, 0
      %p208 = por %p206, %p207
      %s210 = sadd.s32 %s209, 1
      %p213 = scmp.eq.s32.totalorder %s26, 1
      %p214 = scmp.ne.s32.totalorder %s209, %s211
      %p215 = scmp.eq.s32.totalorder %s26, 0
      %p216 = por %p214, %p215
      %p217 = scmp.ne.s32.totalorder %s209, %s211
      %p218 = scmp.eq.s32.totalorder %s31, 1
      %p219 = por %p217, %p218
      %p220 = scmp.ne.s32.totalorder %s211, %s212
      %p221 = scmp.eq.s32.totalorder %s31, 0
      %p222 = por %p220, %p221
      %p223 = scmp.ne.s32.totalorder %s211, %s212
      %p224 = scmp.eq.s32.totalorder %s32, 1
      %p225 = por %p223, %p224
      %p227 = scmp.ne.s32.totalorder %s212, %s226
      %p228 = scmp.eq.s32.totalorder %s32, 0
      %p229 = por %p227, %p228
      %s231 = sadd.s32 %s230, 1
      %p234 = scmp.eq.s32.totalorder %s26, 1
      %p235 = scmp.ne.s32.totalorder %s230, %s232
      %p236 = scmp.eq.s32.totalorder %s26, 0
      %p237 = por %p235, %p236
      %p238 = scmp.ne.s32.totalorder %s230, %s232
      %p239 = scmp.eq.s32.totalorder %s31, 1
      %p240 = por %p238, %p239
      %p241 = scmp.ne.s32.totalorder %s232, %s233
      %p242 = scmp.eq.s32.totalorder %s31, 0
      %p243 = por %p241, %p242
      %p244 = scmp.ne.s32.totalorder %s232, %s233
      %p245 = scmp.eq.s32.totalorder %s32, 1
      %p246 = por %p244, %p245
      %p248 = scmp.ne.s32.totalorder %s233, %s247
      %p249 = scmp.eq.s32.totalorder %s32, 0
      %p250 = por %p248, %p249
      %s252 = sadd.s32 %s251, 1
      %p255 = scmp.eq.s32.totalorder %s26, 1
      %p256 = scmp.ne.s32.totalorder %s251, %s253
      %p257 = scmp.eq.s32.totalorder %s26, 0
      %p258 = por %p256, %p257
      %p259 = scmp.ne.s32.totalorder %s251, %s253
      %p260 = scmp.eq.s32.totalorder %s31, 1
      %p261 = por %p259, %p260
      %p262 = scmp.ne.s32.totalorder %s253, %s254
      %p263 = scmp.eq.s32.totalorder %s31, 0
      %p264 = por %p262, %p263
      %p265 = scmp.ne.s32.totalorder %s253, %s254
      %p266 = scmp.eq.s32.totalorder %s32, 1
      %p267 = por %p265, %p266
      %p269 = scmp.ne.s32.totalorder %s254, %s268
      %p270 = scmp.eq.s32.totalorder %s32, 0
      %p271 = por %p269, %p270
      %s272 = ssub.s32 %s33, %s45
      %s273 = ssub.s32 %s34, %s41
      %s274 = sor.u32 %s272, %s273
      %p275 = scmp.eq.s32.totalorder %s274, 0
      %s277 = sadd.s32 %s276, 1
      %s278 = scalar_select %p275, %s276, %s277
      %p281 = pneg %p275
      %p282 = scmp.eq.s32.totalorder %s26, 1
      %p283 = por %p281, %p282
      %p284 = scmp.ne.s32.totalorder %s276, %s279
      %p285 = scmp.eq.s32.totalorder %s26, 0
      %p286 = por %p284, %p285
      %p287 = scmp.ne.s32.totalorder %s276, %s279
      %p288 = scmp.eq.s32.totalorder %s31, 1
      %p289 = por %p287, %p288
      %p290 = scmp.ne.s32.totalorder %s279, %s280
      %p291 = scmp.eq.s32.totalorder %s31, 0
      %p292 = por %p290, %p291
      %p293 = scmp.ne.s32.totalorder %s279, %s280
      %p294 = scmp.eq.s32.totalorder %s32, 1
      %p295 = por %p293, %p294
      %p297 = scmp.ne.s32.totalorder %s280, %s296
      %p298 = scmp.eq.s32.totalorder %s32, 0
      %p299 = por %p297, %p298
      %p300 = scmp.le.s32.totalorder 1, %s26
      %p301 = scmp.lt.s32.totalorder %s26, 3
      %p302 = pnand %p300, %p301
      %p303 = pneg %p302
      // Predicated region
      $region9: #{tpu_custom_call.1} parent=5 // pred_check
        _
      $region10: #{tpu_custom_call.1} parent=5 // pred_check_branch
        %305 = sbr.rel (%p302) target = $region12
      $region11: #{tpu_custom_call.1} parent=5 // pred_region
        %s306 = ssub.s32 %s26, 1
        // Predicated region
        $region13: #{tpu_custom_call.1} parent=11 // pred_check
          %p307 = pneg %p159
        $region14: #{tpu_custom_call.1} parent=11 // pred_check_branch
          %309 = sbr.rel (%p307) target = $region16
        $region15: #{tpu_custom_call.1} parent=11 // pred_region
          %311 = vsyncadd [#allocation9], 0
          %s312 = sshll.u32 %s3, 4
          %s313 = int_to_ptr.hbm [resolvable:$true] %s312
          %s314 = sshll.u32 [#allocation8], 4
          %s315 = int_to_ptr.vmem [resolvable:$true] %s314
          %320 = dma.hbm_to_vmem [thread:$0]  %s313, 1024, %s315, [#allocation9], 64, 64, 4
        $region16: #{tpu_custom_call.1} parent=11 // pred_fallthru
          _
        // Predicated region
        $region17: #{tpu_custom_call.1} parent=11 // pred_check
          %p321 = pneg %p180
        $region18: #{tpu_custom_call.1} parent=11 // pred_check_branch
          %323 = sbr.rel (%p321) target = $region20
        $region19: #{tpu_custom_call.1} parent=11 // pred_region
          _
        $region20: #{tpu_custom_call.1} parent=11 // pred_fallthru
          _
        // Predicated region
        $region21: #{tpu_custom_call.1} parent=11 // pred_check
          %p324 = pneg %p201
        $region22: #{tpu_custom_call.1} parent=11 // pred_check_branch
          %326 = sbr.rel (%p324) target = $region24
        $region23: #{tpu_custom_call.1} parent=11 // pred_region
          %328 = vsyncadd [#allocation9], 0
          %s329 = sshll.u32 %s5, 4
          %s330 = int_to_ptr.hbm [resolvable:$true] %s329
          %s331 = sshll.u32 [#allocation10], 4
          %s332 = int_to_ptr.vmem [resolvable:$true] %s331
          %337 = dma.hbm_to_vmem [thread:$0]  %s330, 9216, %s332, [#allocation9], 64, 64, 4
        $region24: #{tpu_custom_call.1} parent=11 // pred_fallthru
          _
        // Predicated region
        $region25: #{tpu_custom_call.1} parent=11 // pred_check
          %p338 = pneg %p222
        $region26: #{tpu_custom_call.1} parent=11 // pred_check_branch
          %340 = sbr.rel (%p338) target = $region28
        $region27: #{tpu_custom_call.1} parent=11 // pred_region
          _
        $region28: #{tpu_custom_call.1} parent=11 // pred_fallthru
          _
        // Predicated region
        $region29: #{tpu_custom_call.1} parent=11 // pred_check
          %p341 = pneg %p243
        $region30: #{tpu_custom_call.1} parent=11 // pred_check_branch
          %343 = sbr.rel (%p341) target = $region32
        $region31: #{tpu_custom_call.1} parent=11 // pred_region
          %345 = vsyncadd [#allocation12], 0
          %s346 = sshll.u32 %s7, 4
          %s347 = int_to_ptr.hbm [resolvable:$true] %s346
          %s348 = sshll.u32 [#allocation11], 4
          %s349 = int_to_ptr.vmem [resolvable:$true] %s348
          %354 = dma.hbm_to_vmem [thread:$0]  %s347, 1024, %s349, [#allocation12], 64, 64, 4
        $region32: #{tpu_custom_call.1} parent=11 // pred_fallthru
          _
        // Predicated region
        $region33: #{tpu_custom_call.1} parent=11 // pred_check
          %p355 = pneg %p264
        $region34: #{tpu_custom_call.1} parent=11 // pred_check_branch
          %357 = sbr.rel (%p355) target = $region36
        $region35: #{tpu_custom_call.1} parent=11 // pred_region
          _
        $region36: #{tpu_custom_call.1} parent=11 // pred_fallthru
          _
      $region12: #{tpu_custom_call.1} parent=5 // pred_fallthru
        _
      %p358 = scmp.lt.s32.totalorder %s26, 2
      // Predicated region
      $region37: #{tpu_custom_call.1} parent=5 // pred_check
        %p359 = pneg %p358
      $region38: #{tpu_custom_call.1} parent=5 // pred_check_branch
        %361 = sbr.rel (%p359) target = $region40
      $region39: #{tpu_custom_call.1} parent=5 // pred_region
        // Predicated region
        $region41: #{tpu_custom_call.1} parent=39 // pred_check
          %p362 = pneg %p60
        $region42: #{tpu_custom_call.1} parent=39 // pred_check_branch
          %364 = sbr.rel (%p362) target = $region44
        $region43: #{tpu_custom_call.1} parent=39 // pred_region
          %s365 = sand.u32 %s50, 1
          %s366 = scalar_lea.sflag [#allocation3], %s365
          %s367 = sand.u32 %s50, 1
          %s368 = smul.addr %s367, 128
          %s369 = scalar_lea.vmem [#allocation2], %s368
          %s370 = smul.u32 16, %s34
          %372 = vsyncadd %s366, 0
          %s373 = smul.addr %s370, 2
          %s374 = smul.addr %s33, 32
          %s375 = sadd.s32 %s373, %s374
          %s376 = smul.addr %s375, 4
          %s377 = scalar_lea.hbm %s0, %s376
          %s378 = sshll.u32 %s377, 4
          %s379 = int_to_ptr.hbm [resolvable:$true] %s378
          %s380 = sshll.u32 %s369, 4
          %s381 = int_to_ptr.vmem [resolvable:$true] %s380
          %386 = dma.hbm_to_vmem [thread:$0]  %s379, 2048, %s381, %s366, 64, 64, 4
        $region44: #{tpu_custom_call.1} parent=39 // pred_fallthru
          _
        // Predicated region
        $region45: #{tpu_custom_call.1} parent=39 // pred_check
          %p387 = pneg %p96
        $region46: #{tpu_custom_call.1} parent=39 // pred_check_branch
          %389 = sbr.rel (%p387) target = $region48
        $region47: #{tpu_custom_call.1} parent=39 // pred_region
          %s390 = sand.u32 %s26, 1
          %s391 = scalar_lea.sflag [#allocation6], %s390
          %s392 = sand.u32 %s86, 1
          %s393 = smul.addr %s392, 8
          %s394 = scalar_lea.vmem [#allocation5], %s393
          %s395 = smul.u32 %s34, 16
          %s396 = ssub.s32 %s395, 1
          %p397 = scmp.gt.s32.totalorder %s396, 0
          %s398 = scalar_select %p397, %s396, 0
          %400 = vsyncadd %s391, 0
          %s401 = smul.addr %s398, 2
          %s402 = smul.addr %s33, 32
          %s403 = sadd.s32 %s401, %s402
          %s404 = smul.addr %s403, 4
          %s405 = scalar_lea.hbm %s1, %s404
          %s406 = sshll.u32 %s405, 4
          %s407 = int_to_ptr.hbm [resolvable:$true] %s406
          %s408 = sshll.u32 %s394, 4
          %s409 = int_to_ptr.vmem [resolvable:$true] %s408
          %414 = dma.hbm_to_vmem [thread:$0]  %s407, 128, %s409, %s391, 64, 64, 4
        $region48: #{tpu_custom_call.1} parent=39 // pred_fallthru
          _
        // Predicated region
        $region49: #{tpu_custom_call.1} parent=39 // pred_check
          %p415 = pneg %p132
        $region50: #{tpu_custom_call.1} parent=39 // pred_check_branch
          %417 = sbr.rel (%p415) target = $region52
        $region51: #{tpu_custom_call.1} parent=39 // pred_region
          %s418 = sand.u32 %s26, 1
          %s419 = scalar_lea.sflag [#allocation6], %s418
          %s420 = sand.u32 %s122, 1
          %s421 = smul.addr %s420, 8
          %s422 = scalar_lea.vmem [#allocation7], %s421
          %s423 = sadd.s32 %s34, 1
          %s424 = smul.u32 %s423, 16
          %p425 = scmp.lt.s32.totalorder %s424, 15
          %s426 = scalar_select %p425, %s424, 15
          %428 = vsyncadd %s419, 0
          %s429 = smul.addr %s426, 2
          %s430 = smul.addr %s33, 32
          %s431 = sadd.s32 %s429, %s430
          %s432 = smul.addr %s431, 4
          %s433 = scalar_lea.hbm %s2, %s432
          %s434 = sshll.u32 %s433, 4
          %s435 = int_to_ptr.hbm [resolvable:$true] %s434
          %s436 = sshll.u32 %s422, 4
          %s437 = int_to_ptr.vmem [resolvable:$true] %s436
          %442 = dma.hbm_to_vmem [thread:$0]  %s435, 128, %s437, %s419, 64, 64, 4
        $region52: #{tpu_custom_call.1} parent=39 // pred_fallthru
          _
      $region40: #{tpu_custom_call.1} parent=5 // pred_fallthru
        _
      %p443 = scmp.le.s32.totalorder 1, %s26
      %p444 = scmp.lt.s32.totalorder %s26, 3
      %p445 = pnand %p443, %p444
      %p446 = pneg %p445
      // Predicated region
      $region53: #{tpu_custom_call.1} parent=5 // pred_check
        _
      $region54: #{tpu_custom_call.1} parent=5 // pred_check_branch
        %448 = sbr.rel (%p445) target = $region56
      $region55: #{tpu_custom_call.1} parent=5 // pred_region
        %s449 = ssub.s32 %s26, 1
        %s450 = sand.u32 %s53, 1
        %s451 = scalar_lea.sflag [#allocation3], %s450
        %s452 = sand.u32 %s53, 1
        %s453 = smul.addr %s452, 128
        %s454 = scalar_lea.vmem [#allocation2], %s453
        // Predicated region
        $region57: #{tpu_custom_call.1} parent=55 // pred_check
          %p455 = pneg %p66
        $region58: #{tpu_custom_call.1} parent=55 // pred_check_branch
          %457 = sbr.rel (%p455) target = $region60
        $region59: #{tpu_custom_call.1} parent=55 // pred_region
          %459 = dma.done %s451, 2048
        $region60: #{tpu_custom_call.1} parent=55 // pred_fallthru
          _
        %s460 = sand.u32 %s31, 1
        %s461 = scalar_lea.sflag [#allocation6], %s460
        %s462 = sand.u32 %s89, 1
        %s463 = smul.addr %s462, 8
        %s464 = scalar_lea.vmem [#allocation5], %s463
        // Predicated region
        $region61: #{tpu_custom_call.1} parent=55 // pred_check
          %p465 = pneg %p102
        $region62: #{tpu_custom_call.1} parent=55 // pred_check_branch
          %467 = sbr.rel (%p465) target = $region64
        $region63: #{tpu_custom_call.1} parent=55 // pred_region
          %469 = dma.done %s461, 128
        $region64: #{tpu_custom_call.1} parent=55 // pred_fallthru
          _
        %s470 = sand.u32 %s31, 1
        %s471 = scalar_lea.sflag [#allocation6], %s470
        %s472 = sand.u32 %s125, 1
        %s473 = smul.addr %s472, 8
        %s474 = scalar_lea.vmem [#allocation7], %s473
        // Predicated region
        $region65: #{tpu_custom_call.1} parent=55 // pred_check
          %p475 = pneg %p138
        $region66: #{tpu_custom_call.1} parent=55 // pred_check_branch
          %477 = sbr.rel (%p475) target = $region68
        $region67: #{tpu_custom_call.1} parent=55 // pred_region
          %479 = dma.done %s471, 128
        $region68: #{tpu_custom_call.1} parent=55 // pred_fallthru
          _
        // Predicated region
        $region69: #{tpu_custom_call.1} parent=55 // pred_check
          %p480 = pneg %p159
        $region70: #{tpu_custom_call.1} parent=55 // pred_check_branch
          %482 = sbr.rel (%p480) target = $region72
        $region71: #{tpu_custom_call.1} parent=55 // pred_region
          %484 = dma.done [#allocation9], 1024
        $region72: #{tpu_custom_call.1} parent=55 // pred_fallthru
          _
        // Predicated region
        $region73: #{tpu_custom_call.1} parent=55 // pred_check
          %p485 = pneg %p201
        $region74: #{tpu_custom_call.1} parent=55 // pred_check_branch
          %487 = sbr.rel (%p485) target = $region76
        $region75: #{tpu_custom_call.1} parent=55 // pred_region
          %489 = dma.done [#allocation9], 9216
        $region76: #{tpu_custom_call.1} parent=55 // pred_fallthru
          _
        // Predicated region
        $region77: #{tpu_custom_call.1} parent=55 // pred_check
          %p490 = pneg %p243
        $region78: #{tpu_custom_call.1} parent=55 // pred_check_branch
          %492 = sbr.rel (%p490) target = $region80
        $region79: #{tpu_custom_call.1} parent=55 // pred_region
          %494 = dma.done [#allocation12], 1024
        $region80: #{tpu_custom_call.1} parent=55 // pred_fallthru
          _
        %s495 = sand.u32 %s53, 1
        %s496 = scalar_lea.sflag [#allocation3], %s495
        %s497 = sand.u32 %s53, 1
        %s498 = smul.addr %s497, 128
        %s499 = scalar_lea.vmem [#allocation2], %s498
        %p500 = pneg %p66
        %p501 = pneg %p63
        %s502 = sand.u32 %s31, 1
        %s503 = scalar_lea.sflag [#allocation6], %s502
        %s504 = sand.u32 %s89, 1
        %s505 = smul.addr %s504, 8
        %s506 = scalar_lea.vmem [#allocation5], %s505
        %p507 = pneg %p102
        %p508 = pneg %p99
        %s509 = sand.u32 %s31, 1
        %s510 = scalar_lea.sflag [#allocation6], %s509
        %s511 = sand.u32 %s125, 1
        %s512 = smul.addr %s511, 8
        %s513 = scalar_lea.vmem [#allocation7], %s512
        %p514 = pneg %p138
        %p515 = pneg %p135
        %p516 = pneg %p159
        %p517 = pneg %p156
        %p518 = pneg %p180
        %p519 = pneg %p177
        %p520 = pneg %p201
        %p521 = pneg %p198
        %p522 = pneg %p222
        %p523 = pneg %p219
        %p524 = pneg %p243
        %p525 = pneg %p240
        %p526 = pneg %p264
        %p527 = pneg %p261
        %p528 = pneg %p292
        %p529 = pneg %p289
        %s530 = sand.u32 %s279, 1
        %s531 = scalar_lea.sflag [#allocation4], %s530
        %s532 = sand.u32 %s279, 1
        %s533 = smul.addr %s532, 128
        %s534 = scalar_lea.vmem [#allocation13], %s533
        %s535 = smul.u32 16, %s36
        %s536 = smul.u32 %s36, 16
        %s537 = ssub.s32 %s536, 1
        %p538 = scmp.gt.s32.totalorder %s537, 0
        %s539 = scalar_select %p538, %s537, 0
        %s540 = sadd.s32 %s36, 1
        %s541 = smul.u32 %s540, 16
        %p542 = scmp.lt.s32.totalorder %s541, 15
        %s543 = scalar_select %p542, %s541, 15
        %s544 = smul.u32 16, %s36
        %v545 = vld [vmem:[%s454] sm:$0xf]
        %v546 = vld [vmem:[%s454 + $0x4] sm:$0xf]
        %v547 = vld [vmem:[%s454 + $0x8] sm:$0xf]
        %v548 = vld [vmem:[%s454 + $0xc] sm:$0xf]
        %v549 = vld [vmem:[%s454 + $0x10] sm:$0xf]
        %v550 = vld [vmem:[%s454 + $0x14] sm:$0xf]
        %v551 = vld [vmem:[%s454 + $0x18] sm:$0xf]
        %v552 = vld [vmem:[%s454 + $0x1c] sm:$0xf]
        %v553 = vld [vmem:[%s454 + $0x20] sm:$0xf]
        %v554 = vld [vmem:[%s454 + $0x24] sm:$0xf]
        %v555 = vld [vmem:[%s454 + $0x28] sm:$0xf]
        %v556 = vld [vmem:[%s454 + $0x2c] sm:$0xf]
        %v557 = vld [vmem:[%s454 + $0x30] sm:$0xf]
        %v558 = vld [vmem:[%s454 + $0x34] sm:$0xf]
        %v559 = vld [vmem:[%s454 + $0x38] sm:$0xf]
        %v560 = vld [vmem:[%s454 + $0x3c] sm:$0xf]
        %v561 = vld [vmem:[%s454 + $0x40] sm:$0xf]
        %v562 = vld [vmem:[%s454 + $0x44] sm:$0xf]
        %v563 = vld [vmem:[%s454 + $0x48] sm:$0xf]
        %v564 = vld [vmem:[%s454 + $0x4c] sm:$0xf]
        %v565 = vld [vmem:[%s454 + $0x50] sm:$0xf]
        %v566 = vld [vmem:[%s454 + $0x54] sm:$0xf]
        %v567 = vld [vmem:[%s454 + $0x58] sm:$0xf]
        %v568 = vld [vmem:[%s454 + $0x5c] sm:$0xf]
        %v569 = vld [vmem:[%s454 + $0x60] sm:$0xf]
        %v570 = vld [vmem:[%s454 + $0x64] sm:$0xf]
        %v571 = vld [vmem:[%s454 + $0x68] sm:$0xf]
        %v572 = vld [vmem:[%s454 + $0x6c] sm:$0xf]
        %v573 = vld [vmem:[%s454 + $0x70] sm:$0xf]
        %v574 = vld [vmem:[%s454 + $0x74] sm:$0xf]
        %v575 = vld [vmem:[%s454 + $0x78] sm:$0xf]
        %v576 = vld [vmem:[%s454 + $0x7c] sm:$0xf]
        %v577 = vld [vmem:[%s4] sm:$0x1]
        %v578 = vld [vmem:[#allocation8] sm:$0xf]
        %v579 = vld [vmem:[#allocation8 + $0x4] sm:$0xf]
        %v580 = vld [vmem:[#allocation8 + $0x8] sm:$0xf]
        %v581 = vld [vmem:[#allocation8 + $0xc] sm:$0xf]
        %v582 = vld [vmem:[#allocation8 + $0x10] sm:$0xf]
        %v583 = vld [vmem:[#allocation8 + $0x14] sm:$0xf]
        %v584 = vld [vmem:[#allocation8 + $0x18] sm:$0xf]
        %v585 = vld [vmem:[#allocation8 + $0x1c] sm:$0xf]
        %v586 = vld [vmem:[#allocation8 + $0x20] sm:$0xf]
        %v587 = vld [vmem:[#allocation8 + $0x24] sm:$0xf]
        %v588 = vld [vmem:[#allocation8 + $0x28] sm:$0xf]
        %v589 = vld [vmem:[#allocation8 + $0x2c] sm:$0xf]
        %v590 = vld [vmem:[#allocation8 + $0x30] sm:$0xf]
        %v591 = vld [vmem:[#allocation8 + $0x34] sm:$0xf]
        %v592 = vld [vmem:[#allocation8 + $0x38] sm:$0xf]
        %v593 = vld [vmem:[#allocation8 + $0x3c] sm:$0xf]
        %v595 = vperm.slane %v577, 0
        %v629 = vunpack.c.l.b16 %v545
        %v630 = vunpack.c.l.b16 %v546
        %v631 = vunpack.c.l.b16 %v547
        %v632 = vunpack.c.l.b16 %v548
        %v633 = vunpack.c.l.b16 %v549
        %v634 = vunpack.c.l.b16 %v550
        %v635 = vunpack.c.l.b16 %v551
        %v636 = vunpack.c.l.b16 %v552
        %v637 = vunpack.c.l.b16 %v553
        %v638 = vunpack.c.l.b16 %v554
        %v639 = vunpack.c.l.b16 %v555
        %v640 = vunpack.c.l.b16 %v556
        %v641 = vunpack.c.l.b16 %v557
        %v642 = vunpack.c.l.b16 %v558
        %v643 = vunpack.c.l.b16 %v559
        %v644 = vunpack.c.l.b16 %v560
        %v645 = vunpack.c.l.b16 %v561
        %v646 = vunpack.c.l.b16 %v562
        %v647 = vunpack.c.l.b16 %v563
        %v648 = vunpack.c.l.b16 %v564
        %v649 = vunpack.c.l.b16 %v565
        %v650 = vunpack.c.l.b16 %v566
        %v651 = vunpack.c.l.b16 %v567
        %v652 = vunpack.c.l.b16 %v568
        %v653 = vunpack.c.l.b16 %v569
        %v654 = vunpack.c.l.b16 %v570
        %v655 = vunpack.c.l.b16 %v571
        %v656 = vunpack.c.l.b16 %v572
        %v657 = vunpack.c.l.b16 %v573
        %v658 = vunpack.c.l.b16 %v574
        %v659 = vunpack.c.l.b16 %v575
        %v660 = vunpack.c.l.b16 %v576
        %v661 = vpack.c.b16 %v630, %v629
        %v662 = vpack.c.b16 %v632, %v631
        %v663 = vpack.c.b16 %v634, %v633
        %v664 = vpack.c.b16 %v636, %v635
        %v665 = vpack.c.b16 %v638, %v637
        %v666 = vpack.c.b16 %v640, %v639
        %v667 = vpack.c.b16 %v642, %v641
        %v668 = vpack.c.b16 %v644, %v643
        %v669 = vpack.c.b16 %v646, %v645
        %v670 = vpack.c.b16 %v648, %v647
        %v671 = vpack.c.b16 %v650, %v649
        %v672 = vpack.c.b16 %v652, %v651
        %v673 = vpack.c.b16 %v654, %v653
        %v674 = vpack.c.b16 %v656, %v655
        %v675 = vpack.c.b16 %v658, %v657
        %v676 = vpack.c.b16 %v660, %v659
        %v709 = vunpack.c.l.b16 %v578
        %v710 = vunpack.c.l.b16 %v579
        %v711 = vunpack.c.l.b16 %v580
        %v712 = vunpack.c.l.b16 %v581
        %v713 = vunpack.c.l.b16 %v582
        %v714 = vunpack.c.l.b16 %v583
        %v715 = vunpack.c.l.b16 %v584
        %v716 = vunpack.c.l.b16 %v585
        %v717 = vunpack.c.l.b16 %v586
        %v718 = vunpack.c.l.b16 %v587
        %v719 = vunpack.c.l.b16 %v588
        %v720 = vunpack.c.l.b16 %v589
        %v721 = vunpack.c.l.b16 %v590
        %v722 = vunpack.c.l.b16 %v591
        %v723 = vunpack.c.l.b16 %v592
        %v724 = vunpack.c.l.b16 %v593
        %v725 = vpack.c.b16 %v710, %v709
        %v726 = vpack.c.b16 %v712, %v711
        %v727 = vpack.c.b16 %v714, %v713
        %v728 = vpack.c.b16 %v716, %v715
        %v729 = vpack.c.b16 %v718, %v717
        %v730 = vpack.c.b16 %v720, %v719
        %v731 = vpack.c.b16 %v722, %v721
        %v732 = vpack.c.b16 %v724, %v723
        %741 = vmatpush.bf16.msra.mxu0 %v732
        %742 = vmatpush.bf16.msra.mxu0 %v731
        %743 = vmatpush.bf16.msra.mxu0 %v730
        %744 = vmatpush.bf16.msra.mxu0 %v729
        %745 = vmatpush.bf16.msra.mxu0 %v728
        %746 = vmatpush.bf16.msra.mxu0 %v727
        %747 = vmatpush.bf16.msra.mxu0 %v726
        %748 = vmatpush.bf16.msra.mxu0 %v725
        %749 = vmatmul.bf16.gmra.mxu0 %v661
        %v750 = vpop.f32.mrf.mxu0
        %v751 = vadd.f32 %v595, %v750
        %v752 = vpop.f32.mrf.mxu0
        %v753 = vadd.f32 %v595, %v752
        %754 = vmatmul.bf16.gmra.mxu0 %v662
        %v755 = vpop.f32.mrf.mxu0
        %v756 = vadd.f32 %v595, %v755
        %v757 = vpop.f32.mrf.mxu0
        %v758 = vadd.f32 %v595, %v757
        %759 = vmatmul.bf16.gmra.mxu0 %v663
        %v760 = vpop.f32.mrf.mxu0
        %v761 = vadd.f32 %v595, %v760
        %v762 = vpop.f32.mrf.mxu0
        %v763 = vadd.f32 %v595, %v762
        %764 = vmatmul.bf16.gmra.mxu0 %v664
        %v765 = vpop.f32.mrf.mxu0
        %v766 = vadd.f32 %v595, %v765
        %v767 = vpop.f32.mrf.mxu0
        %v768 = vadd.f32 %v595, %v767
        %769 = vmatmul.bf16.gmra.mxu0 %v665
        %v770 = vpop.f32.mrf.mxu0
        %v771 = vadd.f32 %v595, %v770
        %v772 = vpop.f32.mrf.mxu0
        %v773 = vadd.f32 %v595, %v772
        %774 = vmatmul.bf16.gmra.mxu0 %v666
        %v775 = vpop.f32.mrf.mxu0
        %v776 = vadd.f32 %v595, %v775
        %v777 = vpop.f32.mrf.mxu0
        %v778 = vadd.f32 %v595, %v777
        %779 = vmatmul.bf16.gmra.mxu0 %v667
        %v780 = vpop.f32.mrf.mxu0
        %v781 = vadd.f32 %v595, %v780
        %v782 = vpop.f32.mrf.mxu0
        %v783 = vadd.f32 %v595, %v782
        %784 = vmatmul.bf16.gmra.mxu0 %v668
        %v785 = vpop.f32.mrf.mxu0
        %v786 = vadd.f32 %v595, %v785
        %v787 = vpop.f32.mrf.mxu0
        %v788 = vadd.f32 %v595, %v787
        %789 = vmatmul.bf16.gmra.mxu0 %v669
        %v790 = vpop.f32.mrf.mxu0
        %v791 = vadd.f32 %v595, %v790
        %v792 = vpop.f32.mrf.mxu0
        %v793 = vadd.f32 %v595, %v792
        %794 = vmatmul.bf16.gmra.mxu0 %v670
        %v795 = vpop.f32.mrf.mxu0
        %v796 = vadd.f32 %v595, %v795
        %v797 = vpop.f32.mrf.mxu0
        %v798 = vadd.f32 %v595, %v797
        %799 = vmatmul.bf16.gmra.mxu0 %v671
        %v800 = vpop.f32.mrf.mxu0
        %v801 = vadd.f32 %v595, %v800
        %v802 = vpop.f32.mrf.mxu0
        %v803 = vadd.f32 %v595, %v802
        %804 = vmatmul.bf16.gmra.mxu0 %v672
        %v805 = vpop.f32.mrf.mxu0
        %v806 = vadd.f32 %v595, %v805
        %v807 = vpop.f32.mrf.mxu0
        %v808 = vadd.f32 %v595, %v807
        %809 = vmatmul.bf16.gmra.mxu0 %v673
        %v810 = vpop.f32.mrf.mxu0
        %v811 = vadd.f32 %v595, %v810
        %v812 = vpop.f32.mrf.mxu0
        %v813 = vadd.f32 %v595, %v812
        %814 = vmatmul.bf16.gmra.mxu0 %v674
        %v815 = vpop.f32.mrf.mxu0
        %v816 = vadd.f32 %v595, %v815
        %v817 = vpop.f32.mrf.mxu0
        %v818 = vadd.f32 %v595, %v817
        %819 = vmatmul.bf16.gmra.mxu0 %v675
        %v820 = vpop.f32.mrf.mxu0
        %v821 = vadd.f32 %v595, %v820
        %v822 = vpop.f32.mrf.mxu0
        %v823 = vadd.f32 %v595, %v822
        %824 = vmatmul.bf16.gmra.mxu0 %v676
        %v825 = vpop.f32.mrf.mxu0
        %v826 = vadd.f32 %v595, %v825
        %v827 = vpop.f32.mrf.mxu0
        %v828 = vadd.f32 %v595, %v827
        %829 = vdwg.mxu0
        %v830 = vmax.f32 %v751, 0.0
        %v831 = vmax.f32 %v753, 0.0
        %v832 = vmax.f32 %v756, 0.0
        %v833 = vmax.f32 %v758, 0.0
        %v834 = vmax.f32 %v761, 0.0
        %v835 = vmax.f32 %v763, 0.0
        %v836 = vmax.f32 %v766, 0.0
        %v837 = vmax.f32 %v768, 0.0
        %v838 = vmax.f32 %v771, 0.0
        %v839 = vmax.f32 %v773, 0.0
        %v840 = vmax.f32 %v776, 0.0
        %v841 = vmax.f32 %v778, 0.0
        %v842 = vmax.f32 %v781, 0.0
        %v843 = vmax.f32 %v783, 0.0
        %v844 = vmax.f32 %v786, 0.0
        %v845 = vmax.f32 %v788, 0.0
        %v846 = vmax.f32 %v791, 0.0
        %v847 = vmax.f32 %v793, 0.0
        %v848 = vmax.f32 %v796, 0.0
        %v849 = vmax.f32 %v798, 0.0
        %v850 = vmax.f32 %v801, 0.0
        %v851 = vmax.f32 %v803, 0.0
        %v852 = vmax.f32 %v806, 0.0
        %v853 = vmax.f32 %v808, 0.0
        %v854 = vmax.f32 %v811, 0.0
        %v855 = vmax.f32 %v813, 0.0
        %v856 = vmax.f32 %v816, 0.0
        %v857 = vmax.f32 %v818, 0.0
        %v858 = vmax.f32 %v821, 0.0
        %v859 = vmax.f32 %v823, 0.0
        %v860 = vmax.f32 %v826, 0.0
        %v861 = vmax.f32 %v828, 0.0
        %v862 = vld [vmem:[%s464] sm:$0xf]
        %v863 = vld [vmem:[%s464 + $0x4] sm:$0xf]
        %v866 = vunpack.c.l.b16 %v862
        %v867 = vunpack.c.l.b16 %v863
        %v868 = vpack.c.b16 %v867, %v866
        %870 = vmatpush.bf16.msra.mxu0 %v732
        %871 = vmatpush.bf16.msra.mxu0 %v731
        %872 = vmatpush.bf16.msra.mxu0 %v730
        %873 = vmatpush.bf16.msra.mxu0 %v729
        %874 = vmatpush.bf16.msra.mxu0 %v728
        %875 = vmatpush.bf16.msra.mxu0 %v727
        %876 = vmatpush.bf16.msra.mxu0 %v726
        %877 = vmatpush.bf16.msra.mxu0 %v725
        %878 = vmatmul.bf16.gmra.mxu0 %v868
        %v879 = vpop.f32.mrf.mxu0
        %v880 = vadd.f32 %v595, %v879
        %v881 = vpop.f32.mrf.mxu0
        %v882 = vadd.f32 %v595, %v881
        %883 = vdwg.mxu0
        %v884 = vmax.f32 %v880, 0.0
        %v885 = vmax.f32 %v882, 0.0
        %v886 = vld [vmem:[%s474] sm:$0xf]
        %v887 = vld [vmem:[%s474 + $0x4] sm:$0xf]
        %v890 = vunpack.c.l.b16 %v886
        %v891 = vunpack.c.l.b16 %v887
        %v892 = vpack.c.b16 %v891, %v890
        %894 = vmatpush.bf16.msra.mxu0 %v732
        %895 = vmatpush.bf16.msra.mxu0 %v731
        %896 = vmatpush.bf16.msra.mxu0 %v730
        %897 = vmatpush.bf16.msra.mxu0 %v729
        %898 = vmatpush.bf16.msra.mxu0 %v728
        %899 = vmatpush.bf16.msra.mxu0 %v727
        %900 = vmatpush.bf16.msra.mxu0 %v726
        %901 = vmatpush.bf16.msra.mxu0 %v725
        %902 = vmatmul.bf16.gmra.mxu0 %v892
        %v903 = vpop.f32.mrf.mxu0
        %v904 = vadd.f32 %v595, %v903
        %v905 = vpop.f32.mrf.mxu0
        %v906 = vadd.f32 %v595, %v905
        %907 = vdwg.mxu0
        %v908 = vmax.f32 %v904, 0.0
        %v909 = vmax.f32 %v906, 0.0
        %p910 = scmp.gt.s32.totalorder %s36, 0
        %s911 = scalar_select %p910, 1, 0
        %s912 = scvt.s32.f32 %s911
        %v913 = vstv %s912
        %v914 = vmul.f32 %v884, %v913
        %v915 = vmul.f32 %v885, %v913
        %p916 = scmp.lt.s32.totalorder %s36, 0
        %s917 = scalar_select %p916, 1, 0
        %s918 = scvt.s32.f32 %s917
        %v919 = vstv %s918
        %v920 = vmul.f32 %v908, %v919
        %v921 = vmul.f32 %v909, %v919
        %v922 = vlaneseq
        %v923 = vshrl.u32 %v922, 7
        %v924 = vadd.s32 %v923, 8
        %vm925 = vcmp.gt.s32.totalorder %v923, 0
        %vm926 = vcmp.gt.s32.totalorder %v924, 0
        %v927 = vrot.slane %v914, 7
        %v928 = vrot.slane %v915, 7
        %v929 = vrot.slane %v830, 7
        %v930 = vrot.slane %v831, 7
        %v931 = vrot.slane %v832, 7
        %v932 = vrot.slane %v833, 7
        %v933 = vrot.slane %v834, 7
        %v934 = vrot.slane %v835, 7
        %v935 = vrot.slane %v836, 7
        %v936 = vrot.slane %v837, 7
        %v937 = vrot.slane %v838, 7
        %v938 = vrot.slane %v839, 7
        %v939 = vrot.slane %v840, 7
        %v940 = vrot.slane %v841, 7
        %v941 = vrot.slane %v842, 7
        %v942 = vrot.slane %v843, 7
        %v943 = vrot.slane %v844, 7
        %v944 = vrot.slane %v845, 7
        %v945 = vrot.slane %v846, 7
        %v946 = vrot.slane %v847, 7
        %v947 = vrot.slane %v848, 7
        %v948 = vrot.slane %v849, 7
        %v949 = vrot.slane %v850, 7
        %v950 = vrot.slane %v851, 7
        %v951 = vrot.slane %v852, 7
        %v952 = vrot.slane %v853, 7
        %v953 = vrot.slane %v854, 7
        %v954 = vrot.slane %v855, 7
        %v955 = vrot.slane %v856, 7
        %v956 = vrot.slane %v857, 7
        %v957 = vrot.slane %v858, 7
        %v958 = vrot.slane %v859, 7
        %v959 = vrot.slane %v860, 7
        %v960 = vrot.slane %v861, 7
        %v961 = vrot.slane %v920, 7
        %v962 = vrot.slane %v921, 7
        %vm963 = vcmp.lt.s32.totalorder %v923, 1
        %v964 = vsel %vm963, %v961, %v962
        %v965 = vsel %vm963, %v960, %v961
        %v966 = vsel %vm963, %v959, %v960
        %v967 = vsel %vm963, %v958, %v959
        %v968 = vsel %vm963, %v957, %v958
        %v969 = vsel %vm963, %v956, %v957
        %v970 = vsel %vm963, %v955, %v956
        %v971 = vsel %vm963, %v954, %v955
        %v972 = vsel %vm963, %v953, %v954
        %v973 = vsel %vm963, %v952, %v953
        %v974 = vsel %vm963, %v951, %v952
        %v975 = vsel %vm963, %v950, %v951
        %v976 = vsel %vm963, %v949, %v950
        %v977 = vsel %vm963, %v948, %v949
        %v978 = vsel %vm963, %v947, %v948
        %v979 = vsel %vm963, %v946, %v947
        %v980 = vsel %vm963, %v945, %v946
        %v981 = vsel %vm963, %v944, %v945
        %v982 = vsel %vm963, %v943, %v944
        %v983 = vsel %vm963, %v942, %v943
        %v984 = vsel %vm963, %v941, %v942
        %v985 = vsel %vm963, %v940, %v941
        %v986 = vsel %vm963, %v939, %v940
        %v987 = vsel %vm963, %v938, %v939
        %v988 = vsel %vm963, %v937, %v938
        %v989 = vsel %vm963, %v936, %v937
        %v990 = vsel %vm963, %v935, %v936
        %v991 = vsel %vm963, %v934, %v935
        %v992 = vsel %vm963, %v933, %v934
        %v993 = vsel %vm963, %v932, %v933
        %v994 = vsel %vm963, %v931, %v932
        %v995 = vsel %vm963, %v930, %v931
        %v996 = vsel %vm963, %v929, %v930
        %v997 = vsel %vm963, %v928, %v929
        %v998 = vsel %vm963, %v927, %v928
        %v999 = vsel %vm963, %v962, %v927
        %v1000 = vsel %vm925, %v999, 0.0
        %v1001 = vsel %vm926, %v998, 0.0
        %v1002 = vsel %vm925, %v997, 0.0
        %v1003 = vsel %vm926, %v996, 0.0
        %v1004 = vsel %vm925, %v995, 0.0
        %v1005 = vsel %vm926, %v994, 0.0
        %v1006 = vsel %vm925, %v993, 0.0
        %v1007 = vsel %vm926, %v992, 0.0
        %v1008 = vsel %vm925, %v991, 0.0
        %v1009 = vsel %vm926, %v990, 0.0
        %v1010 = vsel %vm925, %v989, 0.0
        %v1011 = vsel %vm926, %v988, 0.0
        %v1012 = vsel %vm925, %v987, 0.0
        %v1013 = vsel %vm926, %v986, 0.0
        %v1014 = vsel %vm925, %v985, 0.0
        %v1015 = vsel %vm926, %v984, 0.0
        %v1016 = vsel %vm925, %v983, 0.0
        %v1017 = vsel %vm926, %v982, 0.0
        %v1018 = vsel %vm925, %v981, 0.0
        %v1019 = vsel %vm926, %v980, 0.0
        %v1020 = vsel %vm925, %v979, 0.0
        %v1021 = vsel %vm926, %v978, 0.0
        %v1022 = vsel %vm925, %v977, 0.0
        %v1023 = vsel %vm926, %v976, 0.0
        %v1024 = vsel %vm925, %v975, 0.0
        %v1025 = vsel %vm926, %v974, 0.0
        %v1026 = vsel %vm925, %v973, 0.0
        %v1027 = vsel %vm926, %v972, 0.0
        %v1028 = vsel %vm925, %v971, 0.0
        %v1029 = vsel %vm926, %v970, 0.0
        %v1030 = vsel %vm925, %v969, 0.0
        %v1031 = vsel %vm926, %v968, 0.0
        %v1032 = vsel %vm925, %v967, 0.0
        %v1033 = vsel %vm926, %v966, 0.0
        %v1034 = vsel %vm925, %v965, 0.0
        %v1035 = vsel %vm926, %v964, 0.0
        %v1036 = vpack.c.bf16 %v1001, %v1000
        %v1037 = vpack.c.bf16 %v1003, %v1002
        %v1038 = vpack.c.bf16 %v1005, %v1004
        %v1039 = vpack.c.bf16 %v1007, %v1006
        %v1040 = vpack.c.bf16 %v1009, %v1008
        %v1041 = vpack.c.bf16 %v1011, %v1010
        %v1042 = vpack.c.bf16 %v1013, %v1012
        %v1043 = vpack.c.bf16 %v1015, %v1014
        %v1044 = vpack.c.bf16 %v1017, %v1016
        %v1045 = vpack.c.bf16 %v1019, %v1018
        %v1046 = vpack.c.bf16 %v1021, %v1020
        %v1047 = vpack.c.bf16 %v1023, %v1022
        %v1048 = vpack.c.bf16 %v1025, %v1024
        %v1049 = vpack.c.bf16 %v1027, %v1026
        %v1050 = vpack.c.bf16 %v1029, %v1028
        %v1051 = vpack.c.bf16 %v1031, %v1030
        %v1052 = vpack.c.bf16 %v1033, %v1032
        %v1053 = vpack.c.bf16 %v1035, %v1034
        %vm1054 = vcmp.lt.s32.totalorder %v923, 15
        %vm1055 = vcmp.lt.s32.totalorder %v924, 15
        %v1056 = vrot.slane %v914, 1
        %v1057 = vrot.slane %v915, 1
        %v1058 = vrot.slane %v830, 1
        %v1059 = vrot.slane %v831, 1
        %v1060 = vrot.slane %v832, 1
        %v1061 = vrot.slane %v833, 1
        %v1062 = vrot.slane %v834, 1
        %v1063 = vrot.slane %v835, 1
        %v1064 = vrot.slane %v836, 1
        %v1065 = vrot.slane %v837, 1
        %v1066 = vrot.slane %v838, 1
        %v1067 = vrot.slane %v839, 1
        %v1068 = vrot.slane %v840, 1
        %v1069 = vrot.slane %v841, 1
        %v1070 = vrot.slane %v842, 1
        %v1071 = vrot.slane %v843, 1
        %v1072 = vrot.slane %v844, 1
        %v1073 = vrot.slane %v845, 1
        %v1074 = vrot.slane %v846, 1
        %v1075 = vrot.slane %v847, 1
        %v1076 = vrot.slane %v848, 1
        %v1077 = vrot.slane %v849, 1
        %v1078 = vrot.slane %v850, 1
        %v1079 = vrot.slane %v851, 1
        %v1080 = vrot.slane %v852, 1
        %v1081 = vrot.slane %v853, 1
        %v1082 = vrot.slane %v854, 1
        %v1083 = vrot.slane %v855, 1
        %v1084 = vrot.slane %v856, 1
        %v1085 = vrot.slane %v857, 1
        %v1086 = vrot.slane %v858, 1
        %v1087 = vrot.slane %v859, 1
        %v1088 = vrot.slane %v860, 1
        %v1089 = vrot.slane %v861, 1
        %v1090 = vrot.slane %v920, 1
        %v1091 = vrot.slane %v921, 1
        %vm1092 = vcmp.lt.s32.totalorder %v923, 7
        %v1093 = vsel %vm1092, %v1090, %v1091
        %v1094 = vsel %vm1092, %v1089, %v1090
        %v1095 = vsel %vm1092, %v1088, %v1089
        %v1096 = vsel %vm1092, %v1087, %v1088
        %v1097 = vsel %vm1092, %v1086, %v1087
        %v1098 = vsel %vm1092, %v1085, %v1086
        %v1099 = vsel %vm1092, %v1084, %v1085
        %v1100 = vsel %vm1092, %v1083, %v1084
        %v1101 = vsel %vm1092, %v1082, %v1083
        %v1102 = vsel %vm1092, %v1081, %v1082
        %v1103 = vsel %vm1092, %v1080, %v1081
        %v1104 = vsel %vm1092, %v1079, %v1080
        %v1105 = vsel %vm1092, %v1078, %v1079
        %v1106 = vsel %vm1092, %v1077, %v1078
        %v1107 = vsel %vm1092, %v1076, %v1077
        %v1108 = vsel %vm1092, %v1075, %v1076
        %v1109 = vsel %vm1092, %v1074, %v1075
        %v1110 = vsel %vm1092, %v1073, %v1074
        %v1111 = vsel %vm1092, %v1072, %v1073
        %v1112 = vsel %vm1092, %v1071, %v1072
        %v1113 = vsel %vm1092, %v1070, %v1071
        %v1114 = vsel %vm1092, %v1069, %v1070
        %v1115 = vsel %vm1092, %v1068, %v1069
        %v1116 = vsel %vm1092, %v1067, %v1068
        %v1117 = vsel %vm1092, %v1066, %v1067
        %v1118 = vsel %vm1092, %v1065, %v1066
        %v1119 = vsel %vm1092, %v1064, %v1065
        %v1120 = vsel %vm1092, %v1063, %v1064
        %v1121 = vsel %vm1092, %v1062, %v1063
        %v1122 = vsel %vm1092, %v1061, %v1062
        %v1123 = vsel %vm1092, %v1060, %v1061
        %v1124 = vsel %vm1092, %v1059, %v1060
        %v1125 = vsel %vm1092, %v1058, %v1059
        %v1126 = vsel %vm1092, %v1057, %v1058
        %v1127 = vsel %vm1092, %v1056, %v1057
        %v1128 = vsel %vm1092, %v1091, %v1056
        %v1129 = vsel %vm1054, %v1127, 0.0
        %v1130 = vsel %vm1055, %v1126, 0.0
        %v1131 = vsel %vm1054, %v1125, 0.0
        %v1132 = vsel %vm1055, %v1124, 0.0
        %v1133 = vsel %vm1054, %v1123, 0.0
        %v1134 = vsel %vm1055, %v1122, 0.0
        %v1135 = vsel %vm1054, %v1121, 0.0
        %v1136 = vsel %vm1055, %v1120, 0.0
        %v1137 = vsel %vm1054, %v1119, 0.0
        %v1138 = vsel %vm1055, %v1118, 0.0
        %v1139 = vsel %vm1054, %v1117, 0.0
        %v1140 = vsel %vm1055, %v1116, 0.0
        %v1141 = vsel %vm1054, %v1115, 0.0
        %v1142 = vsel %vm1055, %v1114, 0.0
        %v1143 = vsel %vm1054, %v1113, 0.0
        %v1144 = vsel %vm1055, %v1112, 0.0
        %v1145 = vsel %vm1054, %v1111, 0.0
        %v1146 = vsel %vm1055, %v1110, 0.0
        %v1147 = vsel %vm1054, %v1109, 0.0
        %v1148 = vsel %vm1055, %v1108, 0.0
        %v1149 = vsel %vm1054, %v1107, 0.0
        %v1150 = vsel %vm1055, %v1106, 0.0
        %v1151 = vsel %vm1054, %v1105, 0.0
        %v1152 = vsel %vm1055, %v1104, 0.0
        %v1153 = vsel %vm1054, %v1103, 0.0
        %v1154 = vsel %vm1055, %v1102, 0.0
        %v1155 = vsel %vm1054, %v1101, 0.0
        %v1156 = vsel %vm1055, %v1100, 0.0
        %v1157 = vsel %vm1054, %v1099, 0.0
        %v1158 = vsel %vm1055, %v1098, 0.0
        %v1159 = vsel %vm1054, %v1097, 0.0
        %v1160 = vsel %vm1055, %v1096, 0.0
        %v1161 = vsel %vm1054, %v1095, 0.0
        %v1162 = vsel %vm1055, %v1094, 0.0
        %v1163 = vsel %vm1054, %v1093, 0.0
        %v1164 = vsel %vm1055, %v1128, 0.0
        %v1165 = vpack.c.bf16 %v1130, %v1129
        %v1166 = vpack.c.bf16 %v1132, %v1131
        %v1167 = vpack.c.bf16 %v1134, %v1133
        %v1168 = vpack.c.bf16 %v1136, %v1135
        %v1169 = vpack.c.bf16 %v1138, %v1137
        %v1170 = vpack.c.bf16 %v1140, %v1139
        %v1171 = vpack.c.bf16 %v1142, %v1141
        %v1172 = vpack.c.bf16 %v1144, %v1143
        %v1173 = vpack.c.bf16 %v1146, %v1145
        %v1174 = vpack.c.bf16 %v1148, %v1147
        %v1175 = vpack.c.bf16 %v1150, %v1149
        %v1176 = vpack.c.bf16 %v1152, %v1151
        %v1177 = vpack.c.bf16 %v1154, %v1153
        %v1178 = vpack.c.bf16 %v1156, %v1155
        %v1179 = vpack.c.bf16 %v1158, %v1157
        %v1180 = vpack.c.bf16 %v1160, %v1159
        %v1181 = vpack.c.bf16 %v1162, %v1161
        %v1182 = vpack.c.bf16 %v1164, %v1163
        %v1183 = vpack.c.bf16 %v915, %v914
        %v1184 = vpack.c.bf16 %v831, %v830
        %v1185 = vpack.c.bf16 %v833, %v832
        %v1186 = vpack.c.bf16 %v835, %v834
        %v1187 = vpack.c.bf16 %v837, %v836
        %v1188 = vpack.c.bf16 %v839, %v838
        %v1189 = vpack.c.bf16 %v841, %v840
        %v1190 = vpack.c.bf16 %v843, %v842
        %v1191 = vpack.c.bf16 %v845, %v844
        %v1192 = vpack.c.bf16 %v847, %v846
        %v1193 = vpack.c.bf16 %v849, %v848
        %v1194 = vpack.c.bf16 %v851, %v850
        %v1195 = vpack.c.bf16 %v853, %v852
        %v1196 = vpack.c.bf16 %v855, %v854
        %v1197 = vpack.c.bf16 %v857, %v856
        %v1198 = vpack.c.bf16 %v859, %v858
        %v1199 = vpack.c.bf16 %v861, %v860
        %v1200 = vpack.c.bf16 %v921, %v920
        %v1201 = vld [vmem:[#allocation10] sm:$0xf]
        %v1202 = vld [vmem:[#allocation10 + $0x4] sm:$0xf]
        %v1203 = vld [vmem:[#allocation10 + $0x8] sm:$0xf]
        %v1204 = vld [vmem:[#allocation10 + $0xc] sm:$0xf]
        %v1205 = vld [vmem:[#allocation10 + $0x10] sm:$0xf]
        %v1206 = vld [vmem:[#allocation10 + $0x14] sm:$0xf]
        %v1207 = vld [vmem:[#allocation10 + $0x18] sm:$0xf]
        %v1208 = vld [vmem:[#allocation10 + $0x1c] sm:$0xf]
        %v1209 = vld [vmem:[#allocation10 + $0x20] sm:$0xf]
        %v1210 = vld [vmem:[#allocation10 + $0x24] sm:$0xf]
        %v1211 = vld [vmem:[#allocation10 + $0x28] sm:$0xf]
        %v1212 = vld [vmem:[#allocation10 + $0x2c] sm:$0xf]
        %v1213 = vld [vmem:[#allocation10 + $0x30] sm:$0xf]
        %v1214 = vld [vmem:[#allocation10 + $0x34] sm:$0xf]
        %v1215 = vld [vmem:[#allocation10 + $0x38] sm:$0xf]
        %v1216 = vld [vmem:[#allocation10 + $0x3c] sm:$0xf]
        %s1217 = scalar_lea.vmem [#allocation10], 64
        %v1218 = vld [vmem:[%s1217] sm:$0xf]
        %v1219 = vld [vmem:[%s1217 + $0x4] sm:$0xf]
        %v1220 = vld [vmem:[%s1217 + $0x8] sm:$0xf]
        %v1221 = vld [vmem:[%s1217 + $0xc] sm:$0xf]
        %v1222 = vld [vmem:[%s1217 + $0x10] sm:$0xf]
        %v1223 = vld [vmem:[%s1217 + $0x14] sm:$0xf]
        %v1224 = vld [vmem:[%s1217 + $0x18] sm:$0xf]
        %v1225 = vld [vmem:[%s1217 + $0x1c] sm:$0xf]
        %v1226 = vld [vmem:[%s1217 + $0x20] sm:$0xf]
        %v1227 = vld [vmem:[%s1217 + $0x24] sm:$0xf]
        %v1228 = vld [vmem:[%s1217 + $0x28] sm:$0xf]
        %v1229 = vld [vmem:[%s1217 + $0x2c] sm:$0xf]
        %v1230 = vld [vmem:[%s1217 + $0x30] sm:$0xf]
        %v1231 = vld [vmem:[%s1217 + $0x34] sm:$0xf]
        %v1232 = vld [vmem:[%s1217 + $0x38] sm:$0xf]
        %v1233 = vld [vmem:[%s1217 + $0x3c] sm:$0xf]
        %v1250 = vunpack.c.l.b16 %v1218
        %v1251 = vunpack.c.l.b16 %v1219
        %v1252 = vunpack.c.l.b16 %v1220
        %v1253 = vunpack.c.l.b16 %v1221
        %v1254 = vunpack.c.l.b16 %v1222
        %v1255 = vunpack.c.l.b16 %v1223
        %v1256 = vunpack.c.l.b16 %v1224
        %v1257 = vunpack.c.l.b16 %v1225
        %v1258 = vunpack.c.l.b16 %v1226
        %v1259 = vunpack.c.l.b16 %v1227
        %v1260 = vunpack.c.l.b16 %v1228
        %v1261 = vunpack.c.l.b16 %v1229
        %v1262 = vunpack.c.l.b16 %v1230
        %v1263 = vunpack.c.l.b16 %v1231
        %v1264 = vunpack.c.l.b16 %v1232
        %v1265 = vunpack.c.l.b16 %v1233
        %v1266 = vpack.c.b16 %v1251, %v1250
        %v1267 = vpack.c.b16 %v1253, %v1252
        %v1268 = vpack.c.b16 %v1255, %v1254
        %v1269 = vpack.c.b16 %v1257, %v1256
        %v1270 = vpack.c.b16 %v1259, %v1258
        %v1271 = vpack.c.b16 %v1261, %v1260
        %v1272 = vpack.c.b16 %v1263, %v1262
        %v1273 = vpack.c.b16 %v1265, %v1264
        %1282 = vmatpush.bf16.msra.mxu0 %v1273
        %1283 = vmatpush.bf16.msra.mxu0 %v1272
        %1284 = vmatpush.bf16.msra.mxu0 %v1271
        %1285 = vmatpush.bf16.msra.mxu0 %v1270
        %1286 = vmatpush.bf16.msra.mxu0 %v1269
        %1287 = vmatpush.bf16.msra.mxu0 %v1268
        %1288 = vmatpush.bf16.msra.mxu0 %v1267
        %1289 = vmatpush.bf16.msra.mxu0 %v1266
        %1290 = vmatmul.bf16.gmra.mxu0 %v1183
        %v1291 = vpop.f32.mrf.mxu0
        %v1292 = vadd.f32 0.0, %v1291
        %v1293 = vpop.f32.mrf.mxu0
        %v1294 = vadd.f32 0.0, %v1293
        %1295 = vmatmul.bf16.gmra.mxu0 %v1184
        %v1296 = vpop.f32.mrf.mxu0
        %v1297 = vadd.f32 0.0, %v1296
        %v1298 = vpop.f32.mrf.mxu0
        %v1299 = vadd.f32 0.0, %v1298
        %1300 = vmatmul.bf16.gmra.mxu0 %v1185
        %v1301 = vpop.f32.mrf.mxu0
        %v1302 = vadd.f32 0.0, %v1301
        %v1303 = vpop.f32.mrf.mxu0
        %v1304 = vadd.f32 0.0, %v1303
        %1305 = vmatmul.bf16.gmra.mxu0 %v1186
        %v1306 = vpop.f32.mrf.mxu0
        %v1307 = vadd.f32 0.0, %v1306
        %v1308 = vpop.f32.mrf.mxu0
        %v1309 = vadd.f32 0.0, %v1308
        %1310 = vmatmul.bf16.gmra.mxu0 %v1187
        %v1311 = vpop.f32.mrf.mxu0
        %v1312 = vadd.f32 0.0, %v1311
        %v1313 = vpop.f32.mrf.mxu0
        %v1314 = vadd.f32 0.0, %v1313
        %1315 = vmatmul.bf16.gmra.mxu0 %v1188
        %v1316 = vpop.f32.mrf.mxu0
        %v1317 = vadd.f32 0.0, %v1316
        %v1318 = vpop.f32.mrf.mxu0
        %v1319 = vadd.f32 0.0, %v1318
        %1320 = vmatmul.bf16.gmra.mxu0 %v1189
        %v1321 = vpop.f32.mrf.mxu0
        %v1322 = vadd.f32 0.0, %v1321
        %v1323 = vpop.f32.mrf.mxu0
        %v1324 = vadd.f32 0.0, %v1323
        %1325 = vmatmul.bf16.gmra.mxu0 %v1190
        %v1326 = vpop.f32.mrf.mxu0
        %v1327 = vadd.f32 0.0, %v1326
        %v1328 = vpop.f32.mrf.mxu0
        %v1329 = vadd.f32 0.0, %v1328
        %1330 = vmatmul.bf16.gmra.mxu0 %v1191
        %v1331 = vpop.f32.mrf.mxu0
        %v1332 = vadd.f32 0.0, %v1331
        %v1333 = vpop.f32.mrf.mxu0
        %v1334 = vadd.f32 0.0, %v1333
        %1335 = vmatmul.bf16.gmra.mxu0 %v1192
        %v1336 = vpop.f32.mrf.mxu0
        %v1337 = vadd.f32 0.0, %v1336
        %v1338 = vpop.f32.mrf.mxu0
        %v1339 = vadd.f32 0.0, %v1338
        %1340 = vmatmul.bf16.gmra.mxu0 %v1193
        %v1341 = vpop.f32.mrf.mxu0
        %v1342 = vadd.f32 0.0, %v1341
        %v1343 = vpop.f32.mrf.mxu0
        %v1344 = vadd.f32 0.0, %v1343
        %1345 = vmatmul.bf16.gmra.mxu0 %v1194
        %v1346 = vpop.f32.mrf.mxu0
        %v1347 = vadd.f32 0.0, %v1346
        %v1348 = vpop.f32.mrf.mxu0
        %v1349 = vadd.f32 0.0, %v1348
        %1350 = vmatmul.bf16.gmra.mxu0 %v1195
        %v1351 = vpop.f32.mrf.mxu0
        %v1352 = vadd.f32 0.0, %v1351
        %v1353 = vpop.f32.mrf.mxu0
        %v1354 = vadd.f32 0.0, %v1353
        %1355 = vmatmul.bf16.gmra.mxu0 %v1196
        %v1356 = vpop.f32.mrf.mxu0
        %v1357 = vadd.f32 0.0, %v1356
        %v1358 = vpop.f32.mrf.mxu0
        %v1359 = vadd.f32 0.0, %v1358
        %1360 = vmatmul.bf16.gmra.mxu0 %v1197
        %v1361 = vpop.f32.mrf.mxu0
        %v1362 = vadd.f32 0.0, %v1361
        %v1363 = vpop.f32.mrf.mxu0
        %v1364 = vadd.f32 0.0, %v1363
        %1365 = vmatmul.bf16.gmra.mxu0 %v1198
        %v1366 = vpop.f32.mrf.mxu0
        %v1367 = vadd.f32 0.0, %v1366
        %v1368 = vpop.f32.mrf.mxu0
        %v1369 = vadd.f32 0.0, %v1368
        %1370 = vmatmul.bf16.gmra.mxu0 %v1199
        %v1371 = vpop.f32.mrf.mxu0
        %v1372 = vpop.f32.mrf.mxu0
        %1373 = vmatmul.bf16.gmra.mxu0 %v1200
        %v1374 = vpop.f32.mrf.mxu0
        %v1375 = vpop.f32.mrf.mxu0
        %1376 = vdwg.mxu0
        %v1393 = vunpack.c.l.b16 %v1201
        %v1394 = vunpack.c.l.b16 %v1202
        %v1395 = vunpack.c.l.b16 %v1203
        %v1396 = vunpack.c.l.b16 %v1204
        %v1397 = vunpack.c.l.b16 %v1205
        %v1398 = vunpack.c.l.b16 %v1206
        %v1399 = vunpack.c.l.b16 %v1207
        %v1400 = vunpack.c.l.b16 %v1208
        %v1401 = vunpack.c.l.b16 %v1209
        %v1402 = vunpack.c.l.b16 %v1210
        %v1403 = vunpack.c.l.b16 %v1211
        %v1404 = vunpack.c.l.b16 %v1212
        %v1405 = vunpack.c.l.b16 %v1213
        %v1406 = vunpack.c.l.b16 %v1214
        %v1407 = vunpack.c.l.b16 %v1215
        %v1408 = vunpack.c.l.b16 %v1216
        %v1409 = vpack.c.b16 %v1394, %v1393
        %v1410 = vpack.c.b16 %v1396, %v1395
        %v1411 = vpack.c.b16 %v1398, %v1397
        %v1412 = vpack.c.b16 %v1400, %v1399
        %v1413 = vpack.c.b16 %v1402, %v1401
        %v1414 = vpack.c.b16 %v1404, %v1403
        %v1415 = vpack.c.b16 %v1406, %v1405
        %v1416 = vpack.c.b16 %v1408, %v1407
        %1425 = vmatpush.bf16.msra.mxu0 %v1416
        %1426 = vmatpush.bf16.msra.mxu0 %v1415
        %1427 = vmatpush.bf16.msra.mxu0 %v1414
        %1428 = vmatpush.bf16.msra.mxu0 %v1413
        %1429 = vmatpush.bf16.msra.mxu0 %v1412
        %1430 = vmatpush.bf16.msra.mxu0 %v1411
        %1431 = vmatpush.bf16.msra.mxu0 %v1410
        %1432 = vmatpush.bf16.msra.mxu0 %v1409
        %1433 = vmatmul.bf16.gmra.mxu0 %v1036
        %v1434 = vpop.f32.mrf.mxu0
        %v1435 = vadd.f32 %v1292, %v1434
        %v1436 = vpop.f32.mrf.mxu0
        %v1437 = vadd.f32 %v1294, %v1436
        %1438 = vmatmul.bf16.gmra.mxu0 %v1037
        %v1439 = vpop.f32.mrf.mxu0
        %v1440 = vadd.f32 %v1297, %v1439
        %v1441 = vpop.f32.mrf.mxu0
        %v1442 = vadd.f32 %v1299, %v1441
        %1443 = vmatmul.bf16.gmra.mxu0 %v1038
        %v1444 = vpop.f32.mrf.mxu0
        %v1445 = vadd.f32 %v1302, %v1444
        %v1446 = vpop.f32.mrf.mxu0
        %v1447 = vadd.f32 %v1304, %v1446
        %1448 = vmatmul.bf16.gmra.mxu0 %v1039
        %v1449 = vpop.f32.mrf.mxu0
        %v1450 = vadd.f32 %v1307, %v1449
        %v1451 = vpop.f32.mrf.mxu0
        %v1452 = vadd.f32 %v1309, %v1451
        %1453 = vmatmul.bf16.gmra.mxu0 %v1040
        %v1454 = vpop.f32.mrf.mxu0
        %v1455 = vadd.f32 %v1312, %v1454
        %v1456 = vpop.f32.mrf.mxu0
        %v1457 = vadd.f32 %v1314, %v1456
        %1458 = vmatmul.bf16.gmra.mxu0 %v1041
        %v1459 = vpop.f32.mrf.mxu0
        %v1460 = vadd.f32 %v1317, %v1459
        %v1461 = vpop.f32.mrf.mxu0
        %v1462 = vadd.f32 %v1319, %v1461
        %1463 = vmatmul.bf16.gmra.mxu0 %v1042
        %v1464 = vpop.f32.mrf.mxu0
        %v1465 = vadd.f32 %v1322, %v1464
        %v1466 = vpop.f32.mrf.mxu0
        %v1467 = vadd.f32 %v1324, %v1466
        %1468 = vmatmul.bf16.gmra.mxu0 %v1043
        %v1469 = vpop.f32.mrf.mxu0
        %v1470 = vadd.f32 %v1327, %v1469
        %v1471 = vpop.f32.mrf.mxu0
        %v1472 = vadd.f32 %v1329, %v1471
        %1473 = vmatmul.bf16.gmra.mxu0 %v1044
        %v1474 = vpop.f32.mrf.mxu0
        %v1475 = vadd.f32 %v1332, %v1474
        %v1476 = vpop.f32.mrf.mxu0
        %v1477 = vadd.f32 %v1334, %v1476
        %1478 = vmatmul.bf16.gmra.mxu0 %v1045
        %v1479 = vpop.f32.mrf.mxu0
        %v1480 = vadd.f32 %v1337, %v1479
        %v1481 = vpop.f32.mrf.mxu0
        %v1482 = vadd.f32 %v1339, %v1481
        %1483 = vmatmul.bf16.gmra.mxu0 %v1046
        %v1484 = vpop.f32.mrf.mxu0
        %v1485 = vadd.f32 %v1342, %v1484
        %v1486 = vpop.f32.mrf.mxu0
        %v1487 = vadd.f32 %v1344, %v1486
        %1488 = vmatmul.bf16.gmra.mxu0 %v1047
        %v1489 = vpop.f32.mrf.mxu0
        %v1490 = vadd.f32 %v1347, %v1489
        %v1491 = vpop.f32.mrf.mxu0
        %v1492 = vadd.f32 %v1349, %v1491
        %1493 = vmatmul.bf16.gmra.mxu0 %v1048
        %v1494 = vpop.f32.mrf.mxu0
        %v1495 = vadd.f32 %v1352, %v1494
        %v1496 = vpop.f32.mrf.mxu0
        %v1497 = vadd.f32 %v1354, %v1496
        %1498 = vmatmul.bf16.gmra.mxu0 %v1049
        %v1499 = vpop.f32.mrf.mxu0
        %v1500 = vadd.f32 %v1357, %v1499
        %v1501 = vpop.f32.mrf.mxu0
        %v1502 = vadd.f32 %v1359, %v1501
        %1503 = vmatmul.bf16.gmra.mxu0 %v1050
        %v1504 = vpop.f32.mrf.mxu0
        %v1505 = vadd.f32 %v1362, %v1504
        %v1506 = vpop.f32.mrf.mxu0
        %v1507 = vadd.f32 %v1364, %v1506
        %1508 = vmatmul.bf16.gmra.mxu0 %v1051
        %v1509 = vpop.f32.mrf.mxu0
        %v1510 = vadd.f32 %v1367, %v1509
        %v1511 = vpop.f32.mrf.mxu0
        %v1512 = vadd.f32 %v1369, %v1511
        %1513 = vmatmul.bf16.gmra.mxu0 %v1052
        %v1514 = vpop.f32.mrf.mxu0
        %v1515 = vpop.f32.mrf.mxu0
        %1516 = vmatmul.bf16.gmra.mxu0 %v1053
        %v1517 = vpop.f32.mrf.mxu0
        %v1518 = vpop.f32.mrf.mxu0
        %1519 = vdwg.mxu0
        %s1520 = scalar_lea.vmem [#allocation10], 128
        %v1521 = vld [vmem:[%s1520] sm:$0xf]
        %v1522 = vld [vmem:[%s1520 + $0x4] sm:$0xf]
        %v1523 = vld [vmem:[%s1520 + $0x8] sm:$0xf]
        %v1524 = vld [vmem:[%s1520 + $0xc] sm:$0xf]
        %v1525 = vld [vmem:[%s1520 + $0x10] sm:$0xf]
        %v1526 = vld [vmem:[%s1520 + $0x14] sm:$0xf]
        %v1527 = vld [vmem:[%s1520 + $0x18] sm:$0xf]
        %v1528 = vld [vmem:[%s1520 + $0x1c] sm:$0xf]
        %v1529 = vld [vmem:[%s1520 + $0x20] sm:$0xf]
        %v1530 = vld [vmem:[%s1520 + $0x24] sm:$0xf]
        %v1531 = vld [vmem:[%s1520 + $0x28] sm:$0xf]
        %v1532 = vld [vmem:[%s1520 + $0x2c] sm:$0xf]
        %v1533 = vld [vmem:[%s1520 + $0x30] sm:$0xf]
        %v1534 = vld [vmem:[%s1520 + $0x34] sm:$0xf]
        %v1535 = vld [vmem:[%s1520 + $0x38] sm:$0xf]
        %v1536 = vld [vmem:[%s1520 + $0x3c] sm:$0xf]
        %v1553 = vunpack.c.l.b16 %v1521
        %v1554 = vunpack.c.l.b16 %v1522
        %v1555 = vunpack.c.l.b16 %v1523
        %v1556 = vunpack.c.l.b16 %v1524
        %v1557 = vunpack.c.l.b16 %v1525
        %v1558 = vunpack.c.l.b16 %v1526
        %v1559 = vunpack.c.l.b16 %v1527
        %v1560 = vunpack.c.l.b16 %v1528
        %v1561 = vunpack.c.l.b16 %v1529
        %v1562 = vunpack.c.l.b16 %v1530
        %v1563 = vunpack.c.l.b16 %v1531
        %v1564 = vunpack.c.l.b16 %v1532
        %v1565 = vunpack.c.l.b16 %v1533
        %v1566 = vunpack.c.l.b16 %v1534
        %v1567 = vunpack.c.l.b16 %v1535
        %v1568 = vunpack.c.l.b16 %v1536
        %v1569 = vpack.c.b16 %v1554, %v1553
        %v1570 = vpack.c.b16 %v1556, %v1555
        %v1571 = vpack.c.b16 %v1558, %v1557
        %v1572 = vpack.c.b16 %v1560, %v1559
        %v1573 = vpack.c.b16 %v1562, %v1561
        %v1574 = vpack.c.b16 %v1564, %v1563
        %v1575 = vpack.c.b16 %v1566, %v1565
        %v1576 = vpack.c.b16 %v1568, %v1567
        %1585 = vmatpush.bf16.msra.mxu0 %v1576
        %1586 = vmatpush.bf16.msra.mxu0 %v1575
        %1587 = vmatpush.bf16.msra.mxu0 %v1574
        %1588 = vmatpush.bf16.msra.mxu0 %v1573
        %1589 = vmatpush.bf16.msra.mxu0 %v1572
        %1590 = vmatpush.bf16.msra.mxu0 %v1571
        %1591 = vmatpush.bf16.msra.mxu0 %v1570
        %1592 = vmatpush.bf16.msra.mxu0 %v1569
        %1593 = vmatmul.bf16.gmra.mxu0 %v1165
        %v1594 = vpop.f32.mrf.mxu0
        %v1595 = vadd.f32 0.0, %v1594
        %v1596 = vpop.f32.mrf.mxu0
        %v1597 = vadd.f32 0.0, %v1596
        %1598 = vmatmul.bf16.gmra.mxu0 %v1166
        %v1599 = vpop.f32.mrf.mxu0
        %v1600 = vadd.f32 0.0, %v1599
        %v1601 = vpop.f32.mrf.mxu0
        %v1602 = vadd.f32 0.0, %v1601
        %1603 = vmatmul.bf16.gmra.mxu0 %v1167
        %v1604 = vpop.f32.mrf.mxu0
        %v1605 = vadd.f32 0.0, %v1604
        %v1606 = vpop.f32.mrf.mxu0
        %v1607 = vadd.f32 0.0, %v1606
        %1608 = vmatmul.bf16.gmra.mxu0 %v1168
        %v1609 = vpop.f32.mrf.mxu0
        %v1610 = vadd.f32 0.0, %v1609
        %v1611 = vpop.f32.mrf.mxu0
        %v1612 = vadd.f32 0.0, %v1611
        %1613 = vmatmul.bf16.gmra.mxu0 %v1169
        %v1614 = vpop.f32.mrf.mxu0
        %v1615 = vadd.f32 0.0, %v1614
        %v1616 = vpop.f32.mrf.mxu0
        %v1617 = vadd.f32 0.0, %v1616
        %1618 = vmatmul.bf16.gmra.mxu0 %v1170
        %v1619 = vpop.f32.mrf.mxu0
        %v1620 = vadd.f32 0.0, %v1619
        %v1621 = vpop.f32.mrf.mxu0
        %v1622 = vadd.f32 0.0, %v1621
        %1623 = vmatmul.bf16.gmra.mxu0 %v1171
        %v1624 = vpop.f32.mrf.mxu0
        %v1625 = vadd.f32 0.0, %v1624
        %v1626 = vpop.f32.mrf.mxu0
        %v1627 = vadd.f32 0.0, %v1626
        %1628 = vmatmul.bf16.gmra.mxu0 %v1172
        %v1629 = vpop.f32.mrf.mxu0
        %v1630 = vadd.f32 0.0, %v1629
        %v1631 = vpop.f32.mrf.mxu0
        %v1632 = vadd.f32 0.0, %v1631
        %1633 = vmatmul.bf16.gmra.mxu0 %v1173
        %v1634 = vpop.f32.mrf.mxu0
        %v1635 = vadd.f32 0.0, %v1634
        %v1636 = vpop.f32.mrf.mxu0
        %v1637 = vadd.f32 0.0, %v1636
        %1638 = vmatmul.bf16.gmra.mxu0 %v1174
        %v1639 = vpop.f32.mrf.mxu0
        %v1640 = vadd.f32 0.0, %v1639
        %v1641 = vpop.f32.mrf.mxu0
        %v1642 = vadd.f32 0.0, %v1641
        %1643 = vmatmul.bf16.gmra.mxu0 %v1175
        %v1644 = vpop.f32.mrf.mxu0
        %v1645 = vadd.f32 0.0, %v1644
        %v1646 = vpop.f32.mrf.mxu0
        %v1647 = vadd.f32 0.0, %v1646
        %1648 = vmatmul.bf16.gmra.mxu0 %v1176
        %v1649 = vpop.f32.mrf.mxu0
        %v1650 = vadd.f32 0.0, %v1649
        %v1651 = vpop.f32.mrf.mxu0
        %v1652 = vadd.f32 0.0, %v1651
        %1653 = vmatmul.bf16.gmra.mxu0 %v1177
        %v1654 = vpop.f32.mrf.mxu0
        %v1655 = vadd.f32 0.0, %v1654
        %v1656 = vpop.f32.mrf.mxu0
        %v1657 = vadd.f32 0.0, %v1656
        %1658 = vmatmul.bf16.gmra.mxu0 %v1178
        %v1659 = vpop.f32.mrf.mxu0
        %v1660 = vadd.f32 0.0, %v1659
        %v1661 = vpop.f32.mrf.mxu0
        %v1662 = vadd.f32 0.0, %v1661
        %1663 = vmatmul.bf16.gmra.mxu0 %v1179
        %v1664 = vpop.f32.mrf.mxu0
        %v1665 = vadd.f32 0.0, %v1664
        %v1666 = vpop.f32.mrf.mxu0
        %v1667 = vadd.f32 0.0, %v1666
        %1668 = vmatmul.bf16.gmra.mxu0 %v1180
        %v1669 = vpop.f32.mrf.mxu0
        %v1670 = vadd.f32 0.0, %v1669
        %v1671 = vpop.f32.mrf.mxu0
        %v1672 = vadd.f32 0.0, %v1671
        %1673 = vmatmul.bf16.gmra.mxu0 %v1181
        %v1674 = vpop.f32.mrf.mxu0
        %v1675 = vpop.f32.mrf.mxu0
        %1676 = vmatmul.bf16.gmra.mxu0 %v1182
        %v1677 = vpop.f32.mrf.mxu0
        %v1678 = vpop.f32.mrf.mxu0
        %1679 = vdwg.mxu0
        %v1680 = vadd.f32 %v1435, %v1595
        %v1681 = vadd.f32 %v1437, %v1597
        %v1682 = vadd.f32 %v1440, %v1600
        %v1683 = vadd.f32 %v1442, %v1602
        %v1684 = vadd.f32 %v1445, %v1605
        %v1685 = vadd.f32 %v1447, %v1607
        %v1686 = vadd.f32 %v1450, %v1610
        %v1687 = vadd.f32 %v1452, %v1612
        %v1688 = vadd.f32 %v1455, %v1615
        %v1689 = vadd.f32 %v1457, %v1617
        %v1690 = vadd.f32 %v1460, %v1620
        %v1691 = vadd.f32 %v1462, %v1622
        %v1692 = vadd.f32 %v1465, %v1625
        %v1693 = vadd.f32 %v1467, %v1627
        %v1694 = vadd.f32 %v1470, %v1630
        %v1695 = vadd.f32 %v1472, %v1632
        %v1696 = vadd.f32 %v1475, %v1635
        %v1697 = vadd.f32 %v1477, %v1637
        %v1698 = vadd.f32 %v1480, %v1640
        %v1699 = vadd.f32 %v1482, %v1642
        %v1700 = vadd.f32 %v1485, %v1645
        %v1701 = vadd.f32 %v1487, %v1647
        %v1702 = vadd.f32 %v1490, %v1650
        %v1703 = vadd.f32 %v1492, %v1652
        %v1704 = vadd.f32 %v1495, %v1655
        %v1705 = vadd.f32 %v1497, %v1657
        %v1706 = vadd.f32 %v1500, %v1660
        %v1707 = vadd.f32 %v1502, %v1662
        %v1708 = vadd.f32 %v1505, %v1665
        %v1709 = vadd.f32 %v1507, %v1667
        %v1710 = vadd.f32 %v1510, %v1670
        %v1711 = vadd.f32 %v1512, %v1672
        %s1712 = scalar_lea.vmem [#allocation10], 192
        %v1713 = vld [vmem:[%s1712] sm:$0xf]
        %v1714 = vld [vmem:[%s1712 + $0x4] sm:$0xf]
        %v1715 = vld [vmem:[%s1712 + $0x8] sm:$0xf]
        %v1716 = vld [vmem:[%s1712 + $0xc] sm:$0xf]
        %v1717 = vld [vmem:[%s1712 + $0x10] sm:$0xf]
        %v1718 = vld [vmem:[%s1712 + $0x14] sm:$0xf]
        %v1719 = vld [vmem:[%s1712 + $0x18] sm:$0xf]
        %v1720 = vld [vmem:[%s1712 + $0x1c] sm:$0xf]
        %v1721 = vld [vmem:[%s1712 + $0x20] sm:$0xf]
        %v1722 = vld [vmem:[%s1712 + $0x24] sm:$0xf]
        %v1723 = vld [vmem:[%s1712 + $0x28] sm:$0xf]
        %v1724 = vld [vmem:[%s1712 + $0x2c] sm:$0xf]
        %v1725 = vld [vmem:[%s1712 + $0x30] sm:$0xf]
        %v1726 = vld [vmem:[%s1712 + $0x34] sm:$0xf]
        %v1727 = vld [vmem:[%s1712 + $0x38] sm:$0xf]
        %v1728 = vld [vmem:[%s1712 + $0x3c] sm:$0xf]
        %s1729 = scalar_lea.vmem [#allocation10], 256
        %v1730 = vld [vmem:[%s1729] sm:$0xf]
        %v1731 = vld [vmem:[%s1729 + $0x4] sm:$0xf]
        %v1732 = vld [vmem:[%s1729 + $0x8] sm:$0xf]
        %v1733 = vld [vmem:[%s1729 + $0xc] sm:$0xf]
        %v1734 = vld [vmem:[%s1729 + $0x10] sm:$0xf]
        %v1735 = vld [vmem:[%s1729 + $0x14] sm:$0xf]
        %v1736 = vld [vmem:[%s1729 + $0x18] sm:$0xf]
        %v1737 = vld [vmem:[%s1729 + $0x1c] sm:$0xf]
        %v1738 = vld [vmem:[%s1729 + $0x20] sm:$0xf]
        %v1739 = vld [vmem:[%s1729 + $0x24] sm:$0xf]
        %v1740 = vld [vmem:[%s1729 + $0x28] sm:$0xf]
        %v1741 = vld [vmem:[%s1729 + $0x2c] sm:$0xf]
        %v1742 = vld [vmem:[%s1729 + $0x30] sm:$0xf]
        %v1743 = vld [vmem:[%s1729 + $0x34] sm:$0xf]
        %v1744 = vld [vmem:[%s1729 + $0x38] sm:$0xf]
        %v1745 = vld [vmem:[%s1729 + $0x3c] sm:$0xf]
        %v1762 = vunpack.c.l.b16 %v1730
        %v1763 = vunpack.c.l.b16 %v1731
        %v1764 = vunpack.c.l.b16 %v1732
        %v1765 = vunpack.c.l.b16 %v1733
        %v1766 = vunpack.c.l.b16 %v1734
        %v1767 = vunpack.c.l.b16 %v1735
        %v1768 = vunpack.c.l.b16 %v1736
        %v1769 = vunpack.c.l.b16 %v1737
        %v1770 = vunpack.c.l.b16 %v1738
        %v1771 = vunpack.c.l.b16 %v1739
        %v1772 = vunpack.c.l.b16 %v1740
        %v1773 = vunpack.c.l.b16 %v1741
        %v1774 = vunpack.c.l.b16 %v1742
        %v1775 = vunpack.c.l.b16 %v1743
        %v1776 = vunpack.c.l.b16 %v1744
        %v1777 = vunpack.c.l.b16 %v1745
        %v1778 = vpack.c.b16 %v1763, %v1762
        %v1779 = vpack.c.b16 %v1765, %v1764
        %v1780 = vpack.c.b16 %v1767, %v1766
        %v1781 = vpack.c.b16 %v1769, %v1768
        %v1782 = vpack.c.b16 %v1771, %v1770
        %v1783 = vpack.c.b16 %v1773, %v1772
        %v1784 = vpack.c.b16 %v1775, %v1774
        %v1785 = vpack.c.b16 %v1777, %v1776
        %1794 = vmatpush.bf16.msra.mxu0 %v1785
        %1795 = vmatpush.bf16.msra.mxu0 %v1784
        %1796 = vmatpush.bf16.msra.mxu0 %v1783
        %1797 = vmatpush.bf16.msra.mxu0 %v1782
        %1798 = vmatpush.bf16.msra.mxu0 %v1781
        %1799 = vmatpush.bf16.msra.mxu0 %v1780
        %1800 = vmatpush.bf16.msra.mxu0 %v1779
        %1801 = vmatpush.bf16.msra.mxu0 %v1778
        %1802 = vmatmul.bf16.gmra.mxu0 %v1183
        %v1803 = vpop.f32.mrf.mxu0
        %v1804 = vpop.f32.mrf.mxu0
        %1805 = vmatmul.bf16.gmra.mxu0 %v1184
        %v1806 = vpop.f32.mrf.mxu0
        %v1807 = vadd.f32 0.0, %v1806
        %v1808 = vpop.f32.mrf.mxu0
        %v1809 = vadd.f32 0.0, %v1808
        %1810 = vmatmul.bf16.gmra.mxu0 %v1185
        %v1811 = vpop.f32.mrf.mxu0
        %v1812 = vadd.f32 0.0, %v1811
        %v1813 = vpop.f32.mrf.mxu0
        %v1814 = vadd.f32 0.0, %v1813
        %1815 = vmatmul.bf16.gmra.mxu0 %v1186
        %v1816 = vpop.f32.mrf.mxu0
        %v1817 = vadd.f32 0.0, %v1816
        %v1818 = vpop.f32.mrf.mxu0
        %v1819 = vadd.f32 0.0, %v1818
        %1820 = vmatmul.bf16.gmra.mxu0 %v1187
        %v1821 = vpop.f32.mrf.mxu0
        %v1822 = vadd.f32 0.0, %v1821
        %v1823 = vpop.f32.mrf.mxu0
        %v1824 = vadd.f32 0.0, %v1823
        %1825 = vmatmul.bf16.gmra.mxu0 %v1188
        %v1826 = vpop.f32.mrf.mxu0
        %v1827 = vadd.f32 0.0, %v1826
        %v1828 = vpop.f32.mrf.mxu0
        %v1829 = vadd.f32 0.0, %v1828
        %1830 = vmatmul.bf16.gmra.mxu0 %v1189
        %v1831 = vpop.f32.mrf.mxu0
        %v1832 = vadd.f32 0.0, %v1831
        %v1833 = vpop.f32.mrf.mxu0
        %v1834 = vadd.f32 0.0, %v1833
        %1835 = vmatmul.bf16.gmra.mxu0 %v1190
        %v1836 = vpop.f32.mrf.mxu0
        %v1837 = vadd.f32 0.0, %v1836
        %v1838 = vpop.f32.mrf.mxu0
        %v1839 = vadd.f32 0.0, %v1838
        %1840 = vmatmul.bf16.gmra.mxu0 %v1191
        %v1841 = vpop.f32.mrf.mxu0
        %v1842 = vadd.f32 0.0, %v1841
        %v1843 = vpop.f32.mrf.mxu0
        %v1844 = vadd.f32 0.0, %v1843
        %1845 = vmatmul.bf16.gmra.mxu0 %v1192
        %v1846 = vpop.f32.mrf.mxu0
        %v1847 = vadd.f32 0.0, %v1846
        %v1848 = vpop.f32.mrf.mxu0
        %v1849 = vadd.f32 0.0, %v1848
        %1850 = vmatmul.bf16.gmra.mxu0 %v1193
        %v1851 = vpop.f32.mrf.mxu0
        %v1852 = vadd.f32 0.0, %v1851
        %v1853 = vpop.f32.mrf.mxu0
        %v1854 = vadd.f32 0.0, %v1853
        %1855 = vmatmul.bf16.gmra.mxu0 %v1194
        %v1856 = vpop.f32.mrf.mxu0
        %v1857 = vadd.f32 0.0, %v1856
        %v1858 = vpop.f32.mrf.mxu0
        %v1859 = vadd.f32 0.0, %v1858
        %1860 = vmatmul.bf16.gmra.mxu0 %v1195
        %v1861 = vpop.f32.mrf.mxu0
        %v1862 = vadd.f32 0.0, %v1861
        %v1863 = vpop.f32.mrf.mxu0
        %v1864 = vadd.f32 0.0, %v1863
        %1865 = vmatmul.bf16.gmra.mxu0 %v1196
        %v1866 = vpop.f32.mrf.mxu0
        %v1867 = vadd.f32 0.0, %v1866
        %v1868 = vpop.f32.mrf.mxu0
        %v1869 = vadd.f32 0.0, %v1868
        %1870 = vmatmul.bf16.gmra.mxu0 %v1197
        %v1871 = vpop.f32.mrf.mxu0
        %v1872 = vadd.f32 0.0, %v1871
        %v1873 = vpop.f32.mrf.mxu0
        %v1874 = vadd.f32 0.0, %v1873
        %1875 = vmatmul.bf16.gmra.mxu0 %v1198
        %v1876 = vpop.f32.mrf.mxu0
        %v1877 = vadd.f32 0.0, %v1876
        %v1878 = vpop.f32.mrf.mxu0
        %v1879 = vadd.f32 0.0, %v1878
        %1880 = vmatmul.bf16.gmra.mxu0 %v1199
        %v1881 = vpop.f32.mrf.mxu0
        %v1882 = vadd.f32 0.0, %v1881
        %v1883 = vpop.f32.mrf.mxu0
        %v1884 = vadd.f32 0.0, %v1883
        %1885 = vmatmul.bf16.gmra.mxu0 %v1200
        %v1886 = vpop.f32.mrf.mxu0
        %v1887 = vpop.f32.mrf.mxu0
        %1888 = vdwg.mxu0
        %v1905 = vunpack.c.l.b16 %v1713
        %v1906 = vunpack.c.l.b16 %v1714
        %v1907 = vunpack.c.l.b16 %v1715
        %v1908 = vunpack.c.l.b16 %v1716
        %v1909 = vunpack.c.l.b16 %v1717
        %v1910 = vunpack.c.l.b16 %v1718
        %v1911 = vunpack.c.l.b16 %v1719
        %v1912 = vunpack.c.l.b16 %v1720
        %v1913 = vunpack.c.l.b16 %v1721
        %v1914 = vunpack.c.l.b16 %v1722
        %v1915 = vunpack.c.l.b16 %v1723
        %v1916 = vunpack.c.l.b16 %v1724
        %v1917 = vunpack.c.l.b16 %v1725
        %v1918 = vunpack.c.l.b16 %v1726
        %v1919 = vunpack.c.l.b16 %v1727
        %v1920 = vunpack.c.l.b16 %v1728
        %v1921 = vpack.c.b16 %v1906, %v1905
        %v1922 = vpack.c.b16 %v1908, %v1907
        %v1923 = vpack.c.b16 %v1910, %v1909
        %v1924 = vpack.c.b16 %v1912, %v1911
        %v1925 = vpack.c.b16 %v1914, %v1913
        %v1926 = vpack.c.b16 %v1916, %v1915
        %v1927 = vpack.c.b16 %v1918, %v1917
        %v1928 = vpack.c.b16 %v1920, %v1919
        %1937 = vmatpush.bf16.msra.mxu0 %v1928
        %1938 = vmatpush.bf16.msra.mxu0 %v1927
        %1939 = vmatpush.bf16.msra.mxu0 %v1926
        %1940 = vmatpush.bf16.msra.mxu0 %v1925
        %1941 = vmatpush.bf16.msra.mxu0 %v1924
        %1942 = vmatpush.bf16.msra.mxu0 %v1923
        %1943 = vmatpush.bf16.msra.mxu0 %v1922
        %1944 = vmatpush.bf16.msra.mxu0 %v1921
        %1945 = vmatmul.bf16.gmra.mxu0 %v1036
        %v1946 = vpop.f32.mrf.mxu0
        %v1947 = vpop.f32.mrf.mxu0
        %1948 = vmatmul.bf16.gmra.mxu0 %v1037
        %v1949 = vpop.f32.mrf.mxu0
        %v1950 = vadd.f32 %v1807, %v1949
        %v1951 = vpop.f32.mrf.mxu0
        %v1952 = vadd.f32 %v1809, %v1951
        %1953 = vmatmul.bf16.gmra.mxu0 %v1038
        %v1954 = vpop.f32.mrf.mxu0
        %v1955 = vadd.f32 %v1812, %v1954
        %v1956 = vpop.f32.mrf.mxu0
        %v1957 = vadd.f32 %v1814, %v1956
        %1958 = vmatmul.bf16.gmra.mxu0 %v1039
        %v1959 = vpop.f32.mrf.mxu0
        %v1960 = vadd.f32 %v1817, %v1959
        %v1961 = vpop.f32.mrf.mxu0
        %v1962 = vadd.f32 %v1819, %v1961
        %1963 = vmatmul.bf16.gmra.mxu0 %v1040
        %v1964 = vpop.f32.mrf.mxu0
        %v1965 = vadd.f32 %v1822, %v1964
        %v1966 = vpop.f32.mrf.mxu0
        %v1967 = vadd.f32 %v1824, %v1966
        %1968 = vmatmul.bf16.gmra.mxu0 %v1041
        %v1969 = vpop.f32.mrf.mxu0
        %v1970 = vadd.f32 %v1827, %v1969
        %v1971 = vpop.f32.mrf.mxu0
        %v1972 = vadd.f32 %v1829, %v1971
        %1973 = vmatmul.bf16.gmra.mxu0 %v1042
        %v1974 = vpop.f32.mrf.mxu0
        %v1975 = vadd.f32 %v1832, %v1974
        %v1976 = vpop.f32.mrf.mxu0
        %v1977 = vadd.f32 %v1834, %v1976
        %1978 = vmatmul.bf16.gmra.mxu0 %v1043
        %v1979 = vpop.f32.mrf.mxu0
        %v1980 = vadd.f32 %v1837, %v1979
        %v1981 = vpop.f32.mrf.mxu0
        %v1982 = vadd.f32 %v1839, %v1981
        %1983 = vmatmul.bf16.gmra.mxu0 %v1044
        %v1984 = vpop.f32.mrf.mxu0
        %v1985 = vadd.f32 %v1842, %v1984
        %v1986 = vpop.f32.mrf.mxu0
        %v1987 = vadd.f32 %v1844, %v1986
        %1988 = vmatmul.bf16.gmra.mxu0 %v1045
        %v1989 = vpop.f32.mrf.mxu0
        %v1990 = vadd.f32 %v1847, %v1989
        %v1991 = vpop.f32.mrf.mxu0
        %v1992 = vadd.f32 %v1849, %v1991
        %1993 = vmatmul.bf16.gmra.mxu0 %v1046
        %v1994 = vpop.f32.mrf.mxu0
        %v1995 = vadd.f32 %v1852, %v1994
        %v1996 = vpop.f32.mrf.mxu0
        %v1997 = vadd.f32 %v1854, %v1996
        %1998 = vmatmul.bf16.gmra.mxu0 %v1047
        %v1999 = vpop.f32.mrf.mxu0
        %v2000 = vadd.f32 %v1857, %v1999
        %v2001 = vpop.f32.mrf.mxu0
        %v2002 = vadd.f32 %v1859, %v2001
        %2003 = vmatmul.bf16.gmra.mxu0 %v1048
        %v2004 = vpop.f32.mrf.mxu0
        %v2005 = vadd.f32 %v1862, %v2004
        %v2006 = vpop.f32.mrf.mxu0
        %v2007 = vadd.f32 %v1864, %v2006
        %2008 = vmatmul.bf16.gmra.mxu0 %v1049
        %v2009 = vpop.f32.mrf.mxu0
        %v2010 = vadd.f32 %v1867, %v2009
        %v2011 = vpop.f32.mrf.mxu0
        %v2012 = vadd.f32 %v1869, %v2011
        %2013 = vmatmul.bf16.gmra.mxu0 %v1050
        %v2014 = vpop.f32.mrf.mxu0
        %v2015 = vadd.f32 %v1872, %v2014
        %v2016 = vpop.f32.mrf.mxu0
        %v2017 = vadd.f32 %v1874, %v2016
        %2018 = vmatmul.bf16.gmra.mxu0 %v1051
        %v2019 = vpop.f32.mrf.mxu0
        %v2020 = vadd.f32 %v1877, %v2019
        %v2021 = vpop.f32.mrf.mxu0
        %v2022 = vadd.f32 %v1879, %v2021
        %2023 = vmatmul.bf16.gmra.mxu0 %v1052
        %v2024 = vpop.f32.mrf.mxu0
        %v2025 = vadd.f32 %v1882, %v2024
        %v2026 = vpop.f32.mrf.mxu0
        %v2027 = vadd.f32 %v1884, %v2026
        %2028 = vmatmul.bf16.gmra.mxu0 %v1053
        %v2029 = vpop.f32.mrf.mxu0
        %v2030 = vpop.f32.mrf.mxu0
        %2031 = vdwg.mxu0
        %s2032 = scalar_lea.vmem [#allocation10], 320
        %v2033 = vld [vmem:[%s2032] sm:$0xf]
        %v2034 = vld [vmem:[%s2032 + $0x4] sm:$0xf]
        %v2035 = vld [vmem:[%s2032 + $0x8] sm:$0xf]
        %v2036 = vld [vmem:[%s2032 + $0xc] sm:$0xf]
        %v2037 = vld [vmem:[%s2032 + $0x10] sm:$0xf]
        %v2038 = vld [vmem:[%s2032 + $0x14] sm:$0xf]
        %v2039 = vld [vmem:[%s2032 + $0x18] sm:$0xf]
        %v2040 = vld [vmem:[%s2032 + $0x1c] sm:$0xf]
        %v2041 = vld [vmem:[%s2032 + $0x20] sm:$0xf]
        %v2042 = vld [vmem:[%s2032 + $0x24] sm:$0xf]
        %v2043 = vld [vmem:[%s2032 + $0x28] sm:$0xf]
        %v2044 = vld [vmem:[%s2032 + $0x2c] sm:$0xf]
        %v2045 = vld [vmem:[%s2032 + $0x30] sm:$0xf]
        %v2046 = vld [vmem:[%s2032 + $0x34] sm:$0xf]
        %v2047 = vld [vmem:[%s2032 + $0x38] sm:$0xf]
        %v2048 = vld [vmem:[%s2032 + $0x3c] sm:$0xf]
        %v2065 = vunpack.c.l.b16 %v2033
        %v2066 = vunpack.c.l.b16 %v2034
        %v2067 = vunpack.c.l.b16 %v2035
        %v2068 = vunpack.c.l.b16 %v2036
        %v2069 = vunpack.c.l.b16 %v2037
        %v2070 = vunpack.c.l.b16 %v2038
        %v2071 = vunpack.c.l.b16 %v2039
        %v2072 = vunpack.c.l.b16 %v2040
        %v2073 = vunpack.c.l.b16 %v2041
        %v2074 = vunpack.c.l.b16 %v2042
        %v2075 = vunpack.c.l.b16 %v2043
        %v2076 = vunpack.c.l.b16 %v2044
        %v2077 = vunpack.c.l.b16 %v2045
        %v2078 = vunpack.c.l.b16 %v2046
        %v2079 = vunpack.c.l.b16 %v2047
        %v2080 = vunpack.c.l.b16 %v2048
        %v2081 = vpack.c.b16 %v2066, %v2065
        %v2082 = vpack.c.b16 %v2068, %v2067
        %v2083 = vpack.c.b16 %v2070, %v2069
        %v2084 = vpack.c.b16 %v2072, %v2071
        %v2085 = vpack.c.b16 %v2074, %v2073
        %v2086 = vpack.c.b16 %v2076, %v2075
        %v2087 = vpack.c.b16 %v2078, %v2077
        %v2088 = vpack.c.b16 %v2080, %v2079
        %2097 = vmatpush.bf16.msra.mxu0 %v2088
        %2098 = vmatpush.bf16.msra.mxu0 %v2087
        %2099 = vmatpush.bf16.msra.mxu0 %v2086
        %2100 = vmatpush.bf16.msra.mxu0 %v2085
        %2101 = vmatpush.bf16.msra.mxu0 %v2084
        %2102 = vmatpush.bf16.msra.mxu0 %v2083
        %2103 = vmatpush.bf16.msra.mxu0 %v2082
        %2104 = vmatpush.bf16.msra.mxu0 %v2081
        %2105 = vmatmul.bf16.gmra.mxu0 %v1165
        %v2106 = vpop.f32.mrf.mxu0
        %v2107 = vpop.f32.mrf.mxu0
        %2108 = vmatmul.bf16.gmra.mxu0 %v1166
        %v2109 = vpop.f32.mrf.mxu0
        %v2110 = vadd.f32 0.0, %v2109
        %v2111 = vpop.f32.mrf.mxu0
        %v2112 = vadd.f32 0.0, %v2111
        %2113 = vmatmul.bf16.gmra.mxu0 %v1167
        %v2114 = vpop.f32.mrf.mxu0
        %v2115 = vadd.f32 0.0, %v2114
        %v2116 = vpop.f32.mrf.mxu0
        %v2117 = vadd.f32 0.0, %v2116
        %2118 = vmatmul.bf16.gmra.mxu0 %v1168
        %v2119 = vpop.f32.mrf.mxu0
        %v2120 = vadd.f32 0.0, %v2119
        %v2121 = vpop.f32.mrf.mxu0
        %v2122 = vadd.f32 0.0, %v2121
        %2123 = vmatmul.bf16.gmra.mxu0 %v1169
        %v2124 = vpop.f32.mrf.mxu0
        %v2125 = vadd.f32 0.0, %v2124
        %v2126 = vpop.f32.mrf.mxu0
        %v2127 = vadd.f32 0.0, %v2126
        %2128 = vmatmul.bf16.gmra.mxu0 %v1170
        %v2129 = vpop.f32.mrf.mxu0
        %v2130 = vadd.f32 0.0, %v2129
        %v2131 = vpop.f32.mrf.mxu0
        %v2132 = vadd.f32 0.0, %v2131
        %2133 = vmatmul.bf16.gmra.mxu0 %v1171
        %v2134 = vpop.f32.mrf.mxu0
        %v2135 = vadd.f32 0.0, %v2134
        %v2136 = vpop.f32.mrf.mxu0
        %v2137 = vadd.f32 0.0, %v2136
        %2138 = vmatmul.bf16.gmra.mxu0 %v1172
        %v2139 = vpop.f32.mrf.mxu0
        %v2140 = vadd.f32 0.0, %v2139
        %v2141 = vpop.f32.mrf.mxu0
        %v2142 = vadd.f32 0.0, %v2141
        %2143 = vmatmul.bf16.gmra.mxu0 %v1173
        %v2144 = vpop.f32.mrf.mxu0
        %v2145 = vadd.f32 0.0, %v2144
        %v2146 = vpop.f32.mrf.mxu0
        %v2147 = vadd.f32 0.0, %v2146
        %2148 = vmatmul.bf16.gmra.mxu0 %v1174
        %v2149 = vpop.f32.mrf.mxu0
        %v2150 = vadd.f32 0.0, %v2149
        %v2151 = vpop.f32.mrf.mxu0
        %v2152 = vadd.f32 0.0, %v2151
        %2153 = vmatmul.bf16.gmra.mxu0 %v1175
        %v2154 = vpop.f32.mrf.mxu0
        %v2155 = vadd.f32 0.0, %v2154
        %v2156 = vpop.f32.mrf.mxu0
        %v2157 = vadd.f32 0.0, %v2156
        %2158 = vmatmul.bf16.gmra.mxu0 %v1176
        %v2159 = vpop.f32.mrf.mxu0
        %v2160 = vadd.f32 0.0, %v2159
        %v2161 = vpop.f32.mrf.mxu0
        %v2162 = vadd.f32 0.0, %v2161
        %2163 = vmatmul.bf16.gmra.mxu0 %v1177
        %v2164 = vpop.f32.mrf.mxu0
        %v2165 = vadd.f32 0.0, %v2164
        %v2166 = vpop.f32.mrf.mxu0
        %v2167 = vadd.f32 0.0, %v2166
        %2168 = vmatmul.bf16.gmra.mxu0 %v1178
        %v2169 = vpop.f32.mrf.mxu0
        %v2170 = vadd.f32 0.0, %v2169
        %v2171 = vpop.f32.mrf.mxu0
        %v2172 = vadd.f32 0.0, %v2171
        %2173 = vmatmul.bf16.gmra.mxu0 %v1179
        %v2174 = vpop.f32.mrf.mxu0
        %v2175 = vadd.f32 0.0, %v2174
        %v2176 = vpop.f32.mrf.mxu0
        %v2177 = vadd.f32 0.0, %v2176
        %2178 = vmatmul.bf16.gmra.mxu0 %v1180
        %v2179 = vpop.f32.mrf.mxu0
        %v2180 = vadd.f32 0.0, %v2179
        %v2181 = vpop.f32.mrf.mxu0
        %v2182 = vadd.f32 0.0, %v2181
        %2183 = vmatmul.bf16.gmra.mxu0 %v1181
        %v2184 = vpop.f32.mrf.mxu0
        %v2185 = vadd.f32 0.0, %v2184
        %v2186 = vpop.f32.mrf.mxu0
        %v2187 = vadd.f32 0.0, %v2186
        %2188 = vmatmul.bf16.gmra.mxu0 %v1182
        %v2189 = vpop.f32.mrf.mxu0
        %v2190 = vpop.f32.mrf.mxu0
        %2191 = vdwg.mxu0
        %v2192 = vadd.f32 %v1950, %v2110
        %v2193 = vadd.f32 %v1952, %v2112
        %v2194 = vadd.f32 %v1955, %v2115
        %v2195 = vadd.f32 %v1957, %v2117
        %v2196 = vadd.f32 %v1960, %v2120
        %v2197 = vadd.f32 %v1962, %v2122
        %v2198 = vadd.f32 %v1965, %v2125
        %v2199 = vadd.f32 %v1967, %v2127
        %v2200 = vadd.f32 %v1970, %v2130
        %v2201 = vadd.f32 %v1972, %v2132
        %v2202 = vadd.f32 %v1975, %v2135
        %v2203 = vadd.f32 %v1977, %v2137
        %v2204 = vadd.f32 %v1980, %v2140
        %v2205 = vadd.f32 %v1982, %v2142
        %v2206 = vadd.f32 %v1985, %v2145
        %v2207 = vadd.f32 %v1987, %v2147
        %v2208 = vadd.f32 %v1990, %v2150
        %v2209 = vadd.f32 %v1992, %v2152
        %v2210 = vadd.f32 %v1995, %v2155
        %v2211 = vadd.f32 %v1997, %v2157
        %v2212 = vadd.f32 %v2000, %v2160
        %v2213 = vadd.f32 %v2002, %v2162
        %v2214 = vadd.f32 %v2005, %v2165
        %v2215 = vadd.f32 %v2007, %v2167
        %v2216 = vadd.f32 %v2010, %v2170
        %v2217 = vadd.f32 %v2012, %v2172
        %v2218 = vadd.f32 %v2015, %v2175
        %v2219 = vadd.f32 %v2017, %v2177
        %v2220 = vadd.f32 %v2020, %v2180
        %v2221 = vadd.f32 %v2022, %v2182
        %v2222 = vadd.f32 %v2025, %v2185
        %v2223 = vadd.f32 %v2027, %v2187
        %v2224 = vadd.f32 %v1680, %v2192
        %v2225 = vadd.f32 %v1681, %v2193
        %v2226 = vadd.f32 %v1682, %v2194
        %v2227 = vadd.f32 %v1683, %v2195
        %v2228 = vadd.f32 %v1684, %v2196
        %v2229 = vadd.f32 %v1685, %v2197
        %v2230 = vadd.f32 %v1686, %v2198
        %v2231 = vadd.f32 %v1687, %v2199
        %v2232 = vadd.f32 %v1688, %v2200
        %v2233 = vadd.f32 %v1689, %v2201
        %v2234 = vadd.f32 %v1690, %v2202
        %v2235 = vadd.f32 %v1691, %v2203
        %v2236 = vadd.f32 %v1692, %v2204
        %v2237 = vadd.f32 %v1693, %v2205
        %v2238 = vadd.f32 %v1694, %v2206
        %v2239 = vadd.f32 %v1695, %v2207
        %v2240 = vadd.f32 %v1696, %v2208
        %v2241 = vadd.f32 %v1697, %v2209
        %v2242 = vadd.f32 %v1698, %v2210
        %v2243 = vadd.f32 %v1699, %v2211
        %v2244 = vadd.f32 %v1700, %v2212
        %v2245 = vadd.f32 %v1701, %v2213
        %v2246 = vadd.f32 %v1702, %v2214
        %v2247 = vadd.f32 %v1703, %v2215
        %v2248 = vadd.f32 %v1704, %v2216
        %v2249 = vadd.f32 %v1705, %v2217
        %v2250 = vadd.f32 %v1706, %v2218
        %v2251 = vadd.f32 %v1707, %v2219
        %v2252 = vadd.f32 %v1708, %v2220
        %v2253 = vadd.f32 %v1709, %v2221
        %v2254 = vadd.f32 %v1710, %v2222
        %v2255 = vadd.f32 %v1711, %v2223
        %s2256 = scalar_lea.vmem [#allocation10], 384
        %v2257 = vld [vmem:[%s2256] sm:$0xf]
        %v2258 = vld [vmem:[%s2256 + $0x4] sm:$0xf]
        %v2259 = vld [vmem:[%s2256 + $0x8] sm:$0xf]
        %v2260 = vld [vmem:[%s2256 + $0xc] sm:$0xf]
        %v2261 = vld [vmem:[%s2256 + $0x10] sm:$0xf]
        %v2262 = vld [vmem:[%s2256 + $0x14] sm:$0xf]
        %v2263 = vld [vmem:[%s2256 + $0x18] sm:$0xf]
        %v2264 = vld [vmem:[%s2256 + $0x1c] sm:$0xf]
        %v2265 = vld [vmem:[%s2256 + $0x20] sm:$0xf]
        %v2266 = vld [vmem:[%s2256 + $0x24] sm:$0xf]
        %v2267 = vld [vmem:[%s2256 + $0x28] sm:$0xf]
        %v2268 = vld [vmem:[%s2256 + $0x2c] sm:$0xf]
        %v2269 = vld [vmem:[%s2256 + $0x30] sm:$0xf]
        %v2270 = vld [vmem:[%s2256 + $0x34] sm:$0xf]
        %v2271 = vld [vmem:[%s2256 + $0x38] sm:$0xf]
        %v2272 = vld [vmem:[%s2256 + $0x3c] sm:$0xf]
        %s2273 = scalar_lea.vmem [#allocation10], 448
        %v2274 = vld [vmem:[%s2273] sm:$0xf]
        %v2275 = vld [vmem:[%s2273 + $0x4] sm:$0xf]
        %v2276 = vld [vmem:[%s2273 + $0x8] sm:$0xf]
        %v2277 = vld [vmem:[%s2273 + $0xc] sm:$0xf]
        %v2278 = vld [vmem:[%s2273 + $0x10] sm:$0xf]
        %v2279 = vld [vmem:[%s2273 + $0x14] sm:$0xf]
        %v2280 = vld [vmem:[%s2273 + $0x18] sm:$0xf]
        %v2281 = vld [vmem:[%s2273 + $0x1c] sm:$0xf]
        %v2282 = vld [vmem:[%s2273 + $0x20] sm:$0xf]
        %v2283 = vld [vmem:[%s2273 + $0x24] sm:$0xf]
        %v2284 = vld [vmem:[%s2273 + $0x28] sm:$0xf]
        %v2285 = vld [vmem:[%s2273 + $0x2c] sm:$0xf]
        %v2286 = vld [vmem:[%s2273 + $0x30] sm:$0xf]
        %v2287 = vld [vmem:[%s2273 + $0x34] sm:$0xf]
        %v2288 = vld [vmem:[%s2273 + $0x38] sm:$0xf]
        %v2289 = vld [vmem:[%s2273 + $0x3c] sm:$0xf]
        %v2306 = vunpack.c.l.b16 %v2274
        %v2307 = vunpack.c.l.b16 %v2275
        %v2308 = vunpack.c.l.b16 %v2276
        %v2309 = vunpack.c.l.b16 %v2277
        %v2310 = vunpack.c.l.b16 %v2278
        %v2311 = vunpack.c.l.b16 %v2279
        %v2312 = vunpack.c.l.b16 %v2280
        %v2313 = vunpack.c.l.b16 %v2281
        %v2314 = vunpack.c.l.b16 %v2282
        %v2315 = vunpack.c.l.b16 %v2283
        %v2316 = vunpack.c.l.b16 %v2284
        %v2317 = vunpack.c.l.b16 %v2285
        %v2318 = vunpack.c.l.b16 %v2286
        %v2319 = vunpack.c.l.b16 %v2287
        %v2320 = vunpack.c.l.b16 %v2288
        %v2321 = vunpack.c.l.b16 %v2289
        %v2322 = vpack.c.b16 %v2307, %v2306
        %v2323 = vpack.c.b16 %v2309, %v2308
        %v2324 = vpack.c.b16 %v2311, %v2310
        %v2325 = vpack.c.b16 %v2313, %v2312
        %v2326 = vpack.c.b16 %v2315, %v2314
        %v2327 = vpack.c.b16 %v2317, %v2316
        %v2328 = vpack.c.b16 %v2319, %v2318
        %v2329 = vpack.c.b16 %v2321, %v2320
        %2338 = vmatpush.bf16.msra.mxu0 %v2329
        %2339 = vmatpush.bf16.msra.mxu0 %v2328
        %2340 = vmatpush.bf16.msra.mxu0 %v2327
        %2341 = vmatpush.bf16.msra.mxu0 %v2326
        %2342 = vmatpush.bf16.msra.mxu0 %v2325
        %2343 = vmatpush.bf16.msra.mxu0 %v2324
        %2344 = vmatpush.bf16.msra.mxu0 %v2323
        %2345 = vmatpush.bf16.msra.mxu0 %v2322
        %2346 = vmatmul.bf16.gmra.mxu0 %v1183
        %v2347 = vpop.f32.mrf.mxu0
        %v2348 = vpop.f32.mrf.mxu0
        %2349 = vmatmul.bf16.gmra.mxu0 %v1184
        %v2350 = vpop.f32.mrf.mxu0
        %v2351 = vpop.f32.mrf.mxu0
        %2352 = vmatmul.bf16.gmra.mxu0 %v1185
        %v2353 = vpop.f32.mrf.mxu0
        %v2354 = vadd.f32 0.0, %v2353
        %v2355 = vpop.f32.mrf.mxu0
        %v2356 = vadd.f32 0.0, %v2355
        %2357 = vmatmul.bf16.gmra.mxu0 %v1186
        %v2358 = vpop.f32.mrf.mxu0
        %v2359 = vadd.f32 0.0, %v2358
        %v2360 = vpop.f32.mrf.mxu0
        %v2361 = vadd.f32 0.0, %v2360
        %2362 = vmatmul.bf16.gmra.mxu0 %v1187
        %v2363 = vpop.f32.mrf.mxu0
        %v2364 = vadd.f32 0.0, %v2363
        %v2365 = vpop.f32.mrf.mxu0
        %v2366 = vadd.f32 0.0, %v2365
        %2367 = vmatmul.bf16.gmra.mxu0 %v1188
        %v2368 = vpop.f32.mrf.mxu0
        %v2369 = vadd.f32 0.0, %v2368
        %v2370 = vpop.f32.mrf.mxu0
        %v2371 = vadd.f32 0.0, %v2370
        %2372 = vmatmul.bf16.gmra.mxu0 %v1189
        %v2373 = vpop.f32.mrf.mxu0
        %v2374 = vadd.f32 0.0, %v2373
        %v2375 = vpop.f32.mrf.mxu0
        %v2376 = vadd.f32 0.0, %v2375
        %2377 = vmatmul.bf16.gmra.mxu0 %v1190
        %v2378 = vpop.f32.mrf.mxu0
        %v2379 = vadd.f32 0.0, %v2378
        %v2380 = vpop.f32.mrf.mxu0
        %v2381 = vadd.f32 0.0, %v2380
        %2382 = vmatmul.bf16.gmra.mxu0 %v1191
        %v2383 = vpop.f32.mrf.mxu0
        %v2384 = vadd.f32 0.0, %v2383
        %v2385 = vpop.f32.mrf.mxu0
        %v2386 = vadd.f32 0.0, %v2385
        %2387 = vmatmul.bf16.gmra.mxu0 %v1192
        %v2388 = vpop.f32.mrf.mxu0
        %v2389 = vadd.f32 0.0, %v2388
        %v2390 = vpop.f32.mrf.mxu0
        %v2391 = vadd.f32 0.0, %v2390
        %2392 = vmatmul.bf16.gmra.mxu0 %v1193
        %v2393 = vpop.f32.mrf.mxu0
        %v2394 = vadd.f32 0.0, %v2393
        %v2395 = vpop.f32.mrf.mxu0
        %v2396 = vadd.f32 0.0, %v2395
        %2397 = vmatmul.bf16.gmra.mxu0 %v1194
        %v2398 = vpop.f32.mrf.mxu0
        %v2399 = vadd.f32 0.0, %v2398
        %v2400 = vpop.f32.mrf.mxu0
        %v2401 = vadd.f32 0.0, %v2400
        %2402 = vmatmul.bf16.gmra.mxu0 %v1195
        %v2403 = vpop.f32.mrf.mxu0
        %v2404 = vadd.f32 0.0, %v2403
        %v2405 = vpop.f32.mrf.mxu0
        %v2406 = vadd.f32 0.0, %v2405
        %2407 = vmatmul.bf16.gmra.mxu0 %v1196
        %v2408 = vpop.f32.mrf.mxu0
        %v2409 = vadd.f32 0.0, %v2408
        %v2410 = vpop.f32.mrf.mxu0
        %v2411 = vadd.f32 0.0, %v2410
        %2412 = vmatmul.bf16.gmra.mxu0 %v1197
        %v2413 = vpop.f32.mrf.mxu0
        %v2414 = vadd.f32 0.0, %v2413
        %v2415 = vpop.f32.mrf.mxu0
        %v2416 = vadd.f32 0.0, %v2415
        %2417 = vmatmul.bf16.gmra.mxu0 %v1198
        %v2418 = vpop.f32.mrf.mxu0
        %v2419 = vadd.f32 0.0, %v2418
        %v2420 = vpop.f32.mrf.mxu0
        %v2421 = vadd.f32 0.0, %v2420
        %2422 = vmatmul.bf16.gmra.mxu0 %v1199
        %v2423 = vpop.f32.mrf.mxu0
        %v2424 = vadd.f32 0.0, %v2423
        %v2425 = vpop.f32.mrf.mxu0
        %v2426 = vadd.f32 0.0, %v2425
        %2427 = vmatmul.bf16.gmra.mxu0 %v1200
        %v2428 = vpop.f32.mrf.mxu0
        %v2429 = vadd.f32 0.0, %v2428
        %v2430 = vpop.f32.mrf.mxu0
        %v2431 = vadd.f32 0.0, %v2430
        %2432 = vdwg.mxu0
        %v2449 = vunpack.c.l.b16 %v2257
        %v2450 = vunpack.c.l.b16 %v2258
        %v2451 = vunpack.c.l.b16 %v2259
        %v2452 = vunpack.c.l.b16 %v2260
        %v2453 = vunpack.c.l.b16 %v2261
        %v2454 = vunpack.c.l.b16 %v2262
        %v2455 = vunpack.c.l.b16 %v2263
        %v2456 = vunpack.c.l.b16 %v2264
        %v2457 = vunpack.c.l.b16 %v2265
        %v2458 = vunpack.c.l.b16 %v2266
        %v2459 = vunpack.c.l.b16 %v2267
        %v2460 = vunpack.c.l.b16 %v2268
        %v2461 = vunpack.c.l.b16 %v2269
        %v2462 = vunpack.c.l.b16 %v2270
        %v2463 = vunpack.c.l.b16 %v2271
        %v2464 = vunpack.c.l.b16 %v2272
        %v2465 = vpack.c.b16 %v2450, %v2449
        %v2466 = vpack.c.b16 %v2452, %v2451
        %v2467 = vpack.c.b16 %v2454, %v2453
        %v2468 = vpack.c.b16 %v2456, %v2455
        %v2469 = vpack.c.b16 %v2458, %v2457
        %v2470 = vpack.c.b16 %v2460, %v2459
        %v2471 = vpack.c.b16 %v2462, %v2461
        %v2472 = vpack.c.b16 %v2464, %v2463
        %2481 = vmatpush.bf16.msra.mxu0 %v2472
        %2482 = vmatpush.bf16.msra.mxu0 %v2471
        %2483 = vmatpush.bf16.msra.mxu0 %v2470
        %2484 = vmatpush.bf16.msra.mxu0 %v2469
        %2485 = vmatpush.bf16.msra.mxu0 %v2468
        %2486 = vmatpush.bf16.msra.mxu0 %v2467
        %2487 = vmatpush.bf16.msra.mxu0 %v2466
        %2488 = vmatpush.bf16.msra.mxu0 %v2465
        %2489 = vmatmul.bf16.gmra.mxu0 %v1036
        %v2490 = vpop.f32.mrf.mxu0
        %v2491 = vpop.f32.mrf.mxu0
        %2492 = vmatmul.bf16.gmra.mxu0 %v1037
        %v2493 = vpop.f32.mrf.mxu0
        %v2494 = vpop.f32.mrf.mxu0
        %2495 = vmatmul.bf16.gmra.mxu0 %v1038
        %v2496 = vpop.f32.mrf.mxu0
        %v2497 = vadd.f32 %v2354, %v2496
        %v2498 = vpop.f32.mrf.mxu0
        %v2499 = vadd.f32 %v2356, %v2498
        %2500 = vmatmul.bf16.gmra.mxu0 %v1039
        %v2501 = vpop.f32.mrf.mxu0
        %v2502 = vadd.f32 %v2359, %v2501
        %v2503 = vpop.f32.mrf.mxu0
        %v2504 = vadd.f32 %v2361, %v2503
        %2505 = vmatmul.bf16.gmra.mxu0 %v1040
        %v2506 = vpop.f32.mrf.mxu0
        %v2507 = vadd.f32 %v2364, %v2506
        %v2508 = vpop.f32.mrf.mxu0
        %v2509 = vadd.f32 %v2366, %v2508
        %2510 = vmatmul.bf16.gmra.mxu0 %v1041
        %v2511 = vpop.f32.mrf.mxu0
        %v2512 = vadd.f32 %v2369, %v2511
        %v2513 = vpop.f32.mrf.mxu0
        %v2514 = vadd.f32 %v2371, %v2513
        %2515 = vmatmul.bf16.gmra.mxu0 %v1042
        %v2516 = vpop.f32.mrf.mxu0
        %v2517 = vadd.f32 %v2374, %v2516
        %v2518 = vpop.f32.mrf.mxu0
        %v2519 = vadd.f32 %v2376, %v2518
        %2520 = vmatmul.bf16.gmra.mxu0 %v1043
        %v2521 = vpop.f32.mrf.mxu0
        %v2522 = vadd.f32 %v2379, %v2521
        %v2523 = vpop.f32.mrf.mxu0
        %v2524 = vadd.f32 %v2381, %v2523
        %2525 = vmatmul.bf16.gmra.mxu0 %v1044
        %v2526 = vpop.f32.mrf.mxu0
        %v2527 = vadd.f32 %v2384, %v2526
        %v2528 = vpop.f32.mrf.mxu0
        %v2529 = vadd.f32 %v2386, %v2528
        %2530 = vmatmul.bf16.gmra.mxu0 %v1045
        %v2531 = vpop.f32.mrf.mxu0
        %v2532 = vadd.f32 %v2389, %v2531
        %v2533 = vpop.f32.mrf.mxu0
        %v2534 = vadd.f32 %v2391, %v2533
        %2535 = vmatmul.bf16.gmra.mxu0 %v1046
        %v2536 = vpop.f32.mrf.mxu0
        %v2537 = vadd.f32 %v2394, %v2536
        %v2538 = vpop.f32.mrf.mxu0
        %v2539 = vadd.f32 %v2396, %v2538
        %2540 = vmatmul.bf16.gmra.mxu0 %v1047
        %v2541 = vpop.f32.mrf.mxu0
        %v2542 = vadd.f32 %v2399, %v2541
        %v2543 = vpop.f32.mrf.mxu0
        %v2544 = vadd.f32 %v2401, %v2543
        %2545 = vmatmul.bf16.gmra.mxu0 %v1048
        %v2546 = vpop.f32.mrf.mxu0
        %v2547 = vadd.f32 %v2404, %v2546
        %v2548 = vpop.f32.mrf.mxu0
        %v2549 = vadd.f32 %v2406, %v2548
        %2550 = vmatmul.bf16.gmra.mxu0 %v1049
        %v2551 = vpop.f32.mrf.mxu0
        %v2552 = vadd.f32 %v2409, %v2551
        %v2553 = vpop.f32.mrf.mxu0
        %v2554 = vadd.f32 %v2411, %v2553
        %2555 = vmatmul.bf16.gmra.mxu0 %v1050
        %v2556 = vpop.f32.mrf.mxu0
        %v2557 = vadd.f32 %v2414, %v2556
        %v2558 = vpop.f32.mrf.mxu0
        %v2559 = vadd.f32 %v2416, %v2558
        %2560 = vmatmul.bf16.gmra.mxu0 %v1051
        %v2561 = vpop.f32.mrf.mxu0
        %v2562 = vadd.f32 %v2419, %v2561
        %v2563 = vpop.f32.mrf.mxu0
        %v2564 = vadd.f32 %v2421, %v2563
        %2565 = vmatmul.bf16.gmra.mxu0 %v1052
        %v2566 = vpop.f32.mrf.mxu0
        %v2567 = vadd.f32 %v2424, %v2566
        %v2568 = vpop.f32.mrf.mxu0
        %v2569 = vadd.f32 %v2426, %v2568
        %2570 = vmatmul.bf16.gmra.mxu0 %v1053
        %v2571 = vpop.f32.mrf.mxu0
        %v2572 = vadd.f32 %v2429, %v2571
        %v2573 = vpop.f32.mrf.mxu0
        %v2574 = vadd.f32 %v2431, %v2573
        %2575 = vdwg.mxu0
        %s2576 = scalar_lea.vmem [#allocation10], 512
        %v2577 = vld [vmem:[%s2576] sm:$0xf]
        %v2578 = vld [vmem:[%s2576 + $0x4] sm:$0xf]
        %v2579 = vld [vmem:[%s2576 + $0x8] sm:$0xf]
        %v2580 = vld [vmem:[%s2576 + $0xc] sm:$0xf]
        %v2581 = vld [vmem:[%s2576 + $0x10] sm:$0xf]
        %v2582 = vld [vmem:[%s2576 + $0x14] sm:$0xf]
        %v2583 = vld [vmem:[%s2576 + $0x18] sm:$0xf]
        %v2584 = vld [vmem:[%s2576 + $0x1c] sm:$0xf]
        %v2585 = vld [vmem:[%s2576 + $0x20] sm:$0xf]
        %v2586 = vld [vmem:[%s2576 + $0x24] sm:$0xf]
        %v2587 = vld [vmem:[%s2576 + $0x28] sm:$0xf]
        %v2588 = vld [vmem:[%s2576 + $0x2c] sm:$0xf]
        %v2589 = vld [vmem:[%s2576 + $0x30] sm:$0xf]
        %v2590 = vld [vmem:[%s2576 + $0x34] sm:$0xf]
        %v2591 = vld [vmem:[%s2576 + $0x38] sm:$0xf]
        %v2592 = vld [vmem:[%s2576 + $0x3c] sm:$0xf]
        %v2609 = vunpack.c.l.b16 %v2577
        %v2610 = vunpack.c.l.b16 %v2578
        %v2611 = vunpack.c.l.b16 %v2579
        %v2612 = vunpack.c.l.b16 %v2580
        %v2613 = vunpack.c.l.b16 %v2581
        %v2614 = vunpack.c.l.b16 %v2582
        %v2615 = vunpack.c.l.b16 %v2583
        %v2616 = vunpack.c.l.b16 %v2584
        %v2617 = vunpack.c.l.b16 %v2585
        %v2618 = vunpack.c.l.b16 %v2586
        %v2619 = vunpack.c.l.b16 %v2587
        %v2620 = vunpack.c.l.b16 %v2588
        %v2621 = vunpack.c.l.b16 %v2589
        %v2622 = vunpack.c.l.b16 %v2590
        %v2623 = vunpack.c.l.b16 %v2591
        %v2624 = vunpack.c.l.b16 %v2592
        %v2625 = vpack.c.b16 %v2610, %v2609
        %v2626 = vpack.c.b16 %v2612, %v2611
        %v2627 = vpack.c.b16 %v2614, %v2613
        %v2628 = vpack.c.b16 %v2616, %v2615
        %v2629 = vpack.c.b16 %v2618, %v2617
        %v2630 = vpack.c.b16 %v2620, %v2619
        %v2631 = vpack.c.b16 %v2622, %v2621
        %v2632 = vpack.c.b16 %v2624, %v2623
        %2641 = vmatpush.bf16.msra.mxu0 %v2632
        %2642 = vmatpush.bf16.msra.mxu0 %v2631
        %2643 = vmatpush.bf16.msra.mxu0 %v2630
        %2644 = vmatpush.bf16.msra.mxu0 %v2629
        %2645 = vmatpush.bf16.msra.mxu0 %v2628
        %2646 = vmatpush.bf16.msra.mxu0 %v2627
        %2647 = vmatpush.bf16.msra.mxu0 %v2626
        %2648 = vmatpush.bf16.msra.mxu0 %v2625
        %2649 = vmatmul.bf16.gmra.mxu0 %v1165
        %v2650 = vpop.f32.mrf.mxu0
        %v2651 = vpop.f32.mrf.mxu0
        %2652 = vmatmul.bf16.gmra.mxu0 %v1166
        %v2653 = vpop.f32.mrf.mxu0
        %v2654 = vpop.f32.mrf.mxu0
        %2655 = vmatmul.bf16.gmra.mxu0 %v1167
        %v2656 = vpop.f32.mrf.mxu0
        %v2657 = vadd.f32 0.0, %v2656
        %v2658 = vpop.f32.mrf.mxu0
        %v2659 = vadd.f32 0.0, %v2658
        %2660 = vmatmul.bf16.gmra.mxu0 %v1168
        %v2661 = vpop.f32.mrf.mxu0
        %v2662 = vadd.f32 0.0, %v2661
        %v2663 = vpop.f32.mrf.mxu0
        %v2664 = vadd.f32 0.0, %v2663
        %2665 = vmatmul.bf16.gmra.mxu0 %v1169
        %v2666 = vpop.f32.mrf.mxu0
        %v2667 = vadd.f32 0.0, %v2666
        %v2668 = vpop.f32.mrf.mxu0
        %v2669 = vadd.f32 0.0, %v2668
        %2670 = vmatmul.bf16.gmra.mxu0 %v1170
        %v2671 = vpop.f32.mrf.mxu0
        %v2672 = vadd.f32 0.0, %v2671
        %v2673 = vpop.f32.mrf.mxu0
        %v2674 = vadd.f32 0.0, %v2673
        %2675 = vmatmul.bf16.gmra.mxu0 %v1171
        %v2676 = vpop.f32.mrf.mxu0
        %v2677 = vadd.f32 0.0, %v2676
        %v2678 = vpop.f32.mrf.mxu0
        %v2679 = vadd.f32 0.0, %v2678
        %2680 = vmatmul.bf16.gmra.mxu0 %v1172
        %v2681 = vpop.f32.mrf.mxu0
        %v2682 = vadd.f32 0.0, %v2681
        %v2683 = vpop.f32.mrf.mxu0
        %v2684 = vadd.f32 0.0, %v2683
        %2685 = vmatmul.bf16.gmra.mxu0 %v1173
        %v2686 = vpop.f32.mrf.mxu0
        %v2687 = vadd.f32 0.0, %v2686
        %v2688 = vpop.f32.mrf.mxu0
        %v2689 = vadd.f32 0.0, %v2688
        %2690 = vmatmul.bf16.gmra.mxu0 %v1174
        %v2691 = vpop.f32.mrf.mxu0
        %v2692 = vadd.f32 0.0, %v2691
        %v2693 = vpop.f32.mrf.mxu0
        %v2694 = vadd.f32 0.0, %v2693
        %2695 = vmatmul.bf16.gmra.mxu0 %v1175
        %v2696 = vpop.f32.mrf.mxu0
        %v2697 = vadd.f32 0.0, %v2696
        %v2698 = vpop.f32.mrf.mxu0
        %v2699 = vadd.f32 0.0, %v2698
        %2700 = vmatmul.bf16.gmra.mxu0 %v1176
        %v2701 = vpop.f32.mrf.mxu0
        %v2702 = vadd.f32 0.0, %v2701
        %v2703 = vpop.f32.mrf.mxu0
        %v2704 = vadd.f32 0.0, %v2703
        %2705 = vmatmul.bf16.gmra.mxu0 %v1177
        %v2706 = vpop.f32.mrf.mxu0
        %v2707 = vadd.f32 0.0, %v2706
        %v2708 = vpop.f32.mrf.mxu0
        %v2709 = vadd.f32 0.0, %v2708
        %2710 = vmatmul.bf16.gmra.mxu0 %v1178
        %v2711 = vpop.f32.mrf.mxu0
        %v2712 = vadd.f32 0.0, %v2711
        %v2713 = vpop.f32.mrf.mxu0
        %v2714 = vadd.f32 0.0, %v2713
        %2715 = vmatmul.bf16.gmra.mxu0 %v1179
        %v2716 = vpop.f32.mrf.mxu0
        %v2717 = vadd.f32 0.0, %v2716
        %v2718 = vpop.f32.mrf.mxu0
        %v2719 = vadd.f32 0.0, %v2718
        %2720 = vmatmul.bf16.gmra.mxu0 %v1180
        %v2721 = vpop.f32.mrf.mxu0
        %v2722 = vadd.f32 0.0, %v2721
        %v2723 = vpop.f32.mrf.mxu0
        %v2724 = vadd.f32 0.0, %v2723
        %2725 = vmatmul.bf16.gmra.mxu0 %v1181
        %v2726 = vpop.f32.mrf.mxu0
        %v2727 = vadd.f32 0.0, %v2726
        %v2728 = vpop.f32.mrf.mxu0
        %v2729 = vadd.f32 0.0, %v2728
        %2730 = vmatmul.bf16.gmra.mxu0 %v1182
        %v2731 = vpop.f32.mrf.mxu0
        %v2732 = vadd.f32 0.0, %v2731
        %v2733 = vpop.f32.mrf.mxu0
        %v2734 = vadd.f32 0.0, %v2733
        %2735 = vdwg.mxu0
        %v2736 = vadd.f32 %v2497, %v2657
        %v2737 = vadd.f32 %v2499, %v2659
        %v2738 = vadd.f32 %v2502, %v2662
        %v2739 = vadd.f32 %v2504, %v2664
        %v2740 = vadd.f32 %v2507, %v2667
        %v2741 = vadd.f32 %v2509, %v2669
        %v2742 = vadd.f32 %v2512, %v2672
        %v2743 = vadd.f32 %v2514, %v2674
        %v2744 = vadd.f32 %v2517, %v2677
        %v2745 = vadd.f32 %v2519, %v2679
        %v2746 = vadd.f32 %v2522, %v2682
        %v2747 = vadd.f32 %v2524, %v2684
        %v2748 = vadd.f32 %v2527, %v2687
        %v2749 = vadd.f32 %v2529, %v2689
        %v2750 = vadd.f32 %v2532, %v2692
        %v2751 = vadd.f32 %v2534, %v2694
        %v2752 = vadd.f32 %v2537, %v2697
        %v2753 = vadd.f32 %v2539, %v2699
        %v2754 = vadd.f32 %v2542, %v2702
        %v2755 = vadd.f32 %v2544, %v2704
        %v2756 = vadd.f32 %v2547, %v2707
        %v2757 = vadd.f32 %v2549, %v2709
        %v2758 = vadd.f32 %v2552, %v2712
        %v2759 = vadd.f32 %v2554, %v2714
        %v2760 = vadd.f32 %v2557, %v2717
        %v2761 = vadd.f32 %v2559, %v2719
        %v2762 = vadd.f32 %v2562, %v2722
        %v2763 = vadd.f32 %v2564, %v2724
        %v2764 = vadd.f32 %v2567, %v2727
        %v2765 = vadd.f32 %v2569, %v2729
        %v2766 = vadd.f32 %v2572, %v2732
        %v2767 = vadd.f32 %v2574, %v2734
        %v2768 = vadd.f32 %v2224, %v2736
        %v2769 = vadd.f32 %v2225, %v2737
        %v2770 = vadd.f32 %v2226, %v2738
        %v2771 = vadd.f32 %v2227, %v2739
        %v2772 = vadd.f32 %v2228, %v2740
        %v2773 = vadd.f32 %v2229, %v2741
        %v2774 = vadd.f32 %v2230, %v2742
        %v2775 = vadd.f32 %v2231, %v2743
        %v2776 = vadd.f32 %v2232, %v2744
        %v2777 = vadd.f32 %v2233, %v2745
        %v2778 = vadd.f32 %v2234, %v2746
        %v2779 = vadd.f32 %v2235, %v2747
        %v2780 = vadd.f32 %v2236, %v2748
        %v2781 = vadd.f32 %v2237, %v2749
        %v2782 = vadd.f32 %v2238, %v2750
        %v2783 = vadd.f32 %v2239, %v2751
        %v2784 = vadd.f32 %v2240, %v2752
        %v2785 = vadd.f32 %v2241, %v2753
        %v2786 = vadd.f32 %v2242, %v2754
        %v2787 = vadd.f32 %v2243, %v2755
        %v2788 = vadd.f32 %v2244, %v2756
        %v2789 = vadd.f32 %v2245, %v2757
        %v2790 = vadd.f32 %v2246, %v2758
        %v2791 = vadd.f32 %v2247, %v2759
        %v2792 = vadd.f32 %v2248, %v2760
        %v2793 = vadd.f32 %v2249, %v2761
        %v2794 = vadd.f32 %v2250, %v2762
        %v2795 = vadd.f32 %v2251, %v2763
        %v2796 = vadd.f32 %v2252, %v2764
        %v2797 = vadd.f32 %v2253, %v2765
        %v2798 = vadd.f32 %v2254, %v2766
        %v2799 = vadd.f32 %v2255, %v2767
        %v2800 = vld [vmem:[%s6] sm:$0x1]
        %v2802 = vperm.slane %v2800, 0
        %v2804 = vadd.f32 %v2768, %v2802
        %v2805 = vadd.f32 %v2769, %v2802
        %v2806 = vadd.f32 %v2770, %v2802
        %v2807 = vadd.f32 %v2771, %v2802
        %v2808 = vadd.f32 %v2772, %v2802
        %v2809 = vadd.f32 %v2773, %v2802
        %v2810 = vadd.f32 %v2774, %v2802
        %v2811 = vadd.f32 %v2775, %v2802
        %v2812 = vadd.f32 %v2776, %v2802
        %v2813 = vadd.f32 %v2777, %v2802
        %v2814 = vadd.f32 %v2778, %v2802
        %v2815 = vadd.f32 %v2779, %v2802
        %v2816 = vadd.f32 %v2780, %v2802
        %v2817 = vadd.f32 %v2781, %v2802
        %v2818 = vadd.f32 %v2782, %v2802
        %v2819 = vadd.f32 %v2783, %v2802
        %v2820 = vadd.f32 %v2784, %v2802
        %v2821 = vadd.f32 %v2785, %v2802
        %v2822 = vadd.f32 %v2786, %v2802
        %v2823 = vadd.f32 %v2787, %v2802
        %v2824 = vadd.f32 %v2788, %v2802
        %v2825 = vadd.f32 %v2789, %v2802
        %v2826 = vadd.f32 %v2790, %v2802
        %v2827 = vadd.f32 %v2791, %v2802
        %v2828 = vadd.f32 %v2792, %v2802
        %v2829 = vadd.f32 %v2793, %v2802
        %v2830 = vadd.f32 %v2794, %v2802
        %v2831 = vadd.f32 %v2795, %v2802
        %v2832 = vadd.f32 %v2796, %v2802
        %v2833 = vadd.f32 %v2797, %v2802
        %v2834 = vadd.f32 %v2798, %v2802
        %v2835 = vadd.f32 %v2799, %v2802
        %v2836 = vmax.f32 %v2804, 0.0
        %v2837 = vmax.f32 %v2805, 0.0
        %v2838 = vmax.f32 %v2806, 0.0
        %v2839 = vmax.f32 %v2807, 0.0
        %v2840 = vmax.f32 %v2808, 0.0
        %v2841 = vmax.f32 %v2809, 0.0
        %v2842 = vmax.f32 %v2810, 0.0
        %v2843 = vmax.f32 %v2811, 0.0
        %v2844 = vmax.f32 %v2812, 0.0
        %v2845 = vmax.f32 %v2813, 0.0
        %v2846 = vmax.f32 %v2814, 0.0
        %v2847 = vmax.f32 %v2815, 0.0
        %v2848 = vmax.f32 %v2816, 0.0
        %v2849 = vmax.f32 %v2817, 0.0
        %v2850 = vmax.f32 %v2818, 0.0
        %v2851 = vmax.f32 %v2819, 0.0
        %v2852 = vmax.f32 %v2820, 0.0
        %v2853 = vmax.f32 %v2821, 0.0
        %v2854 = vmax.f32 %v2822, 0.0
        %v2855 = vmax.f32 %v2823, 0.0
        %v2856 = vmax.f32 %v2824, 0.0
        %v2857 = vmax.f32 %v2825, 0.0
        %v2858 = vmax.f32 %v2826, 0.0
        %v2859 = vmax.f32 %v2827, 0.0
        %v2860 = vmax.f32 %v2828, 0.0
        %v2861 = vmax.f32 %v2829, 0.0
        %v2862 = vmax.f32 %v2830, 0.0
        %v2863 = vmax.f32 %v2831, 0.0
        %v2864 = vmax.f32 %v2832, 0.0
        %v2865 = vmax.f32 %v2833, 0.0
        %v2866 = vmax.f32 %v2834, 0.0
        %v2867 = vmax.f32 %v2835, 0.0
        %v2868 = vpack.c.bf16 %v2837, %v2836
        %v2869 = vpack.c.bf16 %v2839, %v2838
        %v2870 = vpack.c.bf16 %v2841, %v2840
        %v2871 = vpack.c.bf16 %v2843, %v2842
        %v2872 = vpack.c.bf16 %v2845, %v2844
        %v2873 = vpack.c.bf16 %v2847, %v2846
        %v2874 = vpack.c.bf16 %v2849, %v2848
        %v2875 = vpack.c.bf16 %v2851, %v2850
        %v2876 = vpack.c.bf16 %v2853, %v2852
        %v2877 = vpack.c.bf16 %v2855, %v2854
        %v2878 = vpack.c.bf16 %v2857, %v2856
        %v2879 = vpack.c.bf16 %v2859, %v2858
        %v2880 = vpack.c.bf16 %v2861, %v2860
        %v2881 = vpack.c.bf16 %v2863, %v2862
        %v2882 = vpack.c.bf16 %v2865, %v2864
        %v2883 = vpack.c.bf16 %v2867, %v2866
        %v2884 = vld [vmem:[#allocation11] sm:$0xf]
        %v2885 = vld [vmem:[#allocation11 + $0x4] sm:$0xf]
        %v2886 = vld [vmem:[#allocation11 + $0x8] sm:$0xf]
        %v2887 = vld [vmem:[#allocation11 + $0xc] sm:$0xf]
        %v2888 = vld [vmem:[#allocation11 + $0x10] sm:$0xf]
        %v2889 = vld [vmem:[#allocation11 + $0x14] sm:$0xf]
        %v2890 = vld [vmem:[#allocation11 + $0x18] sm:$0xf]
        %v2891 = vld [vmem:[#allocation11 + $0x1c] sm:$0xf]
        %v2892 = vld [vmem:[#allocation11 + $0x20] sm:$0xf]
        %v2893 = vld [vmem:[#allocation11 + $0x24] sm:$0xf]
        %v2894 = vld [vmem:[#allocation11 + $0x28] sm:$0xf]
        %v2895 = vld [vmem:[#allocation11 + $0x2c] sm:$0xf]
        %v2896 = vld [vmem:[#allocation11 + $0x30] sm:$0xf]
        %v2897 = vld [vmem:[#allocation11 + $0x34] sm:$0xf]
        %v2898 = vld [vmem:[#allocation11 + $0x38] sm:$0xf]
        %v2899 = vld [vmem:[#allocation11 + $0x3c] sm:$0xf]
        %v2900 = vld [vmem:[%s8] sm:$0x1]
        %v2902 = vperm.slane %v2900, 0
        %v2920 = vunpack.c.l.b16 %v2884
        %v2921 = vunpack.c.l.b16 %v2885
        %v2922 = vunpack.c.l.b16 %v2886
        %v2923 = vunpack.c.l.b16 %v2887
        %v2924 = vunpack.c.l.b16 %v2888
        %v2925 = vunpack.c.l.b16 %v2889
        %v2926 = vunpack.c.l.b16 %v2890
        %v2927 = vunpack.c.l.b16 %v2891
        %v2928 = vunpack.c.l.b16 %v2892
        %v2929 = vunpack.c.l.b16 %v2893
        %v2930 = vunpack.c.l.b16 %v2894
        %v2931 = vunpack.c.l.b16 %v2895
        %v2932 = vunpack.c.l.b16 %v2896
        %v2933 = vunpack.c.l.b16 %v2897
        %v2934 = vunpack.c.l.b16 %v2898
        %v2935 = vunpack.c.l.b16 %v2899
        %v2936 = vpack.c.b16 %v2921, %v2920
        %v2937 = vpack.c.b16 %v2923, %v2922
        %v2938 = vpack.c.b16 %v2925, %v2924
        %v2939 = vpack.c.b16 %v2927, %v2926
        %v2940 = vpack.c.b16 %v2929, %v2928
        %v2941 = vpack.c.b16 %v2931, %v2930
        %v2942 = vpack.c.b16 %v2933, %v2932
        %v2943 = vpack.c.b16 %v2935, %v2934
        %2952 = vmatpush.bf16.msra.mxu0 %v2943
        %2953 = vmatpush.bf16.msra.mxu0 %v2942
        %2954 = vmatpush.bf16.msra.mxu0 %v2941
        %2955 = vmatpush.bf16.msra.mxu0 %v2940
        %2956 = vmatpush.bf16.msra.mxu0 %v2939
        %2957 = vmatpush.bf16.msra.mxu0 %v2938
        %2958 = vmatpush.bf16.msra.mxu0 %v2937
        %2959 = vmatpush.bf16.msra.mxu0 %v2936
        %2960 = vmatmul.bf16.gmra.mxu0 %v2868
        %v2961 = vpop.f32.mrf.mxu0
        %v2962 = vadd.f32 %v2902, %v2961
        %v2963 = vpop.f32.mrf.mxu0
        %v2964 = vadd.f32 %v2902, %v2963
        %2965 = vmatmul.bf16.gmra.mxu0 %v2869
        %v2966 = vpop.f32.mrf.mxu0
        %v2967 = vadd.f32 %v2902, %v2966
        %v2968 = vpop.f32.mrf.mxu0
        %v2969 = vadd.f32 %v2902, %v2968
        %2970 = vmatmul.bf16.gmra.mxu0 %v2870
        %v2971 = vpop.f32.mrf.mxu0
        %v2972 = vadd.f32 %v2902, %v2971
        %v2973 = vpop.f32.mrf.mxu0
        %v2974 = vadd.f32 %v2902, %v2973
        %2975 = vmatmul.bf16.gmra.mxu0 %v2871
        %v2976 = vpop.f32.mrf.mxu0
        %v2977 = vadd.f32 %v2902, %v2976
        %v2978 = vpop.f32.mrf.mxu0
        %v2979 = vadd.f32 %v2902, %v2978
        %2980 = vmatmul.bf16.gmra.mxu0 %v2872
        %v2981 = vpop.f32.mrf.mxu0
        %v2982 = vadd.f32 %v2902, %v2981
        %v2983 = vpop.f32.mrf.mxu0
        %v2984 = vadd.f32 %v2902, %v2983
        %2985 = vmatmul.bf16.gmra.mxu0 %v2873
        %v2986 = vpop.f32.mrf.mxu0
        %v2987 = vadd.f32 %v2902, %v2986
        %v2988 = vpop.f32.mrf.mxu0
        %v2989 = vadd.f32 %v2902, %v2988
        %2990 = vmatmul.bf16.gmra.mxu0 %v2874
        %v2991 = vpop.f32.mrf.mxu0
        %v2992 = vadd.f32 %v2902, %v2991
        %v2993 = vpop.f32.mrf.mxu0
        %v2994 = vadd.f32 %v2902, %v2993
        %2995 = vmatmul.bf16.gmra.mxu0 %v2875
        %v2996 = vpop.f32.mrf.mxu0
        %v2997 = vadd.f32 %v2902, %v2996
        %v2998 = vpop.f32.mrf.mxu0
        %v2999 = vadd.f32 %v2902, %v2998
        %3000 = vmatmul.bf16.gmra.mxu0 %v2876
        %v3001 = vpop.f32.mrf.mxu0
        %v3002 = vadd.f32 %v2902, %v3001
        %v3003 = vpop.f32.mrf.mxu0
        %v3004 = vadd.f32 %v2902, %v3003
        %3005 = vmatmul.bf16.gmra.mxu0 %v2877
        %v3006 = vpop.f32.mrf.mxu0
        %v3007 = vadd.f32 %v2902, %v3006
        %v3008 = vpop.f32.mrf.mxu0
        %v3009 = vadd.f32 %v2902, %v3008
        %3010 = vmatmul.bf16.gmra.mxu0 %v2878
        %v3011 = vpop.f32.mrf.mxu0
        %v3012 = vadd.f32 %v2902, %v3011
        %v3013 = vpop.f32.mrf.mxu0
        %v3014 = vadd.f32 %v2902, %v3013
        %3015 = vmatmul.bf16.gmra.mxu0 %v2879
        %v3016 = vpop.f32.mrf.mxu0
        %v3017 = vadd.f32 %v2902, %v3016
        %v3018 = vpop.f32.mrf.mxu0
        %v3019 = vadd.f32 %v2902, %v3018
        %3020 = vmatmul.bf16.gmra.mxu0 %v2880
        %v3021 = vpop.f32.mrf.mxu0
        %v3022 = vadd.f32 %v2902, %v3021
        %v3023 = vpop.f32.mrf.mxu0
        %v3024 = vadd.f32 %v2902, %v3023
        %3025 = vmatmul.bf16.gmra.mxu0 %v2881
        %v3026 = vpop.f32.mrf.mxu0
        %v3027 = vadd.f32 %v2902, %v3026
        %v3028 = vpop.f32.mrf.mxu0
        %v3029 = vadd.f32 %v2902, %v3028
        %3030 = vmatmul.bf16.gmra.mxu0 %v2882
        %v3031 = vpop.f32.mrf.mxu0
        %v3032 = vadd.f32 %v2902, %v3031
        %v3033 = vpop.f32.mrf.mxu0
        %v3034 = vadd.f32 %v2902, %v3033
        %3035 = vmatmul.bf16.gmra.mxu0 %v2883
        %v3036 = vpop.f32.mrf.mxu0
        %v3037 = vadd.f32 %v2902, %v3036
        %v3038 = vpop.f32.mrf.mxu0
        %v3039 = vadd.f32 %v2902, %v3038
        %3040 = vdwg.mxu0
        %v3041 = vunpack.c.l.bf16 %v545
        %v3042 = vunpack.c.l.bf16 %v546
        %v3043 = vunpack.c.l.bf16 %v547
        %v3044 = vunpack.c.l.bf16 %v548
        %v3045 = vunpack.c.l.bf16 %v549
        %v3046 = vunpack.c.l.bf16 %v550
        %v3047 = vunpack.c.l.bf16 %v551
        %v3048 = vunpack.c.l.bf16 %v552
        %v3049 = vunpack.c.l.bf16 %v553
        %v3050 = vunpack.c.l.bf16 %v554
        %v3051 = vunpack.c.l.bf16 %v555
        %v3052 = vunpack.c.l.bf16 %v556
        %v3053 = vunpack.c.l.bf16 %v557
        %v3054 = vunpack.c.l.bf16 %v558
        %v3055 = vunpack.c.l.bf16 %v559
        %v3056 = vunpack.c.l.bf16 %v560
        %v3057 = vunpack.c.l.bf16 %v561
        %v3058 = vunpack.c.l.bf16 %v562
        %v3059 = vunpack.c.l.bf16 %v563
        %v3060 = vunpack.c.l.bf16 %v564
        %v3061 = vunpack.c.l.bf16 %v565
        %v3062 = vunpack.c.l.bf16 %v566
        %v3063 = vunpack.c.l.bf16 %v567
        %v3064 = vunpack.c.l.bf16 %v568
        %v3065 = vunpack.c.l.bf16 %v569
        %v3066 = vunpack.c.l.bf16 %v570
        %v3067 = vunpack.c.l.bf16 %v571
        %v3068 = vunpack.c.l.bf16 %v572
        %v3069 = vunpack.c.l.bf16 %v573
        %v3070 = vunpack.c.l.bf16 %v574
        %v3071 = vunpack.c.l.bf16 %v575
        %v3072 = vunpack.c.l.bf16 %v576
        %v3073 = vadd.f32 %v2962, %v3041
        %v3074 = vadd.f32 %v2964, %v3042
        %v3075 = vadd.f32 %v2967, %v3043
        %v3076 = vadd.f32 %v2969, %v3044
        %v3077 = vadd.f32 %v2972, %v3045
        %v3078 = vadd.f32 %v2974, %v3046
        %v3079 = vadd.f32 %v2977, %v3047
        %v3080 = vadd.f32 %v2979, %v3048
        %v3081 = vadd.f32 %v2982, %v3049
        %v3082 = vadd.f32 %v2984, %v3050
        %v3083 = vadd.f32 %v2987, %v3051
        %v3084 = vadd.f32 %v2989, %v3052
        %v3085 = vadd.f32 %v2992, %v3053
        %v3086 = vadd.f32 %v2994, %v3054
        %v3087 = vadd.f32 %v2997, %v3055
        %v3088 = vadd.f32 %v2999, %v3056
        %v3089 = vadd.f32 %v3002, %v3057
        %v3090 = vadd.f32 %v3004, %v3058
        %v3091 = vadd.f32 %v3007, %v3059
        %v3092 = vadd.f32 %v3009, %v3060
        %v3093 = vadd.f32 %v3012, %v3061
        %v3094 = vadd.f32 %v3014, %v3062
        %v3095 = vadd.f32 %v3017, %v3063
        %v3096 = vadd.f32 %v3019, %v3064
        %v3097 = vadd.f32 %v3022, %v3065
        %v3098 = vadd.f32 %v3024, %v3066
        %v3099 = vadd.f32 %v3027, %v3067
        %v3100 = vadd.f32 %v3029, %v3068
        %v3101 = vadd.f32 %v3032, %v3069
        %v3102 = vadd.f32 %v3034, %v3070
        %v3103 = vadd.f32 %v3037, %v3071
        %v3104 = vadd.f32 %v3039, %v3072
        %v3105 = vmax.f32 %v3073, 0.0
        %v3106 = vmax.f32 %v3074, 0.0
        %v3107 = vmax.f32 %v3075, 0.0
        %v3108 = vmax.f32 %v3076, 0.0
        %v3109 = vmax.f32 %v3077, 0.0
        %v3110 = vmax.f32 %v3078, 0.0
        %v3111 = vmax.f32 %v3079, 0.0
        %v3112 = vmax.f32 %v3080, 0.0
        %v3113 = vmax.f32 %v3081, 0.0
        %v3114 = vmax.f32 %v3082, 0.0
        %v3115 = vmax.f32 %v3083, 0.0
        %v3116 = vmax.f32 %v3084, 0.0
        %v3117 = vmax.f32 %v3085, 0.0
        %v3118 = vmax.f32 %v3086, 0.0
        %v3119 = vmax.f32 %v3087, 0.0
        %v3120 = vmax.f32 %v3088, 0.0
        %v3121 = vmax.f32 %v3089, 0.0
        %v3122 = vmax.f32 %v3090, 0.0
        %v3123 = vmax.f32 %v3091, 0.0
        %v3124 = vmax.f32 %v3092, 0.0
        %v3125 = vmax.f32 %v3093, 0.0
        %v3126 = vmax.f32 %v3094, 0.0
        %v3127 = vmax.f32 %v3095, 0.0
        %v3128 = vmax.f32 %v3096, 0.0
        %v3129 = vmax.f32 %v3097, 0.0
        %v3130 = vmax.f32 %v3098, 0.0
        %v3131 = vmax.f32 %v3099, 0.0
        %v3132 = vmax.f32 %v3100, 0.0
        %v3133 = vmax.f32 %v3101, 0.0
        %v3134 = vmax.f32 %v3102, 0.0
        %v3135 = vmax.f32 %v3103, 0.0
        %v3136 = vmax.f32 %v3104, 0.0
        %v3137 = vpack.c.bf16 %v3105, %v3105
        %v3138 = vpack.c.bf16 %v3106, %v3106
        %v3139 = vpack.c.bf16 %v3107, %v3107
        %v3140 = vpack.c.bf16 %v3108, %v3108
        %v3141 = vpack.c.bf16 %v3109, %v3109
        %v3142 = vpack.c.bf16 %v3110, %v3110
        %v3143 = vpack.c.bf16 %v3111, %v3111
        %v3144 = vpack.c.bf16 %v3112, %v3112
        %v3145 = vpack.c.bf16 %v3113, %v3113
        %v3146 = vpack.c.bf16 %v3114, %v3114
        %v3147 = vpack.c.bf16 %v3115, %v3115
        %v3148 = vpack.c.bf16 %v3116, %v3116
        %v3149 = vpack.c.bf16 %v3117, %v3117
        %v3150 = vpack.c.bf16 %v3118, %v3118
        %v3151 = vpack.c.bf16 %v3119, %v3119
        %v3152 = vpack.c.bf16 %v3120, %v3120
        %v3153 = vpack.c.bf16 %v3121, %v3121
        %v3154 = vpack.c.bf16 %v3122, %v3122
        %v3155 = vpack.c.bf16 %v3123, %v3123
        %v3156 = vpack.c.bf16 %v3124, %v3124
        %v3157 = vpack.c.bf16 %v3125, %v3125
        %v3158 = vpack.c.bf16 %v3126, %v3126
        %v3159 = vpack.c.bf16 %v3127, %v3127
        %v3160 = vpack.c.bf16 %v3128, %v3128
        %v3161 = vpack.c.bf16 %v3129, %v3129
        %v3162 = vpack.c.bf16 %v3130, %v3130
        %v3163 = vpack.c.bf16 %v3131, %v3131
        %v3164 = vpack.c.bf16 %v3132, %v3132
        %v3165 = vpack.c.bf16 %v3133, %v3133
        %v3166 = vpack.c.bf16 %v3134, %v3134
        %v3167 = vpack.c.bf16 %v3135, %v3135
        %v3168 = vpack.c.bf16 %v3136, %v3136
        %3169 = vst [vmem:[%s534] sm:$0xf] %v3137
        %3170 = vst [vmem:[%s534 + $0x4] sm:$0xf] %v3138
        %3171 = vst [vmem:[%s534 + $0x8] sm:$0xf] %v3139
        %3172 = vst [vmem:[%s534 + $0xc] sm:$0xf] %v3140
        %3173 = vst [vmem:[%s534 + $0x10] sm:$0xf] %v3141
        %3174 = vst [vmem:[%s534 + $0x14] sm:$0xf] %v3142
        %3175 = vst [vmem:[%s534 + $0x18] sm:$0xf] %v3143
        %3176 = vst [vmem:[%s534 + $0x1c] sm:$0xf] %v3144
        %3177 = vst [vmem:[%s534 + $0x20] sm:$0xf] %v3145
        %3178 = vst [vmem:[%s534 + $0x24] sm:$0xf] %v3146
        %3179 = vst [vmem:[%s534 + $0x28] sm:$0xf] %v3147
        %3180 = vst [vmem:[%s534 + $0x2c] sm:$0xf] %v3148
        %3181 = vst [vmem:[%s534 + $0x30] sm:$0xf] %v3149
        %3182 = vst [vmem:[%s534 + $0x34] sm:$0xf] %v3150
        %3183 = vst [vmem:[%s534 + $0x38] sm:$0xf] %v3151
        %3184 = vst [vmem:[%s534 + $0x3c] sm:$0xf] %v3152
        %3185 = vst [vmem:[%s534 + $0x40] sm:$0xf] %v3153
        %3186 = vst [vmem:[%s534 + $0x44] sm:$0xf] %v3154
        %3187 = vst [vmem:[%s534 + $0x48] sm:$0xf] %v3155
        %3188 = vst [vmem:[%s534 + $0x4c] sm:$0xf] %v3156
        %3189 = vst [vmem:[%s534 + $0x50] sm:$0xf] %v3157
        %3190 = vst [vmem:[%s534 + $0x54] sm:$0xf] %v3158
        %3191 = vst [vmem:[%s534 + $0x58] sm:$0xf] %v3159
        %3192 = vst [vmem:[%s534 + $0x5c] sm:$0xf] %v3160
        %3193 = vst [vmem:[%s534 + $0x60] sm:$0xf] %v3161
        %3194 = vst [vmem:[%s534 + $0x64] sm:$0xf] %v3162
        %3195 = vst [vmem:[%s534 + $0x68] sm:$0xf] %v3163
        %3196 = vst [vmem:[%s534 + $0x6c] sm:$0xf] %v3164
        %3197 = vst [vmem:[%s534 + $0x70] sm:$0xf] %v3165
        %3198 = vst [vmem:[%s534 + $0x74] sm:$0xf] %v3166
        %3199 = vst [vmem:[%s534 + $0x78] sm:$0xf] %v3167
        %3200 = vst [vmem:[%s534 + $0x7c] sm:$0xf] %v3168
        %s3201 = sand.u32 %s279, 1
        %s3202 = scalar_lea.sflag [#allocation4], %s3201
        %s3203 = sand.u32 %s279, 1
        %s3204 = smul.addr %s3203, 128
        %s3205 = scalar_lea.vmem [#allocation13], %s3204
        // Predicated region
        $region81: #{tpu_custom_call.1} parent=55 // pred_check
          %p3206 = pneg %p289
        $region82: #{tpu_custom_call.1} parent=55 // pred_check_branch
          %3208 = sbr.rel (%p3206) target = $region84
        $region83: #{tpu_custom_call.1} parent=55 // pred_region
          %s3209 = smul.u32 16, %s36
          %3211 = vsyncadd %s3202, 0
          %s3212 = smul.addr %s3209, 2
          %s3213 = smul.addr %s35, 32
          %s3214 = sadd.s32 %s3212, %s3213
          %s3215 = smul.addr %s3214, 4
          %s3216 = scalar_lea.hbm %s9, %s3215
          %s3217 = sshll.u32 %s3205, 4
          %s3218 = int_to_ptr.vmem [resolvable:$true] %s3217
          %s3219 = sshll.u32 %s3216, 4
          %s3220 = int_to_ptr.hbm [resolvable:$true] %s3219
          %3225 = dma.vmem_to_hbm [thread:$0]  %s3218, 2048, %s3220, %s3202, 64, 64, 4
        $region84: #{tpu_custom_call.1} parent=55 // pred_fallthru
          _
      $region56: #{tpu_custom_call.1} parent=5 // pred_fallthru
        _
      %p3226 = scmp.le.s32.totalorder 2, %s26
      // Predicated region
      $region85: #{tpu_custom_call.1} parent=5 // pred_check
        %p3227 = pneg %p3226
      $region86: #{tpu_custom_call.1} parent=5 // pred_check_branch
        %3229 = sbr.rel (%p3227) target = $region88
      $region87: #{tpu_custom_call.1} parent=5 // pred_region
        %s3230 = ssub.s32 %s26, 2
        // Predicated region
        $region89: #{tpu_custom_call.1} parent=87 // pred_check
          %p3231 = pneg %p295
        $region90: #{tpu_custom_call.1} parent=87 // pred_check_branch
          %3233 = sbr.rel (%p3231) target = $region92
        $region91: #{tpu_custom_call.1} parent=87 // pred_region
          %s3234 = sand.u32 %s280, 1
          %s3235 = scalar_lea.sflag [#allocation4], %s3234
          %s3236 = sand.u32 %s280, 1
          %s3237 = smul.addr %s3236, 128
          %s3238 = scalar_lea.vmem [#allocation13], %s3237
          %3240 = dma.done %s3235, 2048
        $region92: #{tpu_custom_call.1} parent=87 // pred_fallthru
          _
      $region88: #{tpu_custom_call.1} parent=5 // pred_fallthru
        _
    $region6: #{tpu_custom_call.1} parent=1 // loop_footer
      %s30 = sadd.s32 1, %s26
    $region7: #{tpu_custom_call.1} parent=1 // loop_footer_branch
      %25 = sbr.rel target = $region3
    $region8: #{tpu_custom_call.1} parent=1 // loop_exit
      _
    %3241 = vsyncpa [#allocation3], 1
    %s3242 = scalar_lea.sflag [#allocation3], 1
    %3243 = vsyncpa %s3242, 1
    %3244 = vsyncpa [#allocation6], 1
    %s3245 = scalar_lea.sflag [#allocation6], 1
    %3246 = vsyncpa %s3245, 1
    %3247 = vsyncpa [#allocation9], 1
    %3248 = vsyncpa [#allocation12], 1
    %3249 = vsyncpa [#allocation4], 1
    %s3250 = scalar_lea.sflag [#allocation4], 1
    %3251 = vsyncpa %s3250, 1

</llo_original>
